<compile_context>
chip_gen: v7x
topology: tpu7x:2x2x1
jax: 0.10.0
libtpu: 0.0.40
codegen_flags: <defaults>
</compile_context>

<pallas_src>
import functools
import math

import jax
import jax.numpy as jnp
from jax.experimental import pallas as pl
from jax.experimental.pallas import tpu as pltpu


# -----------------------------------------------------------------------------
# Pallas kernel
# -----------------------------------------------------------------------------

def _equal_conv2d_kernel(x_ref, w_ref, b_ref, o_ref, acc_ref, *,
                         kh, kw, stride, Ho, Wo):
    """One grid step: accumulate one Cin slab of a direct conv for one batch
    element and one Cout tile.

    x_ref  : (Hp, Wp, TCi)       bf16  zero-padded input plane slab
    w_ref  : (kh*kw, TCi, TCo)   bf16  pre-scaled weights, tap-major
    b_ref  : (1, TCo)            f32   bias
    o_ref  : (Ho, Wo, TCo)       f32   output tile
    acc_ref: (Ho*Wo, TCo)        f32   accumulator (persists across Cin steps)
    """
    ci = pl.program_id(2)
    n_ci = pl.num_programs(2)

    @pl.when(ci == 0)
    def _init():
        acc_ref[...] = jnp.zeros_like(acc_ref)

    x = x_ref[...]                     # (Hp, Wp, TCi) bf16
    acc = acc_ref[...]                 # (Ho*Wo, TCo)  f32

    h_span = (Ho - 1) * stride + 1
    w_span = (Wo - 1) * stride + 1
    for di in range(kh):
        # rows feeding output rows for tap-row di (plain slice when stride==1)
        xr = x[di:di + h_span:stride]                       # (Ho, Wp, TCi)
        for dj in range(kw):
            xs = xr[:, dj:dj + w_span:stride, :]            # (Ho, Wo, TCi)
            a = xs.reshape(Ho * Wo, xs.shape[-1])           # (Ho*Wo, TCi)
            w_tap = w_ref[di * kw + dj]                     # (TCi, TCo)
            acc = acc + jnp.dot(a, w_tap,
                                preferred_element_type=jnp.float32)

    # Only carry the accumulator if another Cin slab follows.
    @pl.when(ci < n_ci - 1)
    def _carry():
        acc_ref[...] = acc

    @pl.when(ci == n_ci - 1)
    def _finalize():
        out = acc + b_ref[...]                              # f32 epilogue
        o_ref[...] = out.reshape(Ho, Wo, out.shape[-1]).astype(o_ref.dtype)


# -----------------------------------------------------------------------------
# Wrapper (EqualConv2d semantics, torch NCHW interface)
# -----------------------------------------------------------------------------

def equal_conv2d(x, weight, bias=None, stride=1, padding=0):
    """x: (N, Ci, H, W) f32, weight: (Co, Ci, k, k) f32, bias: (Co,) f32 or None.
    Returns (N, Co, Ho, Wo) f32, matching torch EqualConv2d.forward."""
    N, Ci, H, W = x.shape
    Co, Ci_w, kh, kw = weight.shape
    assert Ci == Ci_w, (Ci, Ci_w)
    scale = 1.0 / math.sqrt(Ci * kh * kw)

    # NCHW -> NHWC (channels on the 128-lane axis) + zero padding
    xh = jnp.transpose(x, (0, 2, 3, 1)).astype(jnp.float32)
    if padding > 0:
        xh = jnp.pad(xh, ((0, 0), (padding, padding), (padding, padding), (0, 0)))
    Hp, Wp = H + 2 * padding, W + 2 * padding
    Ho = (Hp - kh) // stride + 1
    Wo = (Wp - kw) // stride + 1

    # Pre-scale + pre-transpose weights once: (Co,Ci,kh,kw) -> (kh*kw, Ci, Co)
    w_r = jnp.transpose(weight * scale, (2, 3, 1, 0)).reshape(kh * kw, Ci, Co)

    # K (input-channel) tiling: one full-dim slab up to 256 channels, else
    # 256-wide slabs (zero-pad ragged channel counts -> zero contribution).
    if Ci <= 256:
        TCi, Ci_pad = Ci, Ci
    else:
        TCi = 256
        Ci_pad = ((Ci + TCi - 1) // TCi) * TCi
        if Ci_pad != Ci:
            xh = jnp.pad(xh, ((0, 0), (0, 0), (0, 0), (0, Ci_pad - Ci)))
            w_r = jnp.pad(w_r, ((0, 0), (0, Ci_pad - Ci), (0, 0)))
    n_ci = Ci_pad // TCi

    # N (output-channel) tile: 256-wide (v6e/v7x MXU), else 128, else full Co.
    if Co % 256 == 0:
        TCo = 256
    elif Co % 128 == 0:
        TCo = 128
    else:
        TCo = Co
    n_co = Co // TCo

    # bf16 MXU operands; accumulation/epilogue stay f32 inside the kernel.
    xh = xh.astype(jnp.bfloat16)
    w_r = w_r.astype(jnp.bfloat16)
    if bias is None:
        b = jnp.zeros((1, Co), jnp.float32)
    else:
        b = bias.reshape(1, Co).astype(jnp.float32)

    kernel = functools.partial(_equal_conv2d_kernel, kh=kh, kw=kw,
                               stride=stride, Ho=Ho, Wo=Wo)

    flops = 2 * N * Ho * Wo * Co * Ci_pad * kh * kw
    bytes_accessed = (xh.size * 2 * n_co          # activations (per Cout tile)
                      + w_r.size * 2 * N          # weights (per batch element)
                      + b.size * 4
                      + N * Ho * Wo * Co * 4)     # output
    cost = pl.CostEstimate(flops=int(flops), transcendentals=0,
                           bytes_accessed=int(bytes_accessed))

    out_nhwc = pl.pallas_call(
        kernel,
        out_shape=jax.ShapeDtypeStruct((N, Ho, Wo, Co), jnp.float32),
        grid=(N, n_co, n_ci),
        in_specs=[
            pl.BlockSpec((None, Hp, Wp, TCi), lambda n, co, ci: (n, 0, 0, ci)),
            pl.BlockSpec((kh * kw, TCi, TCo), lambda n, co, ci: (0, ci, co)),
            pl.BlockSpec((1, TCo), lambda n, co, ci: (0, co)),
        ],
        out_specs=pl.BlockSpec((None, Ho, Wo, TCo),
                               lambda n, co, ci: (n, 0, 0, co)),
        scratch_shapes=[pltpu.VMEM((Ho * Wo, TCo), jnp.float32)],
        compiler_params=pltpu.CompilerParams(
            dimension_semantics=("parallel", "parallel", "arbitrary"),
            vmem_limit_bytes=64 * 1024 * 1024),
        cost_estimate=cost,
    )(xh, w_r, b)

    # back to torch NCHW layout
    return jnp.transpose(out_nhwc, (0, 3, 1, 2))


# -----------------------------------------------------------------------------
# Reference (pure JAX) for verification
# -----------------------------------------------------------------------------

def _reference_equal_conv2d(x, weight, bias, stride, padding):
    scale = 1.0 / math.sqrt(weight.shape[1] * weight.shape[2] * weight.shape[3])
    # emulate the bf16 operand rounding used on the MXU path (f32 accumulation)
    xb = x.astype(jnp.bfloat16).astype(jnp.float32)
    wb = (weight * scale).astype(jnp.bfloat16).astype(jnp.float32)
    out = jax.lax.conv_general_dilated(
        xb, wb, window_strides=(stride, stride),
        padding=[(padding, padding), (padding, padding)],
        dimension_numbers=("NCHW", "OIHW", "NCHW"),
        precision=jax.lax.Precision.HIGHEST)
    if bias is not None:
        out = out + bias.reshape(1, -1, 1, 1)
    return out


# -----------------------------------------------------------------------------
# Demo
# -----------------------------------------------------------------------------

if __name__ == "__main__":
    key = jax.random.PRNGKey(0)

    # (batch, in_c, H, W, out_c, k, stride, padding)
    cases = [
        (2, 4, 16, 16, 32, 3, 1, 1),      # small 3x3 "same" conv
        (2, 256, 16, 16, 256, 3, 1, 1),   # single 256-wide Cin slab, 256-lane Cout tile
        (2, 512, 16, 16, 256, 3, 1, 1),   # tiled Cin reduction (2 K-blocks of 256)
        (2, 4, 16, 16, 128, 1, 1, 0),     # 1x1 conv, no padding, 128-lane Cout tile
    ]

    for idx, (n, ci, h, w, co, k, s, p) in enumerate(cases):
        kx, kw_, kb, key = jax.random.split(key, 4)
        x = jax.random.normal(kx, (n, ci, h, w), jnp.float32)
        weight = jax.random.normal(kw_, (co, ci, k, k), jnp.float32)
        bias = 0.1 * jax.random.normal(kb, (co,), jnp.float32)

        out = equal_conv2d(x, weight, bias, stride=s, padding=p)
        out = jax.block_until_ready(out)

        ref = _reference_equal_conv2d(x, weight, bias, s, p)
        assert out.shape == ref.shape, (out.shape, ref.shape)
        err = float(jnp.max(jnp.abs(out - ref)))
        assert err < 1e-2, f"case {idx}: max abs err {err}"

    print("KERNEL_OK")
</pallas_src>

<mosaic_0001>
module attributes {stable_mosaic.version = 11 : i64} {
  func.func @_equal_conv2d_kernel(%arg0: i32, %arg1: i32, %arg2: i32, %arg3: memref<1x18x18x4xbf16, #tpu.memory_space<vmem>>, %arg4: memref<9x4x32xbf16, #tpu.memory_space<vmem>>, %arg5: memref<1x32xf32, #tpu.memory_space<vmem>>, %arg6: memref<1x16x16x32xf32, #tpu.memory_space<vmem>>, %arg7: memref<256x32xf32, #tpu.memory_space<vmem>>) attributes {dimension_semantics = [#tpu.dimension_semantics<parallel>, #tpu.dimension_semantics<parallel>, #tpu.dimension_semantics<arbitrary>], iteration_bounds = array<i64: 2, 1, 1>, scalar_prefetch = 0 : i64, scratch_operands = 1 : i64, tpu.core_type = #tpu.core_type<tc>, window_params = [{transform_indices = @transform_0, window_bounds = array<i64: 1, 18, 18, 4>}, {transform_indices = @transform_1, window_bounds = array<i64: 9, 4, 32>}, {transform_indices = @transform_2, window_bounds = array<i64: 1, 32>}, {transform_indices = @transform_3, window_bounds = array<i64: 1, 16, 16, 32>}]} {
    %c0_i32 = arith.constant 0 : i32
    %0 = arith.cmpi eq, %arg2, %c0_i32 : i32
    %1 = arith.extui %0 : i1 to i32
    %c0_i32_0 = arith.constant 0 : i32
    %2 = arith.cmpi ne, %1, %c0_i32_0 : i32
    scf.if %2 {
      %cst_37 = arith.constant 0.000000e+00 : f32
      %69 = vector.broadcast %cst_37 : f32 to vector<256x32xf32>
      %c0_38 = arith.constant 0 : index
      %c0_39 = arith.constant 0 : index
      %70 = vector.load %arg7[%c0_38, %c0_39] : memref<256x32xf32, #tpu.memory_space<vmem>>, vector<256x32xf32>
      tpu.vector_store %arg7[%c0_38, %c0_39], %69 {strides = array<i32>} : memref<256x32xf32, #tpu.memory_space<vmem>>, vector<256x32xf32>,
    } else {
    }
    %c0 = arith.constant 0 : index
    %c0_1 = arith.constant 0 : index
    %c0_2 = arith.constant 0 : index
    %c0_3 = arith.constant 0 : index
    %3 = vector.load %arg3[%c0, %c0_1, %c0_2, %c0_3] : memref<1x18x18x4xbf16, #tpu.memory_space<vmem>>, vector<1x18x18x4xbf16>
    %4 = vector.shape_cast %3 : vector<1x18x18x4xbf16> to vector<18x18x4xbf16>
    %c0_4 = arith.constant 0 : index
    %c0_5 = arith.constant 0 : index
    %5 = vector.load %arg7[%c0_4, %c0_5] : memref<256x32xf32, #tpu.memory_space<vmem>>, vector<256x32xf32>
    %6 = vector.extract_strided_slice %4 {offsets = [0, 0, 0], sizes = [16, 18, 4], strides = [1, 1, 1]} : vector<18x18x4xbf16> to vector<16x18x4xbf16>
    %7 = vector.extract_strided_slice %6 {offsets = [0, 0, 0], sizes = [16, 16, 4], strides = [1, 1, 1]} : vector<16x18x4xbf16> to vector<16x16x4xbf16>
    %8 = vector.shape_cast %7 : vector<16x16x4xbf16> to vector<256x4xbf16>
    %c0_6 = arith.constant 0 : index
    %c0_7 = arith.constant 0 : index
    %c0_8 = arith.constant 0 : index
    %9 = vector.load %arg4[%c0_6, %c0_7, %c0_8] : memref<9x4x32xbf16, #tpu.memory_space<vmem>>, vector<1x4x32xbf16>
    %10 = vector.shape_cast %9 : vector<1x4x32xbf16> to vector<4x32xbf16>
    %cst = arith.constant dense<0.000000e+00> : vector<256x32xf32>
    %11 = tpu.matmul %8, %10, %cst {dimension_numbers = #tpu.dot_dimension_numbers<[1], [0], [0], [1], [0, 0, 1, 1], [], []>} : vector<256x4xbf16>, vector<4x32xbf16>, vector<256x32xf32> -> vector<256x32xf32>
    %12 = arith.addf %5, %11 : vector<256x32xf32>
    %13 = vector.extract_strided_slice %6 {offsets = [0, 1, 0], sizes = [16, 16, 4], strides = [1, 1, 1]} : vector<16x18x4xbf16> to vector<16x16x4xbf16>
    %14 = vector.shape_cast %13 : vector<16x16x4xbf16> to vector<256x4xbf16>
    %c1 = arith.constant 1 : index
    %c0_9 = arith.constant 0 : index
    %c0_10 = arith.constant 0 : index
    %15 = vector.load %arg4[%c1, %c0_9, %c0_10] : memref<9x4x32xbf16, #tpu.memory_space<vmem>>, vector<1x4x32xbf16>
    %16 = vector.shape_cast %15 : vector<1x4x32xbf16> to vector<4x32xbf16>
    %cst_11 = arith.constant dense<0.000000e+00> : vector<256x32xf32>
    %17 = tpu.matmul %14, %16, %cst_11 {dimension_numbers = #tpu.dot_dimension_numbers<[1], [0], [0], [1], [0, 0, 1, 1], [], []>} : vector<256x4xbf16>, vector<4x32xbf16>, vector<256x32xf32> -> vector<256x32xf32>
    %18 = arith.addf %12, %17 : vector<256x32xf32>
    %19 = vector.extract_strided_slice %6 {offsets = [0, 2, 0], sizes = [16, 16, 4], strides = [1, 1, 1]} : vector<16x18x4xbf16> to vector<16x16x4xbf16>
    %20 = vector.shape_cast %19 : vector<16x16x4xbf16> to vector<256x4xbf16>
    %c2 = arith.constant 2 : index
    %c0_12 = arith.constant 0 : index
    %c0_13 = arith.constant 0 : index
    %21 = vector.load %arg4[%c2, %c0_12, %c0_13] : memref<9x4x32xbf16, #tpu.memory_space<vmem>>, vector<1x4x32xbf16>
    %22 = vector.shape_cast %21 : vector<1x4x32xbf16> to vector<4x32xbf16>
    %cst_14 = arith.constant dense<0.000000e+00> : vector<256x32xf32>
    %23 = tpu.matmul %20, %22, %cst_14 {dimension_numbers = #tpu.dot_dimension_numbers<[1], [0], [0], [1], [0, 0, 1, 1], [], []>} : vector<256x4xbf16>, vector<4x32xbf16>, vector<256x32xf32> -> vector<256x32xf32>
    %24 = arith.addf %18, %23 : vector<256x32xf32>
    %25 = vector.extract_strided_slice %4 {offsets = [1, 0, 0], sizes = [16, 18, 4], strides = [1, 1, 1]} : vector<18x18x4xbf16> to vector<16x18x4xbf16>
    %26 = vector.extract_strided_slice %25 {offsets = [0, 0, 0], sizes = [16, 16, 4], strides = [1, 1, 1]} : vector<16x18x4xbf16> to vector<16x16x4xbf16>
    %27 = vector.shape_cast %26 : vector<16x16x4xbf16> to vector<256x4xbf16>
    %c3 = arith.constant 3 : index
    %c0_15 = arith.constant 0 : index
    %c0_16 = arith.constant 0 : index
    %28 = vector.load %arg4[%c3, %c0_15, %c0_16] : memref<9x4x32xbf16, #tpu.memory_space<vmem>>, vector<1x4x32xbf16>
    %29 = vector.shape_cast %28 : vector<1x4x32xbf16> to vector<4x32xbf16>
    %cst_17 = arith.constant dense<0.000000e+00> : vector<256x32xf32>
    %30 = tpu.matmul %27, %29, %cst_17 {dimension_numbers = #tpu.dot_dimension_numbers<[1], [0], [0], [1], [0, 0, 1, 1], [], []>} : vector<256x4xbf16>, vector<4x32xbf16>, vector<256x32xf32> -> vector<256x32xf32>
    %31 = arith.addf %24, %30 : vector<256x32xf32>
    %32 = vector.extract_strided_slice %25 {offsets = [0, 1, 0], sizes = [16, 16, 4], strides = [1, 1, 1]} : vector<16x18x4xbf16> to vector<16x16x4xbf16>
    %33 = vector.shape_cast %32 : vector<16x16x4xbf16> to vector<256x4xbf16>
    %c4 = arith.constant 4 : index
    %c0_18 = arith.constant 0 : index
    %c0_19 = arith.constant 0 : index
    %34 = vector.load %arg4[%c4, %c0_18, %c0_19] : memref<9x4x32xbf16, #tpu.memory_space<vmem>>, vector<1x4x32xbf16>
    %35 = vector.shape_cast %34 : vector<1x4x32xbf16> to vector<4x32xbf16>
    %cst_20 = arith.constant dense<0.000000e+00> : vector<256x32xf32>
    %36 = tpu.matmul %33, %35, %cst_20 {dimension_numbers = #tpu.dot_dimension_numbers<[1], [0], [0], [1], [0, 0, 1, 1], [], []>} : vector<256x4xbf16>, vector<4x32xbf16>, vector<256x32xf32> -> vector<256x32xf32>
    %37 = arith.addf %31, %36 : vector<256x32xf32>
    %38 = vector.extract_strided_slice %25 {offsets = [0, 2, 0], sizes = [16, 16, 4], strides = [1, 1, 1]} : vector<16x18x4xbf16> to vector<16x16x4xbf16>
    %39 = vector.shape_cast %38 : vector<16x16x4xbf16> to vector<256x4xbf16>
    %c5 = arith.constant 5 : index
    %c0_21 = arith.constant 0 : index
    %c0_22 = arith.constant 0 : index
    %40 = vector.load %arg4[%c5, %c0_21, %c0_22] : memref<9x4x32xbf16, #tpu.memory_space<vmem>>, vector<1x4x32xbf16>
    %41 = vector.shape_cast %40 : vector<1x4x32xbf16> to vector<4x32xbf16>
    %cst_23 = arith.constant dense<0.000000e+00> : vector<256x32xf32>
    %42 = tpu.matmul %39, %41, %cst_23 {dimension_numbers = #tpu.dot_dimension_numbers<[1], [0], [0], [1], [0, 0, 1, 1], [], []>} : vector<256x4xbf16>, vector<4x32xbf16>, vector<256x32xf32> -> vector<256x32xf32>
    %43 = arith.addf %37, %42 : vector<256x32xf32>
    %44 = vector.extract_strided_slice %4 {offsets = [2, 0, 0], sizes = [16, 18, 4], strides = [1, 1, 1]} : vector<18x18x4xbf16> to vector<16x18x4xbf16>
    %45 = vector.extract_strided_slice %44 {offsets = [0, 0, 0], sizes = [16, 16, 4], strides = [1, 1, 1]} : vector<16x18x4xbf16> to vector<16x16x4xbf16>
    %46 = vector.shape_cast %45 : vector<16x16x4xbf16> to vector<256x4xbf16>
    %c6 = arith.constant 6 : index
    %c0_24 = arith.constant 0 : index
    %c0_25 = arith.constant 0 : index
    %47 = vector.load %arg4[%c6, %c0_24, %c0_25] : memref<9x4x32xbf16, #tpu.memory_space<vmem>>, vector<1x4x32xbf16>
    %48 = vector.shape_cast %47 : vector<1x4x32xbf16> to vector<4x32xbf16>
    %cst_26 = arith.constant dense<0.000000e+00> : vector<256x32xf32>
    %49 = tpu.matmul %46, %48, %cst_26 {dimension_numbers = #tpu.dot_dimension_numbers<[1], [0], [0], [1], [0, 0, 1, 1], [], []>} : vector<256x4xbf16>, vector<4x32xbf16>, vector<256x32xf32> -> vector<256x32xf32>
    %50 = arith.addf %43, %49 : vector<256x32xf32>
    %51 = vector.extract_strided_slice %44 {offsets = [0, 1, 0], sizes = [16, 16, 4], strides = [1, 1, 1]} : vector<16x18x4xbf16> to vector<16x16x4xbf16>
    %52 = vector.shape_cast %51 : vector<16x16x4xbf16> to vector<256x4xbf16>
    %c7 = arith.constant 7 : index
    %c0_27 = arith.constant 0 : index
    %c0_28 = arith.constant 0 : index
    %53 = vector.load %arg4[%c7, %c0_27, %c0_28] : memref<9x4x32xbf16, #tpu.memory_space<vmem>>, vector<1x4x32xbf16>
    %54 = vector.shape_cast %53 : vector<1x4x32xbf16> to vector<4x32xbf16>
    %cst_29 = arith.constant dense<0.000000e+00> : vector<256x32xf32>
    %55 = tpu.matmul %52, %54, %cst_29 {dimension_numbers = #tpu.dot_dimension_numbers<[1], [0], [0], [1], [0, 0, 1, 1], [], []>} : vector<256x4xbf16>, vector<4x32xbf16>, vector<256x32xf32> -> vector<256x32xf32>
    %56 = arith.addf %50, %55 : vector<256x32xf32>
    %57 = vector.extract_strided_slice %44 {offsets = [0, 2, 0], sizes = [16, 16, 4], strides = [1, 1, 1]} : vector<16x18x4xbf16> to vector<16x16x4xbf16>
    %58 = vector.shape_cast %57 : vector<16x16x4xbf16> to vector<256x4xbf16>
    %c8 = arith.constant 8 : index
    %c0_30 = arith.constant 0 : index
    %c0_31 = arith.constant 0 : index
    %59 = vector.load %arg4[%c8, %c0_30, %c0_31] : memref<9x4x32xbf16, #tpu.memory_space<vmem>>, vector<1x4x32xbf16>
    %60 = vector.shape_cast %59 : vector<1x4x32xbf16> to vector<4x32xbf16>
    %cst_32 = arith.constant dense<0.000000e+00> : vector<256x32xf32>
    %61 = tpu.matmul %58, %60, %cst_32 {dimension_numbers = #tpu.dot_dimension_numbers<[1], [0], [0], [1], [0, 0, 1, 1], [], []>} : vector<256x4xbf16>, vector<4x32xbf16>, vector<256x32xf32> -> vector<256x32xf32>
    %62 = arith.addf %56, %61 : vector<256x32xf32>
    %c0_i32_33 = arith.constant 0 : i32
    %63 = arith.cmpi slt, %arg2, %c0_i32_33 : i32
    %64 = arith.extui %63 : i1 to i32
    %c0_i32_34 = arith.constant 0 : i32
    %65 = arith.cmpi ne, %64, %c0_i32_34 : i32
    scf.if %65 {
      %c0_37 = arith.constant 0 : index
      %c0_38 = arith.constant 0 : index
      %69 = vector.load %arg7[%c0_37, %c0_38] : memref<256x32xf32, #tpu.memory_space<vmem>>, vector<256x32xf32>
      tpu.vector_store %arg7[%c0_37, %c0_38], %62 {strides = array<i32>} : memref<256x32xf32, #tpu.memory_space<vmem>>, vector<256x32xf32>,
    } else {
    }
    %c0_i32_35 = arith.constant 0 : i32
    %66 = arith.cmpi eq, %arg2, %c0_i32_35 : i32
    %67 = arith.extui %66 : i1 to i32
    %c0_i32_36 = arith.constant 0 : i32
    %68 = arith.cmpi ne, %67, %c0_i32_36 : i32
    scf.if %68 {
      %c0_37 = arith.constant 0 : index
      %c0_38 = arith.constant 0 : index
      %69 = vector.load %arg5[%c0_37, %c0_38] : memref<1x32xf32, #tpu.memory_space<vmem>>, vector<1x32xf32>
      %70 = vector.broadcast %69 : vector<1x32xf32> to vector<256x32xf32>
      %71 = arith.addf %62, %70 : vector<256x32xf32>
      %72 = vector.shape_cast %71 : vector<256x32xf32> to vector<16x16x32xf32>
      %c0_39 = arith.constant 0 : index
      %c0_40 = arith.constant 0 : index
      %c0_41 = arith.constant 0 : index
      %c0_42 = arith.constant 0 : index
      %73 = vector.load %arg6[%c0_39, %c0_40, %c0_41, %c0_42] : memref<1x16x16x32xf32, #tpu.memory_space<vmem>>, vector<1x16x16x32xf32>
      %74 = vector.shape_cast %73 : vector<1x16x16x32xf32> to vector<16x16x32xf32>
      %75 = vector.shape_cast %72 : vector<16x16x32xf32> to vector<1x16x16x32xf32>
      tpu.vector_store %arg6[%c0_39, %c0_40, %c0_41, %c0_42], %75 {strides = array<i32>} : memref<1x16x16x32xf32, #tpu.memory_space<vmem>>, vector<1x16x16x32xf32>,
    } else {
    }
    return
  }
  func.func @transform_0(%arg0: i32, %arg1: i32, %arg2: i32) -> (i32, i32, i32, i32) {
    %c0_i32 = arith.constant 0 : i32
    %c0_i32_0 = arith.constant 0 : i32
    %c0_i32_1 = arith.constant 0 : i32
    return %arg0, %c0_i32, %c0_i32_0, %arg2 : i32, i32, i32, i32
  }
  func.func @transform_1(%arg0: i32, %arg1: i32, %arg2: i32) -> (i32, i32, i32) {
    %c0_i32 = arith.constant 0 : i32
    %c0_i32_0 = arith.constant 0 : i32
    return %c0_i32, %arg2, %arg1 : i32, i32, i32
  }
  func.func @transform_2(%arg0: i32, %arg1: i32, %arg2: i32) -> (i32, i32) {
    %c0_i32 = arith.constant 0 : i32
    %c0_i32_0 = arith.constant 0 : i32
    return %c0_i32, %arg1 : i32, i32
  }
  func.func @transform_3(%arg0: i32, %arg1: i32, %arg2: i32) -> (i32, i32, i32, i32) {
    %c0_i32 = arith.constant 0 : i32
    %c0_i32_0 = arith.constant 0 : i32
    %c0_i32_1 = arith.constant 0 : i32
    return %arg0, %c0_i32, %c0_i32_0, %arg1 : i32, i32, i32, i32
  }
}

</mosaic_0001>

<llo_original>
// kernel: tpu_custom_call.1
$region0: #{tpu_custom_call.1}
  #allocation0 [shape = 'u32[]', space=smem, size = 0x4, offset = 0x4, fixed_abs, tag = 'smem constant byte address 0x4 - core index']
  #allocation1 [shape = 'u32[144,128]{1,0:T(1,128)}', space=vmem, size = 0x12000, scoped, tag = 'internal scratch']
  #allocation2 [shape = 'f32[256,32]{1,0:T(8,128)}', space=vmem, size = 0x20000, scoped, tag = 'scratch operand']
  %s0 = inlined_call_operand.hbm [shape: bf16[2,18,18,4], index: 0, kind: input, shape index: {}]
  %s1 = inlined_call_operand.hbm [shape: bf16[9,4,32], index: 1, kind: input, shape index: {}]
  %s2 = inlined_call_operand.hbm [shape: f32[1,32], index: 2, kind: input, shape index: {}]
  %s3 = inlined_call_operand.hbm [shape: f32[2,16,16,32], index: 3, kind: output, shape index: {}]
  %s4 = sld [smem:[#allocation0]]
  $region69: #{tpu_custom_call.1} parent=0
    _
  %s6 = ssub.s32 1, %s4
  %s7 = scalar_select 0, %s6, %s4
  $region1: #{tpu_custom_call.1} parent=0
    #allocation3 [shape = 'u8[221184]{0}', space=vmem, size = 0x36000, scoped, tag = 'input window, operand 0']
    #allocation4 [shape = 's32[2]{0}', space=sflag, size = 0x8, scoped, tag = 'scoped memory for tpu_custom_call.1']
    #allocation5 [shape = 's32[2]{0}', space=sflag, size = 0x8, scoped, tag = 'scoped memory for tpu_custom_call.1']
    #allocation6 [shape = 'u8[9216]{0}', space=vmem, size = 0x2400, scoped, tag = 'input window, operand 1, single buffered']
    #allocation7 [shape = 's32[1]{0}', space=sflag, size = 0x4, scoped, tag = 'scoped memory for tpu_custom_call.1']
    #allocation8 [shape = 'u8[512]{0}', space=vmem, size = 0x400, scoped, tag = 'input window, operand 2, single buffered']
    #allocation9 [shape = 'u8[262144]{0}', space=vmem, size = 0x40000, scoped, tag = 'output window, operand 0']
    %8 = vsyncpa [#allocation4], 0
    %s9 = scalar_lea.sflag [#allocation4], 1
    %10 = vsyncpa %s9, 0
    %11 = vsyncpa [#allocation7], 0
    %12 = vsyncpa [#allocation5], 0
    %s13 = scalar_lea.sflag [#allocation5], 1
    %14 = vsyncpa %s13, 0
    loop: start=0, step=1, limit=4
    $region2: #{tpu_custom_call.1} parent=1 // loop_pre_header
      _
    $region3: #{tpu_custom_call.1} parent=1 // loop_header
      %s16 = sphi 0, %s20
      %p17 = scmp.ge.s32.totalorder %s16, 4
      %s23 = sphi 0, %s42
      %s24 = sphi 0, %s38
      %s25 = sphi 0, %s34
      %s26 = sphi 0, %s23
      %s27 = sphi 0, %s24
      %s28 = sphi 0, %s25
      %s29 = sphi 0, %s26
      %s30 = sphi 0, %s27
      %s31 = sphi 0, %s28
      %s47 = sphi 0, %s49
      %s50 = sphi 0, %s47
      %s51 = sphi 0, %s50
      %s67 = sphi 0, %s51
      %s75 = sphi 0, %s77
      %s78 = sphi 0, %s75
      %s79 = sphi 0, %s78
      %s95 = sphi 0, %s79
      %s101 = sphi 0, %s103
      %s104 = sphi 0, %s101
      %s105 = sphi 0, %s104
      %s121 = sphi 0, %s105
      %s129 = sphi 0, %s131
      %s132 = sphi 0, %s129
      %s133 = sphi 0, %s132
      %s149 = sphi 0, %s133
    $region4: #{tpu_custom_call.1} parent=1 // loop_header_branch
      %19 = sbr.rel (%p17) target = $region8
    $region5: #{tpu_custom_call.1} parent=1 // loop_body
      %s21 = ssub.s32 %s16, 1
      %s22 = ssub.s32 %s16, 2
      %s32 = sadd.s32 1, %s25
      %p33 = scmp.ge.s32.totalorder %s32, 1
      %s34 = scalar_select %p33, 0, %s32
      %s35 = sadd.s32 1, %s24
      %s36 = scalar_select %p33, %s35, %s24
      %p37 = scmp.ge.s32.totalorder %s36, 1
      %s38 = scalar_select %p37, 0, %s36
      %s39 = sadd.s32 1, %s23
      %s40 = scalar_select %p37, %s39, %s23
      %p41 = scmp.ge.s32.totalorder %s40, 2
      %s42 = scalar_select %p41, 0, %s40
      %s43 = ssub.s32 %s23, %s42
      %s44 = ssub.s32 %s25, %s34
      %s45 = sor.u32 %s43, %s44
      %p46 = scmp.eq.s32.totalorder %s45, 0
      %s48 = sadd.s32 %s47, 1
      %s49 = scalar_select %p46, %s47, %s48
      %p52 = pneg %p46
      %p53 = scmp.eq.s32.totalorder %s16, 1
      %p54 = por %p52, %p53
      %p55 = scmp.ne.s32.totalorder %s47, %s50
      %p56 = scmp.eq.s32.totalorder %s16, 0
      %p57 = por %p55, %p56
      %p58 = scmp.ne.s32.totalorder %s47, %s50
      %p59 = scmp.eq.s32.totalorder %s21, 1
      %p60 = por %p58, %p59
      %p61 = scmp.ne.s32.totalorder %s50, %s51
      %p62 = scmp.eq.s32.totalorder %s21, 0
      %p63 = por %p61, %p62
      %p64 = scmp.ne.s32.totalorder %s50, %s51
      %p65 = scmp.eq.s32.totalorder %s22, 1
      %p66 = por %p64, %p65
      %p68 = scmp.ne.s32.totalorder %s51, %s67
      %p69 = scmp.eq.s32.totalorder %s22, 0
      %p70 = por %p68, %p69
      %s71 = ssub.s32 %s25, %s34
      %s72 = ssub.s32 %s24, %s38
      %s73 = sor.u32 %s71, %s72
      %p74 = scmp.eq.s32.totalorder %s73, 0
      %s76 = sadd.s32 %s75, 1
      %s77 = scalar_select %p74, %s75, %s76
      %p80 = pneg %p74
      %p81 = scmp.eq.s32.totalorder %s16, 1
      %p82 = por %p80, %p81
      %p83 = scmp.ne.s32.totalorder %s75, %s78
      %p84 = scmp.eq.s32.totalorder %s16, 0
      %p85 = por %p83, %p84
      %p86 = scmp.ne.s32.totalorder %s75, %s78
      %p87 = scmp.eq.s32.totalorder %s21, 1
      %p88 = por %p86, %p87
      %p89 = scmp.ne.s32.totalorder %s78, %s79
      %p90 = scmp.eq.s32.totalorder %s21, 0
      %p91 = por %p89, %p90
      %p92 = scmp.ne.s32.totalorder %s78, %s79
      %p93 = scmp.eq.s32.totalorder %s22, 1
      %p94 = por %p92, %p93
      %p96 = scmp.ne.s32.totalorder %s79, %s95
      %p97 = scmp.eq.s32.totalorder %s22, 0
      %p98 = por %p96, %p97
      %s99 = ssub.s32 %s24, %s38
      %p100 = scmp.eq.s32.totalorder %s99, 0
      %s102 = sadd.s32 %s101, 1
      %s103 = scalar_select %p100, %s101, %s102
      %p106 = pneg %p100
      %p107 = scmp.eq.s32.totalorder %s16, 1
      %p108 = por %p106, %p107
      %p109 = scmp.ne.s32.totalorder %s101, %s104
      %p110 = scmp.eq.s32.totalorder %s16, 0
      %p111 = por %p109, %p110
      %p112 = scmp.ne.s32.totalorder %s101, %s104
      %p113 = scmp.eq.s32.totalorder %s21, 1
      %p114 = por %p112, %p113
      %p115 = scmp.ne.s32.totalorder %s104, %s105
      %p116 = scmp.eq.s32.totalorder %s21, 0
      %p117 = por %p115, %p116
      %p118 = scmp.ne.s32.totalorder %s104, %s105
      %p119 = scmp.eq.s32.totalorder %s22, 1
      %p120 = por %p118, %p119
      %p122 = scmp.ne.s32.totalorder %s105, %s121
      %p123 = scmp.eq.s32.totalorder %s22, 0
      %p124 = por %p122, %p123
      %s125 = ssub.s32 %s23, %s42
      %s126 = ssub.s32 %s24, %s38
      %s127 = sor.u32 %s125, %s126
      %p128 = scmp.eq.s32.totalorder %s127, 0
      %s130 = sadd.s32 %s129, 1
      %s131 = scalar_select %p128, %s129, %s130
      %p134 = pneg %p128
      %p135 = scmp.eq.s32.totalorder %s16, 1
      %p136 = por %p134, %p135
      %p137 = scmp.ne.s32.totalorder %s129, %s132
      %p138 = scmp.eq.s32.totalorder %s16, 0
      %p139 = por %p137, %p138
      %p140 = scmp.ne.s32.totalorder %s129, %s132
      %p141 = scmp.eq.s32.totalorder %s21, 1
      %p142 = por %p140, %p141
      %p143 = scmp.ne.s32.totalorder %s132, %s133
      %p144 = scmp.eq.s32.totalorder %s21, 0
      %p145 = por %p143, %p144
      %p146 = scmp.ne.s32.totalorder %s132, %s133
      %p147 = scmp.eq.s32.totalorder %s22, 1
      %p148 = por %p146, %p147
      %p150 = scmp.ne.s32.totalorder %s133, %s149
      %p151 = scmp.eq.s32.totalorder %s22, 0
      %p152 = por %p150, %p151
      %p153 = scmp.le.s32.totalorder 1, %s16
      %p154 = scmp.lt.s32.totalorder %s16, 3
      %p155 = pnand %p153, %p154
      %p156 = pneg %p155
      // Predicated region
      $region9: #{tpu_custom_call.1} parent=5 // pred_check
        _
      $region10: #{tpu_custom_call.1} parent=5 // pred_check_branch
        %158 = sbr.rel (%p155) target = $region12
      $region11: #{tpu_custom_call.1} parent=5 // pred_region
        %s159 = ssub.s32 %s16, 1
        // Predicated region
        $region13: #{tpu_custom_call.1} parent=11 // pred_check
          %p160 = pneg %p91
        $region14: #{tpu_custom_call.1} parent=11 // pred_check_branch
          %162 = sbr.rel (%p160) target = $region16
        $region15: #{tpu_custom_call.1} parent=11 // pred_region
          %s164 = ssub.s32 288, 288
          %165 = vsyncadd [#allocation7], %s164
          %s166 = sadd.s32 %s27, %s28
          %s167 = smul.addr %s166, 32
          %s168 = scalar_lea.hbm %s1, %s167
          %s169 = sshll.u32 [#allocation6], 4
          %s170 = int_to_ptr.vmem [resolvable:$true] %s169
          %175 = dma.hbm_to_vmem [thread:$0]  %s168, 288, %s170, [#allocation7], 32, 32, 2
        $region16: #{tpu_custom_call.1} parent=11 // pred_fallthru
          _
        // Predicated region
        $region17: #{tpu_custom_call.1} parent=11 // pred_check
          %p176 = pneg %p117
        $region18: #{tpu_custom_call.1} parent=11 // pred_check_branch
          %178 = sbr.rel (%p176) target = $region20
        $region19: #{tpu_custom_call.1} parent=11 // pred_region
          %s180 = ssub.s32 16, 16
          %181 = vsyncadd [#allocation7], %s180
          %s182 = smul.addr %s27, 16
          %s183 = scalar_lea.hbm %s2, %s182
          %s185 = sshll.u32 [#allocation8], 4
          %s186 = int_to_ptr.vmem [resolvable:$true] %s185
          %188 = dma.hbm_to_vmem [thread:$0]  %s183, 16, %s186, [#allocation7]
        $region20: #{tpu_custom_call.1} parent=11 // pred_fallthru
          _
      $region12: #{tpu_custom_call.1} parent=5 // pred_fallthru
        _
      %p189 = scmp.lt.s32.totalorder %s16, 2
      // Predicated region
      $region21: #{tpu_custom_call.1} parent=5 // pred_check
        %p190 = pneg %p189
      $region22: #{tpu_custom_call.1} parent=5 // pred_check_branch
        %192 = sbr.rel (%p190) target = $region24
      $region23: #{tpu_custom_call.1} parent=5 // pred_region
        // Predicated region
        $region25: #{tpu_custom_call.1} parent=23 // pred_check
          %p193 = pneg %p57
        $region26: #{tpu_custom_call.1} parent=23 // pred_check_branch
          %195 = sbr.rel (%p193) target = $region28
        $region27: #{tpu_custom_call.1} parent=23 // pred_region
          %s196 = sand.u32 %s47, 1
          %s197 = scalar_lea.sflag [#allocation4], %s196
          %s198 = sand.u32 %s47, 1
          %s199 = smul.addr %s198, 216
          %s200 = scalar_lea.vmem [#allocation3], %s199
          %s202 = ssub.s32 3456, 3456
          %203 = vsyncadd %s197, %s202
          %s204 = smul.addr %s23, 54
          %s205 = sadd.s32 %s25, %s204
          %s206 = smul.addr %s205, 64
          %s207 = scalar_lea.hbm %s0, %s206
          %s208 = sshll.u32 %s200, 4
          %s209 = int_to_ptr.vmem [resolvable:$true] %s208
          %214 = dma.hbm_to_vmem [thread:$0]  %s207, 3456, %s209, %s197, 64, 64, 4
        $region28: #{tpu_custom_call.1} parent=23 // pred_fallthru
          _
      $region24: #{tpu_custom_call.1} parent=5 // pred_fallthru
        _
      %p215 = scmp.le.s32.totalorder 1, %s16
      %p216 = scmp.lt.s32.totalorder %s16, 3
      %p217 = pnand %p215, %p216
      %p218 = pneg %p217
      // Predicated region
      $region29: #{tpu_custom_call.1} parent=5 // pred_check
        _
      $region30: #{tpu_custom_call.1} parent=5 // pred_check_branch
        %220 = sbr.rel (%p217) target = $region32
      $region31: #{tpu_custom_call.1} parent=5 // pred_region
        %s221 = ssub.s32 %s16, 1
        %s222 = sand.u32 %s50, 1
        %s223 = scalar_lea.sflag [#allocation4], %s222
        %s224 = sand.u32 %s50, 1
        %s225 = smul.addr %s224, 216
        %s226 = scalar_lea.vmem [#allocation3], %s225
        // Predicated region
        $region33: #{tpu_custom_call.1} parent=31 // pred_check
          %p227 = pneg %p63
        $region34: #{tpu_custom_call.1} parent=31 // pred_check_branch
          %229 = sbr.rel (%p227) target = $region36
        $region35: #{tpu_custom_call.1} parent=31 // pred_region
          %230 = dma.done %s223, 3456
        $region36: #{tpu_custom_call.1} parent=31 // pred_fallthru
          _
        // Predicated region
        $region37: #{tpu_custom_call.1} parent=31 // pred_check
          %p231 = pneg %p91
        $region38: #{tpu_custom_call.1} parent=31 // pred_check_branch
          %233 = sbr.rel (%p231) target = $region40
        $region39: #{tpu_custom_call.1} parent=31 // pred_region
          %234 = dma.done [#allocation7], 288
        $region40: #{tpu_custom_call.1} parent=31 // pred_fallthru
          _
        // Predicated region
        $region41: #{tpu_custom_call.1} parent=31 // pred_check
          %p235 = pneg %p117
        $region42: #{tpu_custom_call.1} parent=31 // pred_check_branch
          %237 = sbr.rel (%p235) target = $region44
        $region43: #{tpu_custom_call.1} parent=31 // pred_region
          %238 = dma.done [#allocation7], 16
        $region44: #{tpu_custom_call.1} parent=31 // pred_fallthru
          _
        %s239 = sand.u32 %s50, 1
        %s240 = scalar_lea.sflag [#allocation4], %s239
        %s241 = sand.u32 %s50, 1
        %s242 = smul.addr %s241, 216
        %s243 = scalar_lea.vmem [#allocation3], %s242
        %p244 = pneg %p63
        %p245 = pneg %p60
        %p246 = pneg %p91
        %p247 = pneg %p88
        %p248 = pneg %p117
        %p249 = pneg %p114
        %p250 = pneg %p145
        %p251 = pneg %p142
        %s252 = sand.u32 %s132, 1
        %s253 = scalar_lea.sflag [#allocation5], %s252
        %s254 = sand.u32 %s132, 1
        %s255 = smul.addr %s254, 256
        %s256 = scalar_lea.vmem [#allocation9], %s255
        %p258 = scmp.eq.s32.totalorder %s28, 0
        // Predicated region
        $region45: #{tpu_custom_call.1} parent=31 // pred_check
          %p259 = pneg %p258
        $region46: #{tpu_custom_call.1} parent=31 // pred_check_branch
          %261 = sbr.rel (%p259) target = $region48
        $region47: #{tpu_custom_call.1} parent=31 // pred_region
          %vm262 = vcmask 261120
          %263 = vst.msk [vmem:[#allocation2] sm:$0xff] %vm262, 0.0
          %264 = vst.msk [vmem:[#allocation2 + $0x8] sm:$0xff] %vm262, 0.0
          %265 = vst.msk [vmem:[#allocation2 + $0x10] sm:$0xff] %vm262, 0.0
          %266 = vst.msk [vmem:[#allocation2 + $0x18] sm:$0xff] %vm262, 0.0
          %267 = vst.msk [vmem:[#allocation2 + $0x20] sm:$0xff] %vm262, 0.0
          %268 = vst.msk [vmem:[#allocation2 + $0x28] sm:$0xff] %vm262, 0.0
          %269 = vst.msk [vmem:[#allocation2 + $0x30] sm:$0xff] %vm262, 0.0
          %270 = vst.msk [vmem:[#allocation2 + $0x38] sm:$0xff] %vm262, 0.0
          %271 = vst.msk [vmem:[#allocation2 + $0x40] sm:$0xff] %vm262, 0.0
          %272 = vst.msk [vmem:[#allocation2 + $0x48] sm:$0xff] %vm262, 0.0
          %273 = vst.msk [vmem:[#allocation2 + $0x50] sm:$0xff] %vm262, 0.0
          %274 = vst.msk [vmem:[#allocation2 + $0x58] sm:$0xff] %vm262, 0.0
          %275 = vst.msk [vmem:[#allocation2 + $0x60] sm:$0xff] %vm262, 0.0
          %276 = vst.msk [vmem:[#allocation2 + $0x68] sm:$0xff] %vm262, 0.0
          %277 = vst.msk [vmem:[#allocation2 + $0x70] sm:$0xff] %vm262, 0.0
          %278 = vst.msk [vmem:[#allocation2 + $0x78] sm:$0xff] %vm262, 0.0
          %279 = vst.msk [vmem:[#allocation2 + $0x80] sm:$0xff] %vm262, 0.0
          %280 = vst.msk [vmem:[#allocation2 + $0x88] sm:$0xff] %vm262, 0.0
          %281 = vst.msk [vmem:[#allocation2 + $0x90] sm:$0xff] %vm262, 0.0
          %282 = vst.msk [vmem:[#allocation2 + $0x98] sm:$0xff] %vm262, 0.0
          %283 = vst.msk [vmem:[#allocation2 + $0xa0] sm:$0xff] %vm262, 0.0
          %284 = vst.msk [vmem:[#allocation2 + $0xa8] sm:$0xff] %vm262, 0.0
          %285 = vst.msk [vmem:[#allocation2 + $0xb0] sm:$0xff] %vm262, 0.0
          %286 = vst.msk [vmem:[#allocation2 + $0xb8] sm:$0xff] %vm262, 0.0
          %287 = vst.msk [vmem:[#allocation2 + $0xc0] sm:$0xff] %vm262, 0.0
          %288 = vst.msk [vmem:[#allocation2 + $0xc8] sm:$0xff] %vm262, 0.0
          %289 = vst.msk [vmem:[#allocation2 + $0xd0] sm:$0xff] %vm262, 0.0
          %290 = vst.msk [vmem:[#allocation2 + $0xd8] sm:$0xff] %vm262, 0.0
          %291 = vst.msk [vmem:[#allocation2 + $0xe0] sm:$0xff] %vm262, 0.0
          %292 = vst.msk [vmem:[#allocation2 + $0xe8] sm:$0xff] %vm262, 0.0
          %293 = vst.msk [vmem:[#allocation2 + $0xf0] sm:$0xff] %vm262, 0.0
          %294 = vst.msk [vmem:[#allocation2 + $0xf8] sm:$0xff] %vm262, 0.0
        $region48: #{tpu_custom_call.1} parent=31 // pred_fallthru
          _
        %v295 = vld [vmem:[%s226] sm:$0xf]
        %v296 = vld [vmem:[%s226 + $0x4] sm:$0xf]
        %v297 = vld [vmem:[%s226 + $0x8] sm:$0x1]
        %v298 = vld [vmem:[%s226 + $0xc] sm:$0xf]
        %v299 = vld [vmem:[%s226 + $0x10] sm:$0xf]
        %v300 = vld [vmem:[%s226 + $0x14] sm:$0x1]
        %v301 = vld [vmem:[%s226 + $0x18] sm:$0xf]
        %v302 = vld [vmem:[%s226 + $0x1c] sm:$0xf]
        %v303 = vld [vmem:[%s226 + $0x20] sm:$0x1]
        %v304 = vld [vmem:[%s226 + $0x24] sm:$0xf]
        %v305 = vld [vmem:[%s226 + $0x28] sm:$0xf]
        %v306 = vld [vmem:[%s226 + $0x2c] sm:$0x1]
        %v307 = vld [vmem:[%s226 + $0x30] sm:$0xf]
        %v308 = vld [vmem:[%s226 + $0x34] sm:$0xf]
        %v309 = vld [vmem:[%s226 + $0x38] sm:$0x1]
        %v310 = vld [vmem:[%s226 + $0x3c] sm:$0xf]
        %v311 = vld [vmem:[%s226 + $0x40] sm:$0xf]
        %v312 = vld [vmem:[%s226 + $0x44] sm:$0x1]
        %v313 = vld [vmem:[%s226 + $0x48] sm:$0xf]
        %v314 = vld [vmem:[%s226 + $0x4c] sm:$0xf]
        %v315 = vld [vmem:[%s226 + $0x50] sm:$0x1]
        %v316 = vld [vmem:[%s226 + $0x54] sm:$0xf]
        %v317 = vld [vmem:[%s226 + $0x58] sm:$0xf]
        %v318 = vld [vmem:[%s226 + $0x5c] sm:$0x1]
        %v319 = vld [vmem:[%s226 + $0x60] sm:$0xf]
        %v320 = vld [vmem:[%s226 + $0x64] sm:$0xf]
        %v321 = vld [vmem:[%s226 + $0x68] sm:$0x1]
        %v322 = vld [vmem:[%s226 + $0x6c] sm:$0xf]
        %v323 = vld [vmem:[%s226 + $0x70] sm:$0xf]
        %v324 = vld [vmem:[%s226 + $0x74] sm:$0x1]
        %v325 = vld [vmem:[%s226 + $0x78] sm:$0xf]
        %v326 = vld [vmem:[%s226 + $0x7c] sm:$0xf]
        %v327 = vld [vmem:[%s226 + $0x80] sm:$0x1]
        %v328 = vld [vmem:[%s226 + $0x84] sm:$0xf]
        %v329 = vld [vmem:[%s226 + $0x88] sm:$0xf]
        %v330 = vld [vmem:[%s226 + $0x8c] sm:$0x1]
        %v331 = vld [vmem:[%s226 + $0x90] sm:$0xf]
        %v332 = vld [vmem:[%s226 + $0x94] sm:$0xf]
        %v333 = vld [vmem:[%s226 + $0x98] sm:$0x1]
        %v334 = vld [vmem:[%s226 + $0x9c] sm:$0xf]
        %v335 = vld [vmem:[%s226 + $0xa0] sm:$0xf]
        %v336 = vld [vmem:[%s226 + $0xa4] sm:$0x1]
        %v337 = vld [vmem:[%s226 + $0xa8] sm:$0xf]
        %v338 = vld [vmem:[%s226 + $0xac] sm:$0xf]
        %v339 = vld [vmem:[%s226 + $0xb0] sm:$0x1]
        %v340 = vld [vmem:[%s226 + $0xb4] sm:$0xf]
        %v341 = vld [vmem:[%s226 + $0xb8] sm:$0xf]
        %v342 = vld [vmem:[%s226 + $0xbc] sm:$0x1]
        %v343 = vld [vmem:[%s226 + $0xc0] sm:$0xf]
        %v344 = vld [vmem:[%s226 + $0xc4] sm:$0xf]
        %v345 = vld [vmem:[%s226 + $0xc8] sm:$0x1]
        %v346 = vld [vmem:[%s226 + $0xcc] sm:$0xf]
        %v347 = vld [vmem:[%s226 + $0xd0] sm:$0xf]
        %v348 = vld [vmem:[%s226 + $0xd4] sm:$0x1]
        %v349 = vld [vmem:[#allocation2] sm:$0xff]
        %v350 = vld [vmem:[#allocation2 + $0x8] sm:$0xff]
        %v351 = vld [vmem:[#allocation2 + $0x10] sm:$0xff]
        %v352 = vld [vmem:[#allocation2 + $0x18] sm:$0xff]
        %v353 = vld [vmem:[#allocation2 + $0x20] sm:$0xff]
        %v354 = vld [vmem:[#allocation2 + $0x28] sm:$0xff]
        %v355 = vld [vmem:[#allocation2 + $0x30] sm:$0xff]
        %v356 = vld [vmem:[#allocation2 + $0x38] sm:$0xff]
        %v357 = vld [vmem:[#allocation2 + $0x40] sm:$0xff]
        %v358 = vld [vmem:[#allocation2 + $0x48] sm:$0xff]
        %v359 = vld [vmem:[#allocation2 + $0x50] sm:$0xff]
        %v360 = vld [vmem:[#allocation2 + $0x58] sm:$0xff]
        %v361 = vld [vmem:[#allocation2 + $0x60] sm:$0xff]
        %v362 = vld [vmem:[#allocation2 + $0x68] sm:$0xff]
        %v363 = vld [vmem:[#allocation2 + $0x70] sm:$0xff]
        %v364 = vld [vmem:[#allocation2 + $0x78] sm:$0xff]
        %v365 = vld [vmem:[#allocation2 + $0x80] sm:$0xff]
        %v366 = vld [vmem:[#allocation2 + $0x88] sm:$0xff]
        %v367 = vld [vmem:[#allocation2 + $0x90] sm:$0xff]
        %v368 = vld [vmem:[#allocation2 + $0x98] sm:$0xff]
        %v369 = vld [vmem:[#allocation2 + $0xa0] sm:$0xff]
        %v370 = vld [vmem:[#allocation2 + $0xa8] sm:$0xff]
        %v371 = vld [vmem:[#allocation2 + $0xb0] sm:$0xff]
        %v372 = vld [vmem:[#allocation2 + $0xb8] sm:$0xff]
        %v373 = vld [vmem:[#allocation2 + $0xc0] sm:$0xff]
        %v374 = vld [vmem:[#allocation2 + $0xc8] sm:$0xff]
        %v375 = vld [vmem:[#allocation2 + $0xd0] sm:$0xff]
        %v376 = vld [vmem:[#allocation2 + $0xd8] sm:$0xff]
        %v377 = vld [vmem:[#allocation2 + $0xe0] sm:$0xff]
        %v378 = vld [vmem:[#allocation2 + $0xe8] sm:$0xff]
        %v379 = vld [vmem:[#allocation2 + $0xf0] sm:$0xff]
        %v380 = vld [vmem:[#allocation2 + $0xf8] sm:$0xff]
        %v381 = vld [vmem:[#allocation6] sm:$0x3]
        %v414 = vunpack.c.l.b16 %v295
        %v415 = vunpack.c.l.b16 %v296
        %v416 = vunpack.c.l.b16 %v298
        %v417 = vunpack.c.l.b16 %v299
        %v418 = vunpack.c.l.b16 %v301
        %v419 = vunpack.c.l.b16 %v302
        %v420 = vunpack.c.l.b16 %v304
        %v421 = vunpack.c.l.b16 %v305
        %v422 = vunpack.c.l.b16 %v307
        %v423 = vunpack.c.l.b16 %v308
        %v424 = vunpack.c.l.b16 %v310
        %v425 = vunpack.c.l.b16 %v311
        %v426 = vunpack.c.l.b16 %v313
        %v427 = vunpack.c.l.b16 %v314
        %v428 = vunpack.c.l.b16 %v316
        %v429 = vunpack.c.l.b16 %v317
        %v430 = vunpack.c.l.b16 %v319
        %v431 = vunpack.c.l.b16 %v320
        %v432 = vunpack.c.l.b16 %v322
        %v433 = vunpack.c.l.b16 %v323
        %v434 = vunpack.c.l.b16 %v325
        %v435 = vunpack.c.l.b16 %v326
        %v436 = vunpack.c.l.b16 %v328
        %v437 = vunpack.c.l.b16 %v329
        %v438 = vunpack.c.l.b16 %v331
        %v439 = vunpack.c.l.b16 %v332
        %v440 = vunpack.c.l.b16 %v334
        %v441 = vunpack.c.l.b16 %v335
        %v442 = vunpack.c.l.b16 %v337
        %v443 = vunpack.c.l.b16 %v338
        %v444 = vunpack.c.l.b16 %v340
        %v445 = vunpack.c.l.b16 %v341
        %v446 = vpack.c.b16 %v415, %v414
        %v447 = vpack.c.b16 %v417, %v416
        %v448 = vpack.c.b16 %v419, %v418
        %v449 = vpack.c.b16 %v421, %v420
        %v450 = vpack.c.b16 %v423, %v422
        %v451 = vpack.c.b16 %v425, %v424
        %v452 = vpack.c.b16 %v427, %v426
        %v453 = vpack.c.b16 %v429, %v428
        %v454 = vpack.c.b16 %v431, %v430
        %v455 = vpack.c.b16 %v433, %v432
        %v456 = vpack.c.b16 %v435, %v434
        %v457 = vpack.c.b16 %v437, %v436
        %v458 = vpack.c.b16 %v439, %v438
        %v459 = vpack.c.b16 %v441, %v440
        %v460 = vpack.c.b16 %v443, %v442
        %v461 = vpack.c.b16 %v445, %v444
        %vm462 = vcmask 31744
        %v464 = vsel %vm462, %v446, 0
        %v467 = vsel %vm462, %v447, 0
        %v470 = vsel %vm462, %v448, 0
        %v473 = vsel %vm462, %v449, 0
        %v476 = vsel %vm462, %v450, 0
        %v479 = vsel %vm462, %v451, 0
        %v482 = vsel %vm462, %v452, 0
        %v485 = vsel %vm462, %v453, 0
        %v488 = vsel %vm462, %v454, 0
        %v491 = vsel %vm462, %v455, 0
        %v494 = vsel %vm462, %v456, 0
        %v497 = vsel %vm462, %v457, 0
        %v500 = vsel %vm462, %v458, 0
        %v503 = vsel %vm462, %v459, 0
        %v506 = vsel %vm462, %v460, 0
        %v509 = vsel %vm462, %v461, 0
        %vm511 = vcmask 1041408
        %v513 = vsel %vm511, %v381, 0
        %515 = vmatprep.subr.bf16.mxu0 0
        %516 = vmatpush1.bf16.msra.mxu0 %v513
        %517 = vmatprep.subr.bf16.mxu0 0
        %518 = vmatpush1.bf16.msra.mxu0 0
        %519 = vmatprep.subr.bf16.mxu0 0
        %520 = vmatpush1.bf16.msra.mxu0 0
        %521 = vmatprep.subr.bf16.mxu0 0
        %522 = vmatpush1.bf16.msra.mxu0 0
        %523 = vmatprep.subr.bf16.mxu0 0
        %524 = vmatpush1.bf16.msra.mxu0 0
        %525 = vmatprep.subr.bf16.mxu0 0
        %526 = vmatpush1.bf16.msra.mxu0 0
        %527 = vmatprep.subr.bf16.mxu0 0
        %528 = vmatpush1.bf16.msra.mxu0 0
        %529 = vmatprep.subr.bf16.mxu0 0
        %530 = vmatpush1.bf16.msra.mxu0 0
        %531 = vmatprep.subr.bf16.mxu0 0
        %532 = vmatpush1.bf16.msra.mxu0 0
        %533 = vmatprep.subr.bf16.mxu0 0
        %534 = vmatpush1.bf16.msra.mxu0 0
        %535 = vmatprep.subr.bf16.mxu0 0
        %536 = vmatpush1.bf16.msra.mxu0 0
        %537 = vmatprep.subr.bf16.mxu0 0
        %538 = vmatpush1.bf16.msra.mxu0 0
        %539 = vmatprep.subr.bf16.mxu0 0
        %540 = vmatpush1.bf16.msra.mxu0 0
        %541 = vmatprep.subr.bf16.mxu0 0
        %542 = vmatpush1.bf16.msra.mxu0 0
        %543 = vmatprep.subr.bf16.mxu0 0
        %544 = vmatpush1.bf16.msra.mxu0 0
        %545 = vmatprep.subr.bf16.mxu0 0
        %546 = vmatpush1.bf16.msra.mxu0 0
        %547 = vmatprep.mubr.bf16.mxu0 0
        %548 = vmatmul.mubr.bf16.gmra.mrb[0].mxu0 %v464
        %v549 = vpop.f32.mrb[0].mxu0
        %v550 = vadd.f32 0.0, %v549
        %v551 = vpop.f32.mrb[0].mxu0
        %v552 = vpop.f32.mrb[0].mxu0
        %v553 = vadd.f32 0.0, %v552
        %v554 = vpop.f32.mrb[0].mxu0
        %555 = vmatprep.mubr.bf16.mxu0 0
        %556 = vmatmul.mubr.bf16.gmra.mrb[0].mxu0 %v467
        %v557 = vpop.f32.mrb[0].mxu0
        %v558 = vadd.f32 0.0, %v557
        %v559 = vpop.f32.mrb[0].mxu0
        %v560 = vpop.f32.mrb[0].mxu0
        %v561 = vadd.f32 0.0, %v560
        %v562 = vpop.f32.mrb[0].mxu0
        %563 = vmatprep.mubr.bf16.mxu0 0
        %564 = vmatmul.mubr.bf16.gmra.mrb[0].mxu0 %v470
        %v565 = vpop.f32.mrb[0].mxu0
        %v566 = vadd.f32 0.0, %v565
        %v567 = vpop.f32.mrb[0].mxu0
        %v568 = vpop.f32.mrb[0].mxu0
        %v569 = vadd.f32 0.0, %v568
        %v570 = vpop.f32.mrb[0].mxu0
        %571 = vmatprep.mubr.bf16.mxu0 0
        %572 = vmatmul.mubr.bf16.gmra.mrb[0].mxu0 %v473
        %v573 = vpop.f32.mrb[0].mxu0
        %v574 = vadd.f32 0.0, %v573
        %v575 = vpop.f32.mrb[0].mxu0
        %v576 = vpop.f32.mrb[0].mxu0
        %v577 = vadd.f32 0.0, %v576
        %v578 = vpop.f32.mrb[0].mxu0
        %579 = vmatprep.mubr.bf16.mxu0 0
        %580 = vmatmul.mubr.bf16.gmra.mrb[0].mxu0 %v476
        %v581 = vpop.f32.mrb[0].mxu0
        %v582 = vadd.f32 0.0, %v581
        %v583 = vpop.f32.mrb[0].mxu0
        %v584 = vpop.f32.mrb[0].mxu0
        %v585 = vadd.f32 0.0, %v584
        %v586 = vpop.f32.mrb[0].mxu0
        %587 = vmatprep.mubr.bf16.mxu0 0
        %588 = vmatmul.mubr.bf16.gmra.mrb[0].mxu0 %v479
        %v589 = vpop.f32.mrb[0].mxu0
        %v590 = vadd.f32 0.0, %v589
        %v591 = vpop.f32.mrb[0].mxu0
        %v592 = vpop.f32.mrb[0].mxu0
        %v593 = vadd.f32 0.0, %v592
        %v594 = vpop.f32.mrb[0].mxu0
        %595 = vmatprep.mubr.bf16.mxu0 0
        %596 = vmatmul.mubr.bf16.gmra.mrb[0].mxu0 %v482
        %v597 = vpop.f32.mrb[0].mxu0
        %v598 = vadd.f32 0.0, %v597
        %v599 = vpop.f32.mrb[0].mxu0
        %v600 = vpop.f32.mrb[0].mxu0
        %v601 = vadd.f32 0.0, %v600
        %v602 = vpop.f32.mrb[0].mxu0
        %603 = vmatprep.mubr.bf16.mxu0 0
        %604 = vmatmul.mubr.bf16.gmra.mrb[0].mxu0 %v485
        %v605 = vpop.f32.mrb[0].mxu0
        %v606 = vadd.f32 0.0, %v605
        %v607 = vpop.f32.mrb[0].mxu0
        %v608 = vpop.f32.mrb[0].mxu0
        %v609 = vadd.f32 0.0, %v608
        %v610 = vpop.f32.mrb[0].mxu0
        %611 = vmatprep.mubr.bf16.mxu0 0
        %612 = vmatmul.mubr.bf16.gmra.mrb[0].mxu0 %v488
        %v613 = vpop.f32.mrb[0].mxu0
        %v614 = vadd.f32 0.0, %v613
        %v615 = vpop.f32.mrb[0].mxu0
        %v616 = vpop.f32.mrb[0].mxu0
        %v617 = vadd.f32 0.0, %v616
        %v618 = vpop.f32.mrb[0].mxu0
        %619 = vmatprep.mubr.bf16.mxu0 0
        %620 = vmatmul.mubr.bf16.gmra.mrb[0].mxu0 %v491
        %v621 = vpop.f32.mrb[0].mxu0
        %v622 = vadd.f32 0.0, %v621
        %v623 = vpop.f32.mrb[0].mxu0
        %v624 = vpop.f32.mrb[0].mxu0
        %v625 = vadd.f32 0.0, %v624
        %v626 = vpop.f32.mrb[0].mxu0
        %627 = vmatprep.mubr.bf16.mxu0 0
        %628 = vmatmul.mubr.bf16.gmra.mrb[0].mxu0 %v494
        %v629 = vpop.f32.mrb[0].mxu0
        %v630 = vadd.f32 0.0, %v629
        %v631 = vpop.f32.mrb[0].mxu0
        %v632 = vpop.f32.mrb[0].mxu0
        %v633 = vadd.f32 0.0, %v632
        %v634 = vpop.f32.mrb[0].mxu0
        %635 = vmatprep.mubr.bf16.mxu0 0
        %636 = vmatmul.mubr.bf16.gmra.mrb[0].mxu0 %v497
        %v637 = vpop.f32.mrb[0].mxu0
        %v638 = vadd.f32 0.0, %v637
        %v639 = vpop.f32.mrb[0].mxu0
        %v640 = vpop.f32.mrb[0].mxu0
        %v641 = vadd.f32 0.0, %v640
        %v642 = vpop.f32.mrb[0].mxu0
        %643 = vmatprep.mubr.bf16.mxu0 0
        %644 = vmatmul.mubr.bf16.gmra.mrb[0].mxu0 %v500
        %v645 = vpop.f32.mrb[0].mxu0
        %v646 = vadd.f32 0.0, %v645
        %v647 = vpop.f32.mrb[0].mxu0
        %v648 = vpop.f32.mrb[0].mxu0
        %v649 = vadd.f32 0.0, %v648
        %v650 = vpop.f32.mrb[0].mxu0
        %651 = vmatprep.mubr.bf16.mxu0 0
        %652 = vmatmul.mubr.bf16.gmra.mrb[0].mxu0 %v503
        %v653 = vpop.f32.mrb[0].mxu0
        %v654 = vadd.f32 0.0, %v653
        %v655 = vpop.f32.mrb[0].mxu0
        %v656 = vpop.f32.mrb[0].mxu0
        %v657 = vadd.f32 0.0, %v656
        %v658 = vpop.f32.mrb[0].mxu0
        %659 = vmatprep.mubr.bf16.mxu0 0
        %660 = vmatmul.mubr.bf16.gmra.mrb[0].mxu0 %v506
        %v661 = vpop.f32.mrb[0].mxu0
        %v662 = vadd.f32 0.0, %v661
        %v663 = vpop.f32.mrb[0].mxu0
        %v664 = vpop.f32.mrb[0].mxu0
        %v665 = vadd.f32 0.0, %v664
        %v666 = vpop.f32.mrb[0].mxu0
        %667 = vmatprep.mubr.bf16.mxu0 0
        %668 = vmatmul.mubr.bf16.gmra.mrb[0].mxu0 %v509
        %v669 = vpop.f32.mrb[0].mxu0
        %v670 = vadd.f32 0.0, %v669
        %v671 = vpop.f32.mrb[0].mxu0
        %v672 = vpop.f32.mrb[0].mxu0
        %v673 = vadd.f32 0.0, %v672
        %v674 = vpop.f32.mrb[0].mxu0
        %675 = vdwg.mxu0
        %v676 = vadd.f32 %v349, %v550
        %v677 = vadd.f32 %v350, %v553
        %v678 = vadd.f32 %v351, %v558
        %v679 = vadd.f32 %v352, %v561
        %v680 = vadd.f32 %v353, %v566
        %v681 = vadd.f32 %v354, %v569
        %v682 = vadd.f32 %v355, %v574
        %v683 = vadd.f32 %v356, %v577
        %v684 = vadd.f32 %v357, %v582
        %v685 = vadd.f32 %v358, %v585
        %v686 = vadd.f32 %v359, %v590
        %v687 = vadd.f32 %v360, %v593
        %v688 = vadd.f32 %v361, %v598
        %v689 = vadd.f32 %v362, %v601
        %v690 = vadd.f32 %v363, %v606
        %v691 = vadd.f32 %v364, %v609
        %v692 = vadd.f32 %v365, %v614
        %v693 = vadd.f32 %v366, %v617
        %v694 = vadd.f32 %v367, %v622
        %v695 = vadd.f32 %v368, %v625
        %v696 = vadd.f32 %v369, %v630
        %v697 = vadd.f32 %v370, %v633
        %v698 = vadd.f32 %v371, %v638
        %v699 = vadd.f32 %v372, %v641
        %v700 = vadd.f32 %v373, %v646
        %v701 = vadd.f32 %v374, %v649
        %v702 = vadd.f32 %v375, %v654
        %v703 = vadd.f32 %v376, %v657
        %v704 = vadd.f32 %v377, %v662
        %v705 = vadd.f32 %v378, %v665
        %v706 = vadd.f32 %v379, %v670
        %v707 = vadd.f32 %v380, %v673
        %vm708 = vsmask.f32 3328
        %vm709 = vsmask.f32 7440
        %vm710 = vmor %vm708, %vm709
        %v712 = vshrl.u32 %v295, 16
        %v714 = vrot.slane %v712, 4
        %v715 = vshll.u32 %v295, 16
        %v717 = vrot.slane %v715, 5
        %v718 = vor.u32 %v714, %v717
        %v719 = vrot.slane %v718, 4
        %v721 = vshll.u32 %v296, 16
        %v723 = vrot.slane %v721, 5
        %v724 = vsel %vm710, %v719, %v723
        %v725 = vshrl.u32 %v296, 16
        %v727 = vrot.slane %v725, 4
        %v728 = vor.u32 %v727, %v723
        %v729 = vrot.slane %v728, 4
        %v731 = vshll.u32 %v297, 16
        %v733 = vrot.slane %v731, 5
        %v734 = vsel %vm710, %v729, %v733
        %v736 = vshrl.u32 %v298, 16
        %v738 = vrot.slane %v736, 4
        %v739 = vshll.u32 %v298, 16
        %v741 = vrot.slane %v739, 5
        %v742 = vor.u32 %v738, %v741
        %v743 = vrot.slane %v742, 4
        %v745 = vshll.u32 %v299, 16
        %v747 = vrot.slane %v745, 5
        %v748 = vsel %vm710, %v743, %v747
        %v749 = vshrl.u32 %v299, 16
        %v751 = vrot.slane %v749, 4
        %v752 = vor.u32 %v751, %v747
        %v753 = vrot.slane %v752, 4
        %v755 = vshll.u32 %v300, 16
        %v757 = vrot.slane %v755, 5
        %v758 = vsel %vm710, %v753, %v757
        %v760 = vshrl.u32 %v301, 16
        %v762 = vrot.slane %v760, 4
        %v763 = vshll.u32 %v301, 16
        %v765 = vrot.slane %v763, 5
        %v766 = vor.u32 %v762, %v765
        %v767 = vrot.slane %v766, 4
        %v769 = vshll.u32 %v302, 16
        %v771 = vrot.slane %v769, 5
        %v772 = vsel %vm710, %v767, %v771
        %v773 = vshrl.u32 %v302, 16
        %v775 = vrot.slane %v773, 4
        %v776 = vor.u32 %v775, %v771
        %v777 = vrot.slane %v776, 4
        %v779 = vshll.u32 %v303, 16
        %v781 = vrot.slane %v779, 5
        %v782 = vsel %vm710, %v777, %v781
        %v784 = vshrl.u32 %v304, 16
        %v786 = vrot.slane %v784, 4
        %v787 = vshll.u32 %v304, 16
        %v789 = vrot.slane %v787, 5
        %v790 = vor.u32 %v786, %v789
        %v791 = vrot.slane %v790, 4
        %v793 = vshll.u32 %v305, 16
        %v795 = vrot.slane %v793, 5
        %v796 = vsel %vm710, %v791, %v795
        %v797 = vshrl.u32 %v305, 16
        %v799 = vrot.slane %v797, 4
        %v800 = vor.u32 %v799, %v795
        %v801 = vrot.slane %v800, 4
        %v803 = vshll.u32 %v306, 16
        %v805 = vrot.slane %v803, 5
        %v806 = vsel %vm710, %v801, %v805
        %v808 = vshrl.u32 %v307, 16
        %v810 = vrot.slane %v808, 4
        %v811 = vshll.u32 %v307, 16
        %v813 = vrot.slane %v811, 5
        %v814 = vor.u32 %v810, %v813
        %v815 = vrot.slane %v814, 4
        %v817 = vshll.u32 %v308, 16
        %v819 = vrot.slane %v817, 5
        %v820 = vsel %vm710, %v815, %v819
        %v821 = vshrl.u32 %v308, 16
        %v823 = vrot.slane %v821, 4
        %v824 = vor.u32 %v823, %v819
        %v825 = vrot.slane %v824, 4
        %v827 = vshll.u32 %v309, 16
        %v829 = vrot.slane %v827, 5
        %v830 = vsel %vm710, %v825, %v829
        %v832 = vshrl.u32 %v310, 16
        %v834 = vrot.slane %v832, 4
        %v835 = vshll.u32 %v310, 16
        %v837 = vrot.slane %v835, 5
        %v838 = vor.u32 %v834, %v837
        %v839 = vrot.slane %v838, 4
        %v841 = vshll.u32 %v311, 16
        %v843 = vrot.slane %v841, 5
        %v844 = vsel %vm710, %v839, %v843
        %v845 = vshrl.u32 %v311, 16
        %v847 = vrot.slane %v845, 4
        %v848 = vor.u32 %v847, %v843
        %v849 = vrot.slane %v848, 4
        %v851 = vshll.u32 %v312, 16
        %v853 = vrot.slane %v851, 5
        %v854 = vsel %vm710, %v849, %v853
        %v856 = vshrl.u32 %v313, 16
        %v858 = vrot.slane %v856, 4
        %v859 = vshll.u32 %v313, 16
        %v861 = vrot.slane %v859, 5
        %v862 = vor.u32 %v858, %v861
        %v863 = vrot.slane %v862, 4
        %v865 = vshll.u32 %v314, 16
        %v867 = vrot.slane %v865, 5
        %v868 = vsel %vm710, %v863, %v867
        %v869 = vshrl.u32 %v314, 16
        %v871 = vrot.slane %v869, 4
        %v872 = vor.u32 %v871, %v867
        %v873 = vrot.slane %v872, 4
        %v875 = vshll.u32 %v315, 16
        %v877 = vrot.slane %v875, 5
        %v878 = vsel %vm710, %v873, %v877
        %v880 = vshrl.u32 %v316, 16
        %v882 = vrot.slane %v880, 4
        %v883 = vshll.u32 %v316, 16
        %v885 = vrot.slane %v883, 5
        %v886 = vor.u32 %v882, %v885
        %v887 = vrot.slane %v886, 4
        %v889 = vshll.u32 %v317, 16
        %v891 = vrot.slane %v889, 5
        %v892 = vsel %vm710, %v887, %v891
        %v893 = vshrl.u32 %v317, 16
        %v895 = vrot.slane %v893, 4
        %v896 = vor.u32 %v895, %v891
        %v897 = vrot.slane %v896, 4
        %v899 = vshll.u32 %v318, 16
        %v901 = vrot.slane %v899, 5
        %v902 = vsel %vm710, %v897, %v901
        %v904 = vshrl.u32 %v319, 16
        %v906 = vrot.slane %v904, 4
        %v907 = vshll.u32 %v319, 16
        %v909 = vrot.slane %v907, 5
        %v910 = vor.u32 %v906, %v909
        %v911 = vrot.slane %v910, 4
        %v913 = vshll.u32 %v320, 16
        %v915 = vrot.slane %v913, 5
        %v916 = vsel %vm710, %v911, %v915
        %v917 = vshrl.u32 %v320, 16
        %v919 = vrot.slane %v917, 4
        %v920 = vor.u32 %v919, %v915
        %v921 = vrot.slane %v920, 4
        %v923 = vshll.u32 %v321, 16
        %v925 = vrot.slane %v923, 5
        %v926 = vsel %vm710, %v921, %v925
        %v928 = vshrl.u32 %v322, 16
        %v930 = vrot.slane %v928, 4
        %v931 = vshll.u32 %v322, 16
        %v933 = vrot.slane %v931, 5
        %v934 = vor.u32 %v930, %v933
        %v935 = vrot.slane %v934, 4
        %v937 = vshll.u32 %v323, 16
        %v939 = vrot.slane %v937, 5
        %v940 = vsel %vm710, %v935, %v939
        %v941 = vshrl.u32 %v323, 16
        %v943 = vrot.slane %v941, 4
        %v944 = vor.u32 %v943, %v939
        %v945 = vrot.slane %v944, 4
        %v947 = vshll.u32 %v324, 16
        %v949 = vrot.slane %v947, 5
        %v950 = vsel %vm710, %v945, %v949
        %v952 = vshrl.u32 %v325, 16
        %v954 = vrot.slane %v952, 4
        %v955 = vshll.u32 %v325, 16
        %v957 = vrot.slane %v955, 5
        %v958 = vor.u32 %v954, %v957
        %v959 = vrot.slane %v958, 4
        %v961 = vshll.u32 %v326, 16
        %v963 = vrot.slane %v961, 5
        %v964 = vsel %vm710, %v959, %v963
        %v965 = vshrl.u32 %v326, 16
        %v967 = vrot.slane %v965, 4
        %v968 = vor.u32 %v967, %v963
        %v969 = vrot.slane %v968, 4
        %v971 = vshll.u32 %v327, 16
        %v973 = vrot.slane %v971, 5
        %v974 = vsel %vm710, %v969, %v973
        %v976 = vshrl.u32 %v328, 16
        %v978 = vrot.slane %v976, 4
        %v979 = vshll.u32 %v328, 16
        %v981 = vrot.slane %v979, 5
        %v982 = vor.u32 %v978, %v981
        %v983 = vrot.slane %v982, 4
        %v985 = vshll.u32 %v329, 16
        %v987 = vrot.slane %v985, 5
        %v988 = vsel %vm710, %v983, %v987
        %v989 = vshrl.u32 %v329, 16
        %v991 = vrot.slane %v989, 4
        %v992 = vor.u32 %v991, %v987
        %v993 = vrot.slane %v992, 4
        %v995 = vshll.u32 %v330, 16
        %v997 = vrot.slane %v995, 5
        %v998 = vsel %vm710, %v993, %v997
        %v1000 = vshrl.u32 %v331, 16
        %v1002 = vrot.slane %v1000, 4
        %v1003 = vshll.u32 %v331, 16
        %v1005 = vrot.slane %v1003, 5
        %v1006 = vor.u32 %v1002, %v1005
        %v1007 = vrot.slane %v1006, 4
        %v1009 = vshll.u32 %v332, 16
        %v1011 = vrot.slane %v1009, 5
        %v1012 = vsel %vm710, %v1007, %v1011
        %v1013 = vshrl.u32 %v332, 16
        %v1015 = vrot.slane %v1013, 4
        %v1016 = vor.u32 %v1015, %v1011
        %v1017 = vrot.slane %v1016, 4
        %v1019 = vshll.u32 %v333, 16
        %v1021 = vrot.slane %v1019, 5
        %v1022 = vsel %vm710, %v1017, %v1021
        %v1024 = vshrl.u32 %v334, 16
        %v1026 = vrot.slane %v1024, 4
        %v1027 = vshll.u32 %v334, 16
        %v1029 = vrot.slane %v1027, 5
        %v1030 = vor.u32 %v1026, %v1029
        %v1031 = vrot.slane %v1030, 4
        %v1033 = vshll.u32 %v335, 16
        %v1035 = vrot.slane %v1033, 5
        %v1036 = vsel %vm710, %v1031, %v1035
        %v1037 = vshrl.u32 %v335, 16
        %v1039 = vrot.slane %v1037, 4
        %v1040 = vor.u32 %v1039, %v1035
        %v1041 = vrot.slane %v1040, 4
        %v1043 = vshll.u32 %v336, 16
        %v1045 = vrot.slane %v1043, 5
        %v1046 = vsel %vm710, %v1041, %v1045
        %v1048 = vshrl.u32 %v337, 16
        %v1050 = vrot.slane %v1048, 4
        %v1051 = vshll.u32 %v337, 16
        %v1053 = vrot.slane %v1051, 5
        %v1054 = vor.u32 %v1050, %v1053
        %v1055 = vrot.slane %v1054, 4
        %v1057 = vshll.u32 %v338, 16
        %v1059 = vrot.slane %v1057, 5
        %v1060 = vsel %vm710, %v1055, %v1059
        %v1061 = vshrl.u32 %v338, 16
        %v1063 = vrot.slane %v1061, 4
        %v1064 = vor.u32 %v1063, %v1059
        %v1065 = vrot.slane %v1064, 4
        %v1067 = vshll.u32 %v339, 16
        %v1069 = vrot.slane %v1067, 5
        %v1070 = vsel %vm710, %v1065, %v1069
        %v1072 = vshrl.u32 %v340, 16
        %v1074 = vrot.slane %v1072, 4
        %v1075 = vshll.u32 %v340, 16
        %v1077 = vrot.slane %v1075, 5
        %v1078 = vor.u32 %v1074, %v1077
        %v1079 = vrot.slane %v1078, 4
        %v1081 = vshll.u32 %v341, 16
        %v1083 = vrot.slane %v1081, 5
        %v1084 = vsel %vm710, %v1079, %v1083
        %v1085 = vshrl.u32 %v341, 16
        %v1087 = vrot.slane %v1085, 4
        %v1088 = vor.u32 %v1087, %v1083
        %v1089 = vrot.slane %v1088, 4
        %v1091 = vshll.u32 %v342, 16
        %v1093 = vrot.slane %v1091, 5
        %v1094 = vsel %vm710, %v1089, %v1093
        %s1095 = scalar_lea.vmem [#allocation6], 2
        %v1096 = vld [vmem:[%s1095] sm:$0x3]
        %v1097 = vunpack.c.l.b16 %v724
        %v1098 = vunpack.c.l.b16 %v734
        %v1099 = vunpack.c.l.b16 %v748
        %v1100 = vunpack.c.l.b16 %v758
        %v1101 = vunpack.c.l.b16 %v772
        %v1102 = vunpack.c.l.b16 %v782
        %v1103 = vunpack.c.l.b16 %v796
        %v1104 = vunpack.c.l.b16 %v806
        %v1105 = vunpack.c.l.b16 %v820
        %v1106 = vunpack.c.l.b16 %v830
        %v1107 = vunpack.c.l.b16 %v844
        %v1108 = vunpack.c.l.b16 %v854
        %v1109 = vunpack.c.l.b16 %v868
        %v1110 = vunpack.c.l.b16 %v878
        %v1111 = vunpack.c.l.b16 %v892
        %v1112 = vunpack.c.l.b16 %v902
        %v1113 = vunpack.c.l.b16 %v916
        %v1114 = vunpack.c.l.b16 %v926
        %v1115 = vunpack.c.l.b16 %v940
        %v1116 = vunpack.c.l.b16 %v950
        %v1117 = vunpack.c.l.b16 %v964
        %v1118 = vunpack.c.l.b16 %v974
        %v1119 = vunpack.c.l.b16 %v988
        %v1120 = vunpack.c.l.b16 %v998
        %v1121 = vunpack.c.l.b16 %v1012
        %v1122 = vunpack.c.l.b16 %v1022
        %v1123 = vunpack.c.l.b16 %v1036
        %v1124 = vunpack.c.l.b16 %v1046
        %v1125 = vunpack.c.l.b16 %v1060
        %v1126 = vunpack.c.l.b16 %v1070
        %v1127 = vunpack.c.l.b16 %v1084
        %v1128 = vunpack.c.l.b16 %v1094
        %v1129 = vpack.c.b16 %v1098, %v1097
        %v1130 = vpack.c.b16 %v1100, %v1099
        %v1131 = vpack.c.b16 %v1102, %v1101
        %v1132 = vpack.c.b16 %v1104, %v1103
        %v1133 = vpack.c.b16 %v1106, %v1105
        %v1134 = vpack.c.b16 %v1108, %v1107
        %v1135 = vpack.c.b16 %v1110, %v1109
        %v1136 = vpack.c.b16 %v1112, %v1111
        %v1137 = vpack.c.b16 %v1114, %v1113
        %v1138 = vpack.c.b16 %v1116, %v1115
        %v1139 = vpack.c.b16 %v1118, %v1117
        %v1140 = vpack.c.b16 %v1120, %v1119
        %v1141 = vpack.c.b16 %v1122, %v1121
        %v1142 = vpack.c.b16 %v1124, %v1123
        %v1143 = vpack.c.b16 %v1126, %v1125
        %v1144 = vpack.c.b16 %v1128, %v1127
        %v1146 = vsel %vm462, %v1129, 0
        %v1149 = vsel %vm462, %v1130, 0
        %v1152 = vsel %vm462, %v1131, 0
        %v1155 = vsel %vm462, %v1132, 0
        %v1158 = vsel %vm462, %v1133, 0
        %v1161 = vsel %vm462, %v1134, 0
        %v1164 = vsel %vm462, %v1135, 0
        %v1167 = vsel %vm462, %v1136, 0
        %v1170 = vsel %vm462, %v1137, 0
        %v1173 = vsel %vm462, %v1138, 0
        %v1176 = vsel %vm462, %v1139, 0
        %v1179 = vsel %vm462, %v1140, 0
        %v1182 = vsel %vm462, %v1141, 0
        %v1185 = vsel %vm462, %v1142, 0
        %v1188 = vsel %vm462, %v1143, 0
        %v1191 = vsel %vm462, %v1144, 0
        %v1194 = vsel %vm511, %v1096, 0
        %1196 = vmatprep.subr.bf16.mxu0 0
        %1197 = vmatpush1.bf16.msra.mxu0 %v1194
        %1198 = vmatprep.subr.bf16.mxu0 0
        %1199 = vmatpush1.bf16.msra.mxu0 0
        %1200 = vmatprep.subr.bf16.mxu0 0
        %1201 = vmatpush1.bf16.msra.mxu0 0
        %1202 = vmatprep.subr.bf16.mxu0 0
        %1203 = vmatpush1.bf16.msra.mxu0 0
        %1204 = vmatprep.subr.bf16.mxu0 0
        %1205 = vmatpush1.bf16.msra.mxu0 0
        %1206 = vmatprep.subr.bf16.mxu0 0
        %1207 = vmatpush1.bf16.msra.mxu0 0
        %1208 = vmatprep.subr.bf16.mxu0 0
        %1209 = vmatpush1.bf16.msra.mxu0 0
        %1210 = vmatprep.subr.bf16.mxu0 0
        %1211 = vmatpush1.bf16.msra.mxu0 0
        %1212 = vmatprep.subr.bf16.mxu0 0
        %1213 = vmatpush1.bf16.msra.mxu0 0
        %1214 = vmatprep.subr.bf16.mxu0 0
        %1215 = vmatpush1.bf16.msra.mxu0 0
        %1216 = vmatprep.subr.bf16.mxu0 0
        %1217 = vmatpush1.bf16.msra.mxu0 0
        %1218 = vmatprep.subr.bf16.mxu0 0
        %1219 = vmatpush1.bf16.msra.mxu0 0
        %1220 = vmatprep.subr.bf16.mxu0 0
        %1221 = vmatpush1.bf16.msra.mxu0 0
        %1222 = vmatprep.subr.bf16.mxu0 0
        %1223 = vmatpush1.bf16.msra.mxu0 0
        %1224 = vmatprep.subr.bf16.mxu0 0
        %1225 = vmatpush1.bf16.msra.mxu0 0
        %1226 = vmatprep.subr.bf16.mxu0 0
        %1227 = vmatpush1.bf16.msra.mxu0 0
        %1228 = vmatprep.mubr.bf16.mxu0 0
        %1229 = vmatmul.mubr.bf16.gmra.mrb[0].mxu0 %v1146
        %v1230 = vpop.f32.mrb[0].mxu0
        %v1231 = vadd.f32 0.0, %v1230
        %v1232 = vpop.f32.mrb[0].mxu0
        %v1233 = vpop.f32.mrb[0].mxu0
        %v1234 = vadd.f32 0.0, %v1233
        %v1235 = vpop.f32.mrb[0].mxu0
        %1236 = vmatprep.mubr.bf16.mxu0 0
        %1237 = vmatmul.mubr.bf16.gmra.mrb[0].mxu0 %v1149
        %v1238 = vpop.f32.mrb[0].mxu0
        %v1239 = vadd.f32 0.0, %v1238
        %v1240 = vpop.f32.mrb[0].mxu0
        %v1241 = vpop.f32.mrb[0].mxu0
        %v1242 = vadd.f32 0.0, %v1241
        %v1243 = vpop.f32.mrb[0].mxu0
        %1244 = vmatprep.mubr.bf16.mxu0 0
        %1245 = vmatmul.mubr.bf16.gmra.mrb[0].mxu0 %v1152
        %v1246 = vpop.f32.mrb[0].mxu0
        %v1247 = vadd.f32 0.0, %v1246
        %v1248 = vpop.f32.mrb[0].mxu0
        %v1249 = vpop.f32.mrb[0].mxu0
        %v1250 = vadd.f32 0.0, %v1249
        %v1251 = vpop.f32.mrb[0].mxu0
        %1252 = vmatprep.mubr.bf16.mxu0 0
        %1253 = vmatmul.mubr.bf16.gmra.mrb[0].mxu0 %v1155
        %v1254 = vpop.f32.mrb[0].mxu0
        %v1255 = vadd.f32 0.0, %v1254
        %v1256 = vpop.f32.mrb[0].mxu0
        %v1257 = vpop.f32.mrb[0].mxu0
        %v1258 = vadd.f32 0.0, %v1257
        %v1259 = vpop.f32.mrb[0].mxu0
        %1260 = vmatprep.mubr.bf16.mxu0 0
        %1261 = vmatmul.mubr.bf16.gmra.mrb[0].mxu0 %v1158
        %v1262 = vpop.f32.mrb[0].mxu0
        %v1263 = vadd.f32 0.0, %v1262
        %v1264 = vpop.f32.mrb[0].mxu0
        %v1265 = vpop.f32.mrb[0].mxu0
        %v1266 = vadd.f32 0.0, %v1265
        %v1267 = vpop.f32.mrb[0].mxu0
        %1268 = vmatprep.mubr.bf16.mxu0 0
        %1269 = vmatmul.mubr.bf16.gmra.mrb[0].mxu0 %v1161
        %v1270 = vpop.f32.mrb[0].mxu0
        %v1271 = vadd.f32 0.0, %v1270
        %v1272 = vpop.f32.mrb[0].mxu0
        %v1273 = vpop.f32.mrb[0].mxu0
        %v1274 = vadd.f32 0.0, %v1273
        %v1275 = vpop.f32.mrb[0].mxu0
        %1276 = vmatprep.mubr.bf16.mxu0 0
        %1277 = vmatmul.mubr.bf16.gmra.mrb[0].mxu0 %v1164
        %v1278 = vpop.f32.mrb[0].mxu0
        %v1279 = vadd.f32 0.0, %v1278
        %v1280 = vpop.f32.mrb[0].mxu0
        %v1281 = vpop.f32.mrb[0].mxu0
        %v1282 = vadd.f32 0.0, %v1281
        %v1283 = vpop.f32.mrb[0].mxu0
        %1284 = vmatprep.mubr.bf16.mxu0 0
        %1285 = vmatmul.mubr.bf16.gmra.mrb[0].mxu0 %v1167
        %v1286 = vpop.f32.mrb[0].mxu0
        %v1287 = vadd.f32 0.0, %v1286
        %v1288 = vpop.f32.mrb[0].mxu0
        %v1289 = vpop.f32.mrb[0].mxu0
        %v1290 = vadd.f32 0.0, %v1289
        %v1291 = vpop.f32.mrb[0].mxu0
        %1292 = vmatprep.mubr.bf16.mxu0 0
        %1293 = vmatmul.mubr.bf16.gmra.mrb[0].mxu0 %v1170
        %v1294 = vpop.f32.mrb[0].mxu0
        %v1295 = vadd.f32 0.0, %v1294
        %v1296 = vpop.f32.mrb[0].mxu0
        %v1297 = vpop.f32.mrb[0].mxu0
        %v1298 = vadd.f32 0.0, %v1297
        %v1299 = vpop.f32.mrb[0].mxu0
        %1300 = vmatprep.mubr.bf16.mxu0 0
        %1301 = vmatmul.mubr.bf16.gmra.mrb[0].mxu0 %v1173
        %v1302 = vpop.f32.mrb[0].mxu0
        %v1303 = vadd.f32 0.0, %v1302
        %v1304 = vpop.f32.mrb[0].mxu0
        %v1305 = vpop.f32.mrb[0].mxu0
        %v1306 = vadd.f32 0.0, %v1305
        %v1307 = vpop.f32.mrb[0].mxu0
        %1308 = vmatprep.mubr.bf16.mxu0 0
        %1309 = vmatmul.mubr.bf16.gmra.mrb[0].mxu0 %v1176
        %v1310 = vpop.f32.mrb[0].mxu0
        %v1311 = vadd.f32 0.0, %v1310
        %v1312 = vpop.f32.mrb[0].mxu0
        %v1313 = vpop.f32.mrb[0].mxu0
        %v1314 = vadd.f32 0.0, %v1313
        %v1315 = vpop.f32.mrb[0].mxu0
        %1316 = vmatprep.mubr.bf16.mxu0 0
        %1317 = vmatmul.mubr.bf16.gmra.mrb[0].mxu0 %v1179
        %v1318 = vpop.f32.mrb[0].mxu0
        %v1319 = vadd.f32 0.0, %v1318
        %v1320 = vpop.f32.mrb[0].mxu0
        %v1321 = vpop.f32.mrb[0].mxu0
        %v1322 = vadd.f32 0.0, %v1321
        %v1323 = vpop.f32.mrb[0].mxu0
        %1324 = vmatprep.mubr.bf16.mxu0 0
        %1325 = vmatmul.mubr.bf16.gmra.mrb[0].mxu0 %v1182
        %v1326 = vpop.f32.mrb[0].mxu0
        %v1327 = vadd.f32 0.0, %v1326
        %v1328 = vpop.f32.mrb[0].mxu0
        %v1329 = vpop.f32.mrb[0].mxu0
        %v1330 = vadd.f32 0.0, %v1329
        %v1331 = vpop.f32.mrb[0].mxu0
        %1332 = vmatprep.mubr.bf16.mxu0 0
        %1333 = vmatmul.mubr.bf16.gmra.mrb[0].mxu0 %v1185
        %v1334 = vpop.f32.mrb[0].mxu0
        %v1335 = vadd.f32 0.0, %v1334
        %v1336 = vpop.f32.mrb[0].mxu0
        %v1337 = vpop.f32.mrb[0].mxu0
        %v1338 = vadd.f32 0.0, %v1337
        %v1339 = vpop.f32.mrb[0].mxu0
        %1340 = vmatprep.mubr.bf16.mxu0 0
        %1341 = vmatmul.mubr.bf16.gmra.mrb[0].mxu0 %v1188
        %v1342 = vpop.f32.mrb[0].mxu0
        %v1343 = vadd.f32 0.0, %v1342
        %v1344 = vpop.f32.mrb[0].mxu0
        %v1345 = vpop.f32.mrb[0].mxu0
        %v1346 = vadd.f32 0.0, %v1345
        %v1347 = vpop.f32.mrb[0].mxu0
        %1348 = vmatprep.mubr.bf16.mxu0 0
        %1349 = vmatmul.mubr.bf16.gmra.mrb[0].mxu0 %v1191
        %v1350 = vpop.f32.mrb[0].mxu0
        %v1351 = vadd.f32 0.0, %v1350
        %v1352 = vpop.f32.mrb[0].mxu0
        %v1353 = vpop.f32.mrb[0].mxu0
        %v1354 = vadd.f32 0.0, %v1353
        %v1355 = vpop.f32.mrb[0].mxu0
        %1356 = vdwg.mxu0
        %v1357 = vadd.f32 %v676, %v1231
        %v1358 = vadd.f32 %v677, %v1234
        %v1359 = vadd.f32 %v678, %v1239
        %v1360 = vadd.f32 %v679, %v1242
        %v1361 = vadd.f32 %v680, %v1247
        %v1362 = vadd.f32 %v681, %v1250
        %v1363 = vadd.f32 %v682, %v1255
        %v1364 = vadd.f32 %v683, %v1258
        %v1365 = vadd.f32 %v684, %v1263
        %v1366 = vadd.f32 %v685, %v1266
        %v1367 = vadd.f32 %v686, %v1271
        %v1368 = vadd.f32 %v687, %v1274
        %v1369 = vadd.f32 %v688, %v1279
        %v1370 = vadd.f32 %v689, %v1282
        %v1371 = vadd.f32 %v690, %v1287
        %v1372 = vadd.f32 %v691, %v1290
        %v1373 = vadd.f32 %v692, %v1295
        %v1374 = vadd.f32 %v693, %v1298
        %v1375 = vadd.f32 %v694, %v1303
        %v1376 = vadd.f32 %v695, %v1306
        %v1377 = vadd.f32 %v696, %v1311
        %v1378 = vadd.f32 %v697, %v1314
        %v1379 = vadd.f32 %v698, %v1319
        %v1380 = vadd.f32 %v699, %v1322
        %v1381 = vadd.f32 %v700, %v1327
        %v1382 = vadd.f32 %v701, %v1330
        %v1383 = vadd.f32 %v702, %v1335
        %v1384 = vadd.f32 %v703, %v1338
        %v1385 = vadd.f32 %v704, %v1343
        %v1386 = vadd.f32 %v705, %v1346
        %v1387 = vadd.f32 %v706, %v1351
        %v1388 = vadd.f32 %v707, %v1354
        %vm1405 = vcmask 1042432
        %vm1406 = vcmask 1046532
        %vm1407 = vmor %vm1405, %vm1406
        %v1408 = vrot.slane %v295, 5
        %v1409 = vrot.slane %v1408, 4
        %v1410 = vrot.slane %v296, 5
        %v1411 = vsel %vm1407, %v1409, %v1410
        %v1412 = vrot.slane %v1410, 4
        %v1413 = vrot.slane %v297, 5
        %v1414 = vsel %vm1407, %v1412, %v1413
        %v1415 = vrot.slane %v298, 5
        %v1416 = vrot.slane %v1415, 4
        %v1417 = vrot.slane %v299, 5
        %v1418 = vsel %vm1407, %v1416, %v1417
        %v1419 = vrot.slane %v1417, 4
        %v1420 = vrot.slane %v300, 5
        %v1421 = vsel %vm1407, %v1419, %v1420
        %v1422 = vrot.slane %v301, 5
        %v1423 = vrot.slane %v1422, 4
        %v1424 = vrot.slane %v302, 5
        %v1425 = vsel %vm1407, %v1423, %v1424
        %v1426 = vrot.slane %v1424, 4
        %v1427 = vrot.slane %v303, 5
        %v1428 = vsel %vm1407, %v1426, %v1427
        %v1429 = vrot.slane %v304, 5
        %v1430 = vrot.slane %v1429, 4
        %v1431 = vrot.slane %v305, 5
        %v1432 = vsel %vm1407, %v1430, %v1431
        %v1433 = vrot.slane %v1431, 4
        %v1434 = vrot.slane %v306, 5
        %v1435 = vsel %vm1407, %v1433, %v1434
        %v1436 = vrot.slane %v307, 5
        %v1437 = vrot.slane %v1436, 4
        %v1438 = vrot.slane %v308, 5
        %v1439 = vsel %vm1407, %v1437, %v1438
        %v1440 = vrot.slane %v1438, 4
        %v1441 = vrot.slane %v309, 5
        %v1442 = vsel %vm1407, %v1440, %v1441
        %v1443 = vrot.slane %v310, 5
        %v1444 = vrot.slane %v1443, 4
        %v1445 = vrot.slane %v311, 5
        %v1446 = vsel %vm1407, %v1444, %v1445
        %v1447 = vrot.slane %v1445, 4
        %v1448 = vrot.slane %v312, 5
        %v1449 = vsel %vm1407, %v1447, %v1448
        %v1450 = vrot.slane %v313, 5
        %v1451 = vrot.slane %v1450, 4
        %v1452 = vrot.slane %v314, 5
        %v1453 = vsel %vm1407, %v1451, %v1452
        %v1454 = vrot.slane %v1452, 4
        %v1455 = vrot.slane %v315, 5
        %v1456 = vsel %vm1407, %v1454, %v1455
        %v1457 = vrot.slane %v316, 5
        %v1458 = vrot.slane %v1457, 4
        %v1459 = vrot.slane %v317, 5
        %v1460 = vsel %vm1407, %v1458, %v1459
        %v1461 = vrot.slane %v1459, 4
        %v1462 = vrot.slane %v318, 5
        %v1463 = vsel %vm1407, %v1461, %v1462
        %v1464 = vrot.slane %v319, 5
        %v1465 = vrot.slane %v1464, 4
        %v1466 = vrot.slane %v320, 5
        %v1467 = vsel %vm1407, %v1465, %v1466
        %v1468 = vrot.slane %v1466, 4
        %v1469 = vrot.slane %v321, 5
        %v1470 = vsel %vm1407, %v1468, %v1469
        %v1471 = vrot.slane %v322, 5
        %v1472 = vrot.slane %v1471, 4
        %v1473 = vrot.slane %v323, 5
        %v1474 = vsel %vm1407, %v1472, %v1473
        %v1475 = vrot.slane %v1473, 4
        %v1476 = vrot.slane %v324, 5
        %v1477 = vsel %vm1407, %v1475, %v1476
        %v1478 = vrot.slane %v325, 5
        %v1479 = vrot.slane %v1478, 4
        %v1480 = vrot.slane %v326, 5
        %v1481 = vsel %vm1407, %v1479, %v1480
        %v1482 = vrot.slane %v1480, 4
        %v1483 = vrot.slane %v327, 5
        %v1484 = vsel %vm1407, %v1482, %v1483
        %v1485 = vrot.slane %v328, 5
        %v1486 = vrot.slane %v1485, 4
        %v1487 = vrot.slane %v329, 5
        %v1488 = vsel %vm1407, %v1486, %v1487
        %v1489 = vrot.slane %v1487, 4
        %v1490 = vrot.slane %v330, 5
        %v1491 = vsel %vm1407, %v1489, %v1490
        %v1492 = vrot.slane %v331, 5
        %v1493 = vrot.slane %v1492, 4
        %v1494 = vrot.slane %v332, 5
        %v1495 = vsel %vm1407, %v1493, %v1494
        %v1496 = vrot.slane %v1494, 4
        %v1497 = vrot.slane %v333, 5
        %v1498 = vsel %vm1407, %v1496, %v1497
        %v1499 = vrot.slane %v334, 5
        %v1500 = vrot.slane %v1499, 4
        %v1501 = vrot.slane %v335, 5
        %v1502 = vsel %vm1407, %v1500, %v1501
        %v1503 = vrot.slane %v1501, 4
        %v1504 = vrot.slane %v336, 5
        %v1505 = vsel %vm1407, %v1503, %v1504
        %v1506 = vrot.slane %v337, 5
        %v1507 = vrot.slane %v1506, 4
        %v1508 = vrot.slane %v338, 5
        %v1509 = vsel %vm1407, %v1507, %v1508
        %v1510 = vrot.slane %v1508, 4
        %v1511 = vrot.slane %v339, 5
        %v1512 = vsel %vm1407, %v1510, %v1511
        %v1513 = vrot.slane %v340, 5
        %v1514 = vrot.slane %v1513, 4
        %v1515 = vrot.slane %v341, 5
        %v1516 = vsel %vm1407, %v1514, %v1515
        %v1517 = vrot.slane %v1515, 4
        %v1518 = vrot.slane %v342, 5
        %v1519 = vsel %vm1407, %v1517, %v1518
        %s1520 = scalar_lea.vmem [#allocation6], 4
        %v1521 = vld [vmem:[%s1520] sm:$0x3]
        %v1522 = vunpack.c.l.b16 %v1411
        %v1523 = vunpack.c.l.b16 %v1414
        %v1524 = vunpack.c.l.b16 %v1418
        %v1525 = vunpack.c.l.b16 %v1421
        %v1526 = vunpack.c.l.b16 %v1425
        %v1527 = vunpack.c.l.b16 %v1428
        %v1528 = vunpack.c.l.b16 %v1432
        %v1529 = vunpack.c.l.b16 %v1435
        %v1530 = vunpack.c.l.b16 %v1439
        %v1531 = vunpack.c.l.b16 %v1442
        %v1532 = vunpack.c.l.b16 %v1446
        %v1533 = vunpack.c.l.b16 %v1449
        %v1534 = vunpack.c.l.b16 %v1453
        %v1535 = vunpack.c.l.b16 %v1456
        %v1536 = vunpack.c.l.b16 %v1460
        %v1537 = vunpack.c.l.b16 %v1463
        %v1538 = vunpack.c.l.b16 %v1467
        %v1539 = vunpack.c.l.b16 %v1470
        %v1540 = vunpack.c.l.b16 %v1474
        %v1541 = vunpack.c.l.b16 %v1477
        %v1542 = vunpack.c.l.b16 %v1481
        %v1543 = vunpack.c.l.b16 %v1484
        %v1544 = vunpack.c.l.b16 %v1488
        %v1545 = vunpack.c.l.b16 %v1491
        %v1546 = vunpack.c.l.b16 %v1495
        %v1547 = vunpack.c.l.b16 %v1498
        %v1548 = vunpack.c.l.b16 %v1502
        %v1549 = vunpack.c.l.b16 %v1505
        %v1550 = vunpack.c.l.b16 %v1509
        %v1551 = vunpack.c.l.b16 %v1512
        %v1552 = vunpack.c.l.b16 %v1516
        %v1553 = vunpack.c.l.b16 %v1519
        %v1554 = vpack.c.b16 %v1523, %v1522
        %v1555 = vpack.c.b16 %v1525, %v1524
        %v1556 = vpack.c.b16 %v1527, %v1526
        %v1557 = vpack.c.b16 %v1529, %v1528
        %v1558 = vpack.c.b16 %v1531, %v1530
        %v1559 = vpack.c.b16 %v1533, %v1532
        %v1560 = vpack.c.b16 %v1535, %v1534
        %v1561 = vpack.c.b16 %v1537, %v1536
        %v1562 = vpack.c.b16 %v1539, %v1538
        %v1563 = vpack.c.b16 %v1541, %v1540
        %v1564 = vpack.c.b16 %v1543, %v1542
        %v1565 = vpack.c.b16 %v1545, %v1544
        %v1566 = vpack.c.b16 %v1547, %v1546
        %v1567 = vpack.c.b16 %v1549, %v1548
        %v1568 = vpack.c.b16 %v1551, %v1550
        %v1569 = vpack.c.b16 %v1553, %v1552
        %v1571 = vsel %vm462, %v1554, 0
        %v1574 = vsel %vm462, %v1555, 0
        %v1577 = vsel %vm462, %v1556, 0
        %v1580 = vsel %vm462, %v1557, 0
        %v1583 = vsel %vm462, %v1558, 0
        %v1586 = vsel %vm462, %v1559, 0
        %v1589 = vsel %vm462, %v1560, 0
        %v1592 = vsel %vm462, %v1561, 0
        %v1595 = vsel %vm462, %v1562, 0
        %v1598 = vsel %vm462, %v1563, 0
        %v1601 = vsel %vm462, %v1564, 0
        %v1604 = vsel %vm462, %v1565, 0
        %v1607 = vsel %vm462, %v1566, 0
        %v1610 = vsel %vm462, %v1567, 0
        %v1613 = vsel %vm462, %v1568, 0
        %v1616 = vsel %vm462, %v1569, 0
        %v1619 = vsel %vm511, %v1521, 0
        %1621 = vmatprep.subr.bf16.mxu0 0
        %1622 = vmatpush1.bf16.msra.mxu0 %v1619
        %1623 = vmatprep.subr.bf16.mxu0 0
        %1624 = vmatpush1.bf16.msra.mxu0 0
        %1625 = vmatprep.subr.bf16.mxu0 0
        %1626 = vmatpush1.bf16.msra.mxu0 0
        %1627 = vmatprep.subr.bf16.mxu0 0
        %1628 = vmatpush1.bf16.msra.mxu0 0
        %1629 = vmatprep.subr.bf16.mxu0 0
        %1630 = vmatpush1.bf16.msra.mxu0 0
        %1631 = vmatprep.subr.bf16.mxu0 0
        %1632 = vmatpush1.bf16.msra.mxu0 0
        %1633 = vmatprep.subr.bf16.mxu0 0
        %1634 = vmatpush1.bf16.msra.mxu0 0
        %1635 = vmatprep.subr.bf16.mxu0 0
        %1636 = vmatpush1.bf16.msra.mxu0 0
        %1637 = vmatprep.subr.bf16.mxu0 0
        %1638 = vmatpush1.bf16.msra.mxu0 0
        %1639 = vmatprep.subr.bf16.mxu0 0
        %1640 = vmatpush1.bf16.msra.mxu0 0
        %1641 = vmatprep.subr.bf16.mxu0 0
        %1642 = vmatpush1.bf16.msra.mxu0 0
        %1643 = vmatprep.subr.bf16.mxu0 0
        %1644 = vmatpush1.bf16.msra.mxu0 0
        %1645 = vmatprep.subr.bf16.mxu0 0
        %1646 = vmatpush1.bf16.msra.mxu0 0
        %1647 = vmatprep.subr.bf16.mxu0 0
        %1648 = vmatpush1.bf16.msra.mxu0 0
        %1649 = vmatprep.subr.bf16.mxu0 0
        %1650 = vmatpush1.bf16.msra.mxu0 0
        %1651 = vmatprep.subr.bf16.mxu0 0
        %1652 = vmatpush1.bf16.msra.mxu0 0
        %1653 = vmatprep.mubr.bf16.mxu0 0
        %1654 = vmatmul.mubr.bf16.gmra.mrb[0].mxu0 %v1571
        %v1655 = vpop.f32.mrb[0].mxu0
        %v1656 = vadd.f32 0.0, %v1655
        %v1657 = vpop.f32.mrb[0].mxu0
        %v1658 = vpop.f32.mrb[0].mxu0
        %v1659 = vadd.f32 0.0, %v1658
        %v1660 = vpop.f32.mrb[0].mxu0
        %1661 = vmatprep.mubr.bf16.mxu0 0
        %1662 = vmatmul.mubr.bf16.gmra.mrb[0].mxu0 %v1574
        %v1663 = vpop.f32.mrb[0].mxu0
        %v1664 = vadd.f32 0.0, %v1663
        %v1665 = vpop.f32.mrb[0].mxu0
        %v1666 = vpop.f32.mrb[0].mxu0
        %v1667 = vadd.f32 0.0, %v1666
        %v1668 = vpop.f32.mrb[0].mxu0
        %1669 = vmatprep.mubr.bf16.mxu0 0
        %1670 = vmatmul.mubr.bf16.gmra.mrb[0].mxu0 %v1577
        %v1671 = vpop.f32.mrb[0].mxu0
        %v1672 = vadd.f32 0.0, %v1671
        %v1673 = vpop.f32.mrb[0].mxu0
        %v1674 = vpop.f32.mrb[0].mxu0
        %v1675 = vadd.f32 0.0, %v1674
        %v1676 = vpop.f32.mrb[0].mxu0
        %1677 = vmatprep.mubr.bf16.mxu0 0
        %1678 = vmatmul.mubr.bf16.gmra.mrb[0].mxu0 %v1580
        %v1679 = vpop.f32.mrb[0].mxu0
        %v1680 = vadd.f32 0.0, %v1679
        %v1681 = vpop.f32.mrb[0].mxu0
        %v1682 = vpop.f32.mrb[0].mxu0
        %v1683 = vadd.f32 0.0, %v1682
        %v1684 = vpop.f32.mrb[0].mxu0
        %1685 = vmatprep.mubr.bf16.mxu0 0
        %1686 = vmatmul.mubr.bf16.gmra.mrb[0].mxu0 %v1583
        %v1687 = vpop.f32.mrb[0].mxu0
        %v1688 = vadd.f32 0.0, %v1687
        %v1689 = vpop.f32.mrb[0].mxu0
        %v1690 = vpop.f32.mrb[0].mxu0
        %v1691 = vadd.f32 0.0, %v1690
        %v1692 = vpop.f32.mrb[0].mxu0
        %1693 = vmatprep.mubr.bf16.mxu0 0
        %1694 = vmatmul.mubr.bf16.gmra.mrb[0].mxu0 %v1586
        %v1695 = vpop.f32.mrb[0].mxu0
        %v1696 = vadd.f32 0.0, %v1695
        %v1697 = vpop.f32.mrb[0].mxu0
        %v1698 = vpop.f32.mrb[0].mxu0
        %v1699 = vadd.f32 0.0, %v1698
        %v1700 = vpop.f32.mrb[0].mxu0
        %1701 = vmatprep.mubr.bf16.mxu0 0
        %1702 = vmatmul.mubr.bf16.gmra.mrb[0].mxu0 %v1589
        %v1703 = vpop.f32.mrb[0].mxu0
        %v1704 = vadd.f32 0.0, %v1703
        %v1705 = vpop.f32.mrb[0].mxu0
        %v1706 = vpop.f32.mrb[0].mxu0
        %v1707 = vadd.f32 0.0, %v1706
        %v1708 = vpop.f32.mrb[0].mxu0
        %1709 = vmatprep.mubr.bf16.mxu0 0
        %1710 = vmatmul.mubr.bf16.gmra.mrb[0].mxu0 %v1592
        %v1711 = vpop.f32.mrb[0].mxu0
        %v1712 = vadd.f32 0.0, %v1711
        %v1713 = vpop.f32.mrb[0].mxu0
        %v1714 = vpop.f32.mrb[0].mxu0
        %v1715 = vadd.f32 0.0, %v1714
        %v1716 = vpop.f32.mrb[0].mxu0
        %1717 = vmatprep.mubr.bf16.mxu0 0
        %1718 = vmatmul.mubr.bf16.gmra.mrb[0].mxu0 %v1595
        %v1719 = vpop.f32.mrb[0].mxu0
        %v1720 = vadd.f32 0.0, %v1719
        %v1721 = vpop.f32.mrb[0].mxu0
        %v1722 = vpop.f32.mrb[0].mxu0
        %v1723 = vadd.f32 0.0, %v1722
        %v1724 = vpop.f32.mrb[0].mxu0
        %1725 = vmatprep.mubr.bf16.mxu0 0
        %1726 = vmatmul.mubr.bf16.gmra.mrb[0].mxu0 %v1598
        %v1727 = vpop.f32.mrb[0].mxu0
        %v1728 = vadd.f32 0.0, %v1727
        %v1729 = vpop.f32.mrb[0].mxu0
        %v1730 = vpop.f32.mrb[0].mxu0
        %v1731 = vadd.f32 0.0, %v1730
        %v1732 = vpop.f32.mrb[0].mxu0
        %1733 = vmatprep.mubr.bf16.mxu0 0
        %1734 = vmatmul.mubr.bf16.gmra.mrb[0].mxu0 %v1601
        %v1735 = vpop.f32.mrb[0].mxu0
        %v1736 = vadd.f32 0.0, %v1735
        %v1737 = vpop.f32.mrb[0].mxu0
        %v1738 = vpop.f32.mrb[0].mxu0
        %v1739 = vadd.f32 0.0, %v1738
        %v1740 = vpop.f32.mrb[0].mxu0
        %1741 = vmatprep.mubr.bf16.mxu0 0
        %1742 = vmatmul.mubr.bf16.gmra.mrb[0].mxu0 %v1604
        %v1743 = vpop.f32.mrb[0].mxu0
        %v1744 = vadd.f32 0.0, %v1743
        %v1745 = vpop.f32.mrb[0].mxu0
        %v1746 = vpop.f32.mrb[0].mxu0
        %v1747 = vadd.f32 0.0, %v1746
        %v1748 = vpop.f32.mrb[0].mxu0
        %1749 = vmatprep.mubr.bf16.mxu0 0
        %1750 = vmatmul.mubr.bf16.gmra.mrb[0].mxu0 %v1607
        %v1751 = vpop.f32.mrb[0].mxu0
        %v1752 = vadd.f32 0.0, %v1751
        %v1753 = vpop.f32.mrb[0].mxu0
        %v1754 = vpop.f32.mrb[0].mxu0
        %v1755 = vadd.f32 0.0, %v1754
        %v1756 = vpop.f32.mrb[0].mxu0
        %1757 = vmatprep.mubr.bf16.mxu0 0
        %1758 = vmatmul.mubr.bf16.gmra.mrb[0].mxu0 %v1610
        %v1759 = vpop.f32.mrb[0].mxu0
        %v1760 = vadd.f32 0.0, %v1759
        %v1761 = vpop.f32.mrb[0].mxu0
        %v1762 = vpop.f32.mrb[0].mxu0
        %v1763 = vadd.f32 0.0, %v1762
        %v1764 = vpop.f32.mrb[0].mxu0
        %1765 = vmatprep.mubr.bf16.mxu0 0
        %1766 = vmatmul.mubr.bf16.gmra.mrb[0].mxu0 %v1613
        %v1767 = vpop.f32.mrb[0].mxu0
        %v1768 = vadd.f32 0.0, %v1767
        %v1769 = vpop.f32.mrb[0].mxu0
        %v1770 = vpop.f32.mrb[0].mxu0
        %v1771 = vadd.f32 0.0, %v1770
        %v1772 = vpop.f32.mrb[0].mxu0
        %1773 = vmatprep.mubr.bf16.mxu0 0
        %1774 = vmatmul.mubr.bf16.gmra.mrb[0].mxu0 %v1616
        %v1775 = vpop.f32.mrb[0].mxu0
        %v1776 = vadd.f32 0.0, %v1775
        %v1777 = vpop.f32.mrb[0].mxu0
        %v1778 = vpop.f32.mrb[0].mxu0
        %v1779 = vadd.f32 0.0, %v1778
        %v1780 = vpop.f32.mrb[0].mxu0
        %1781 = vdwg.mxu0
        %v1782 = vadd.f32 %v1357, %v1656
        %v1783 = vadd.f32 %v1358, %v1659
        %v1784 = vadd.f32 %v1359, %v1664
        %v1785 = vadd.f32 %v1360, %v1667
        %v1786 = vadd.f32 %v1361, %v1672
        %v1787 = vadd.f32 %v1362, %v1675
        %v1788 = vadd.f32 %v1363, %v1680
        %v1789 = vadd.f32 %v1364, %v1683
        %v1790 = vadd.f32 %v1365, %v1688
        %v1791 = vadd.f32 %v1366, %v1691
        %v1792 = vadd.f32 %v1367, %v1696
        %v1793 = vadd.f32 %v1368, %v1699
        %v1794 = vadd.f32 %v1369, %v1704
        %v1795 = vadd.f32 %v1370, %v1707
        %v1796 = vadd.f32 %v1371, %v1712
        %v1797 = vadd.f32 %v1372, %v1715
        %v1798 = vadd.f32 %v1373, %v1720
        %v1799 = vadd.f32 %v1374, %v1723
        %v1800 = vadd.f32 %v1375, %v1728
        %v1801 = vadd.f32 %v1376, %v1731
        %v1802 = vadd.f32 %v1377, %v1736
        %v1803 = vadd.f32 %v1378, %v1739
        %v1804 = vadd.f32 %v1379, %v1744
        %v1805 = vadd.f32 %v1380, %v1747
        %v1806 = vadd.f32 %v1381, %v1752
        %v1807 = vadd.f32 %v1382, %v1755
        %v1808 = vadd.f32 %v1383, %v1760
        %v1809 = vadd.f32 %v1384, %v1763
        %v1810 = vadd.f32 %v1385, %v1768
        %v1811 = vadd.f32 %v1386, %v1771
        %v1812 = vadd.f32 %v1387, %v1776
        %v1813 = vadd.f32 %v1388, %v1779
        %s1814 = scalar_lea.vmem [#allocation6], 6
        %v1815 = vld [vmem:[%s1814] sm:$0x3]
        %v1818 = vunpack.c.l.b16 %v343
        %v1819 = vunpack.c.l.b16 %v344
        %v1820 = vpack.c.b16 %v1819, %v1818
        %v1822 = vsel %vm462, %v1820, 0
        %v1825 = vsel %vm511, %v1815, 0
        %1827 = vmatprep.subr.bf16.mxu0 0
        %1828 = vmatpush1.bf16.msra.mxu0 %v1825
        %1829 = vmatprep.subr.bf16.mxu0 0
        %1830 = vmatpush1.bf16.msra.mxu0 0
        %1831 = vmatprep.subr.bf16.mxu0 0
        %1832 = vmatpush1.bf16.msra.mxu0 0
        %1833 = vmatprep.subr.bf16.mxu0 0
        %1834 = vmatpush1.bf16.msra.mxu0 0
        %1835 = vmatprep.subr.bf16.mxu0 0
        %1836 = vmatpush1.bf16.msra.mxu0 0
        %1837 = vmatprep.subr.bf16.mxu0 0
        %1838 = vmatpush1.bf16.msra.mxu0 0
        %1839 = vmatprep.subr.bf16.mxu0 0
        %1840 = vmatpush1.bf16.msra.mxu0 0
        %1841 = vmatprep.subr.bf16.mxu0 0
        %1842 = vmatpush1.bf16.msra.mxu0 0
        %1843 = vmatprep.subr.bf16.mxu0 0
        %1844 = vmatpush1.bf16.msra.mxu0 0
        %1845 = vmatprep.subr.bf16.mxu0 0
        %1846 = vmatpush1.bf16.msra.mxu0 0
        %1847 = vmatprep.subr.bf16.mxu0 0
        %1848 = vmatpush1.bf16.msra.mxu0 0
        %1849 = vmatprep.subr.bf16.mxu0 0
        %1850 = vmatpush1.bf16.msra.mxu0 0
        %1851 = vmatprep.subr.bf16.mxu0 0
        %1852 = vmatpush1.bf16.msra.mxu0 0
        %1853 = vmatprep.subr.bf16.mxu0 0
        %1854 = vmatpush1.bf16.msra.mxu0 0
        %1855 = vmatprep.subr.bf16.mxu0 0
        %1856 = vmatpush1.bf16.msra.mxu0 0
        %1857 = vmatprep.subr.bf16.mxu0 0
        %1858 = vmatpush1.bf16.msra.mxu0 0
        %1859 = vmatprep.mubr.bf16.mxu0 0
        %1860 = vmatmul.mubr.bf16.gmra.mrb[0].mxu0 %v467
        %v1861 = vpop.f32.mrb[0].mxu0
        %v1862 = vadd.f32 0.0, %v1861
        %v1863 = vpop.f32.mrb[0].mxu0
        %v1864 = vpop.f32.mrb[0].mxu0
        %v1865 = vadd.f32 0.0, %v1864
        %v1866 = vpop.f32.mrb[0].mxu0
        %1867 = vmatprep.mubr.bf16.mxu0 0
        %1868 = vmatmul.mubr.bf16.gmra.mrb[0].mxu0 %v470
        %v1869 = vpop.f32.mrb[0].mxu0
        %v1870 = vadd.f32 0.0, %v1869
        %v1871 = vpop.f32.mrb[0].mxu0
        %v1872 = vpop.f32.mrb[0].mxu0
        %v1873 = vadd.f32 0.0, %v1872
        %v1874 = vpop.f32.mrb[0].mxu0
        %1875 = vmatprep.mubr.bf16.mxu0 0
        %1876 = vmatmul.mubr.bf16.gmra.mrb[0].mxu0 %v473
        %v1877 = vpop.f32.mrb[0].mxu0
        %v1878 = vadd.f32 0.0, %v1877
        %v1879 = vpop.f32.mrb[0].mxu0
        %v1880 = vpop.f32.mrb[0].mxu0
        %v1881 = vadd.f32 0.0, %v1880
        %v1882 = vpop.f32.mrb[0].mxu0
        %1883 = vmatprep.mubr.bf16.mxu0 0
        %1884 = vmatmul.mubr.bf16.gmra.mrb[0].mxu0 %v476
        %v1885 = vpop.f32.mrb[0].mxu0
        %v1886 = vadd.f32 0.0, %v1885
        %v1887 = vpop.f32.mrb[0].mxu0
        %v1888 = vpop.f32.mrb[0].mxu0
        %v1889 = vadd.f32 0.0, %v1888
        %v1890 = vpop.f32.mrb[0].mxu0
        %1891 = vmatprep.mubr.bf16.mxu0 0
        %1892 = vmatmul.mubr.bf16.gmra.mrb[0].mxu0 %v479
        %v1893 = vpop.f32.mrb[0].mxu0
        %v1894 = vadd.f32 0.0, %v1893
        %v1895 = vpop.f32.mrb[0].mxu0
        %v1896 = vpop.f32.mrb[0].mxu0
        %v1897 = vadd.f32 0.0, %v1896
        %v1898 = vpop.f32.mrb[0].mxu0
        %1899 = vmatprep.mubr.bf16.mxu0 0
        %1900 = vmatmul.mubr.bf16.gmra.mrb[0].mxu0 %v482
        %v1901 = vpop.f32.mrb[0].mxu0
        %v1902 = vadd.f32 0.0, %v1901
        %v1903 = vpop.f32.mrb[0].mxu0
        %v1904 = vpop.f32.mrb[0].mxu0
        %v1905 = vadd.f32 0.0, %v1904
        %v1906 = vpop.f32.mrb[0].mxu0
        %1907 = vmatprep.mubr.bf16.mxu0 0
        %1908 = vmatmul.mubr.bf16.gmra.mrb[0].mxu0 %v485
        %v1909 = vpop.f32.mrb[0].mxu0
        %v1910 = vadd.f32 0.0, %v1909
        %v1911 = vpop.f32.mrb[0].mxu0
        %v1912 = vpop.f32.mrb[0].mxu0
        %v1913 = vadd.f32 0.0, %v1912
        %v1914 = vpop.f32.mrb[0].mxu0
        %1915 = vmatprep.mubr.bf16.mxu0 0
        %1916 = vmatmul.mubr.bf16.gmra.mrb[0].mxu0 %v488
        %v1917 = vpop.f32.mrb[0].mxu0
        %v1918 = vadd.f32 0.0, %v1917
        %v1919 = vpop.f32.mrb[0].mxu0
        %v1920 = vpop.f32.mrb[0].mxu0
        %v1921 = vadd.f32 0.0, %v1920
        %v1922 = vpop.f32.mrb[0].mxu0
        %1923 = vmatprep.mubr.bf16.mxu0 0
        %1924 = vmatmul.mubr.bf16.gmra.mrb[0].mxu0 %v491
        %v1925 = vpop.f32.mrb[0].mxu0
        %v1926 = vadd.f32 0.0, %v1925
        %v1927 = vpop.f32.mrb[0].mxu0
        %v1928 = vpop.f32.mrb[0].mxu0
        %v1929 = vadd.f32 0.0, %v1928
        %v1930 = vpop.f32.mrb[0].mxu0
        %1931 = vmatprep.mubr.bf16.mxu0 0
        %1932 = vmatmul.mubr.bf16.gmra.mrb[0].mxu0 %v494
        %v1933 = vpop.f32.mrb[0].mxu0
        %v1934 = vadd.f32 0.0, %v1933
        %v1935 = vpop.f32.mrb[0].mxu0
        %v1936 = vpop.f32.mrb[0].mxu0
        %v1937 = vadd.f32 0.0, %v1936
        %v1938 = vpop.f32.mrb[0].mxu0
        %1939 = vmatprep.mubr.bf16.mxu0 0
        %1940 = vmatmul.mubr.bf16.gmra.mrb[0].mxu0 %v497
        %v1941 = vpop.f32.mrb[0].mxu0
        %v1942 = vadd.f32 0.0, %v1941
        %v1943 = vpop.f32.mrb[0].mxu0
        %v1944 = vpop.f32.mrb[0].mxu0
        %v1945 = vadd.f32 0.0, %v1944
        %v1946 = vpop.f32.mrb[0].mxu0
        %1947 = vmatprep.mubr.bf16.mxu0 0
        %1948 = vmatmul.mubr.bf16.gmra.mrb[0].mxu0 %v500
        %v1949 = vpop.f32.mrb[0].mxu0
        %v1950 = vadd.f32 0.0, %v1949
        %v1951 = vpop.f32.mrb[0].mxu0
        %v1952 = vpop.f32.mrb[0].mxu0
        %v1953 = vadd.f32 0.0, %v1952
        %v1954 = vpop.f32.mrb[0].mxu0
        %1955 = vmatprep.mubr.bf16.mxu0 0
        %1956 = vmatmul.mubr.bf16.gmra.mrb[0].mxu0 %v503
        %v1957 = vpop.f32.mrb[0].mxu0
        %v1958 = vadd.f32 0.0, %v1957
        %v1959 = vpop.f32.mrb[0].mxu0
        %v1960 = vpop.f32.mrb[0].mxu0
        %v1961 = vadd.f32 0.0, %v1960
        %v1962 = vpop.f32.mrb[0].mxu0
        %1963 = vmatprep.mubr.bf16.mxu0 0
        %1964 = vmatmul.mubr.bf16.gmra.mrb[0].mxu0 %v506
        %v1965 = vpop.f32.mrb[0].mxu0
        %v1966 = vadd.f32 0.0, %v1965
        %v1967 = vpop.f32.mrb[0].mxu0
        %v1968 = vpop.f32.mrb[0].mxu0
        %v1969 = vadd.f32 0.0, %v1968
        %v1970 = vpop.f32.mrb[0].mxu0
        %1971 = vmatprep.mubr.bf16.mxu0 0
        %1972 = vmatmul.mubr.bf16.gmra.mrb[0].mxu0 %v509
        %v1973 = vpop.f32.mrb[0].mxu0
        %v1974 = vadd.f32 0.0, %v1973
        %v1975 = vpop.f32.mrb[0].mxu0
        %v1976 = vpop.f32.mrb[0].mxu0
        %v1977 = vadd.f32 0.0, %v1976
        %v1978 = vpop.f32.mrb[0].mxu0
        %1979 = vmatprep.mubr.bf16.mxu0 0
        %1980 = vmatmul.mubr.bf16.gmra.mrb[0].mxu0 %v1822
        %v1981 = vpop.f32.mrb[0].mxu0
        %v1982 = vadd.f32 0.0, %v1981
        %v1983 = vpop.f32.mrb[0].mxu0
        %v1984 = vpop.f32.mrb[0].mxu0
        %v1985 = vadd.f32 0.0, %v1984
        %v1986 = vpop.f32.mrb[0].mxu0
        %1987 = vdwg.mxu0
        %v1988 = vadd.f32 %v1782, %v1862
        %v1989 = vadd.f32 %v1783, %v1865
        %v1990 = vadd.f32 %v1784, %v1870
        %v1991 = vadd.f32 %v1785, %v1873
        %v1992 = vadd.f32 %v1786, %v1878
        %v1993 = vadd.f32 %v1787, %v1881
        %v1994 = vadd.f32 %v1788, %v1886
        %v1995 = vadd.f32 %v1789, %v1889
        %v1996 = vadd.f32 %v1790, %v1894
        %v1997 = vadd.f32 %v1791, %v1897
        %v1998 = vadd.f32 %v1792, %v1902
        %v1999 = vadd.f32 %v1793, %v1905
        %v2000 = vadd.f32 %v1794, %v1910
        %v2001 = vadd.f32 %v1795, %v1913
        %v2002 = vadd.f32 %v1796, %v1918
        %v2003 = vadd.f32 %v1797, %v1921
        %v2004 = vadd.f32 %v1798, %v1926
        %v2005 = vadd.f32 %v1799, %v1929
        %v2006 = vadd.f32 %v1800, %v1934
        %v2007 = vadd.f32 %v1801, %v1937
        %v2008 = vadd.f32 %v1802, %v1942
        %v2009 = vadd.f32 %v1803, %v1945
        %v2010 = vadd.f32 %v1804, %v1950
        %v2011 = vadd.f32 %v1805, %v1953
        %v2012 = vadd.f32 %v1806, %v1958
        %v2013 = vadd.f32 %v1807, %v1961
        %v2014 = vadd.f32 %v1808, %v1966
        %v2015 = vadd.f32 %v1809, %v1969
        %v2016 = vadd.f32 %v1810, %v1974
        %v2017 = vadd.f32 %v1811, %v1977
        %v2018 = vadd.f32 %v1812, %v1982
        %v2019 = vadd.f32 %v1813, %v1985
        %v2021 = vshrl.u32 %v343, 16
        %v2023 = vrot.slane %v2021, 4
        %v2024 = vshll.u32 %v343, 16
        %v2026 = vrot.slane %v2024, 5
        %v2027 = vor.u32 %v2023, %v2026
        %v2028 = vrot.slane %v2027, 4
        %v2030 = vshll.u32 %v344, 16
        %v2032 = vrot.slane %v2030, 5
        %v2033 = vsel %vm710, %v2028, %v2032
        %v2034 = vshrl.u32 %v344, 16
        %v2036 = vrot.slane %v2034, 4
        %v2037 = vor.u32 %v2036, %v2032
        %v2038 = vrot.slane %v2037, 4
        %v2040 = vshll.u32 %v345, 16
        %v2042 = vrot.slane %v2040, 5
        %v2043 = vsel %vm710, %v2038, %v2042
        %s2044 = scalar_lea.vmem [#allocation6], 8
        %v2045 = vld [vmem:[%s2044] sm:$0x3]
        %v2046 = vunpack.c.l.b16 %v2033
        %v2047 = vunpack.c.l.b16 %v2043
        %v2048 = vpack.c.b16 %v2047, %v2046
        %v2050 = vsel %vm462, %v2048, 0
        %v2053 = vsel %vm511, %v2045, 0
        %2055 = vmatprep.subr.bf16.mxu0 0
        %2056 = vmatpush1.bf16.msra.mxu0 %v2053
        %2057 = vmatprep.subr.bf16.mxu0 0
        %2058 = vmatpush1.bf16.msra.mxu0 0
        %2059 = vmatprep.subr.bf16.mxu0 0
        %2060 = vmatpush1.bf16.msra.mxu0 0
        %2061 = vmatprep.subr.bf16.mxu0 0
        %2062 = vmatpush1.bf16.msra.mxu0 0
        %2063 = vmatprep.subr.bf16.mxu0 0
        %2064 = vmatpush1.bf16.msra.mxu0 0
        %2065 = vmatprep.subr.bf16.mxu0 0
        %2066 = vmatpush1.bf16.msra.mxu0 0
        %2067 = vmatprep.subr.bf16.mxu0 0
        %2068 = vmatpush1.bf16.msra.mxu0 0
        %2069 = vmatprep.subr.bf16.mxu0 0
        %2070 = vmatpush1.bf16.msra.mxu0 0
        %2071 = vmatprep.subr.bf16.mxu0 0
        %2072 = vmatpush1.bf16.msra.mxu0 0
        %2073 = vmatprep.subr.bf16.mxu0 0
        %2074 = vmatpush1.bf16.msra.mxu0 0
        %2075 = vmatprep.subr.bf16.mxu0 0
        %2076 = vmatpush1.bf16.msra.mxu0 0
        %2077 = vmatprep.subr.bf16.mxu0 0
        %2078 = vmatpush1.bf16.msra.mxu0 0
        %2079 = vmatprep.subr.bf16.mxu0 0
        %2080 = vmatpush1.bf16.msra.mxu0 0
        %2081 = vmatprep.subr.bf16.mxu0 0
        %2082 = vmatpush1.bf16.msra.mxu0 0
        %2083 = vmatprep.subr.bf16.mxu0 0
        %2084 = vmatpush1.bf16.msra.mxu0 0
        %2085 = vmatprep.subr.bf16.mxu0 0
        %2086 = vmatpush1.bf16.msra.mxu0 0
        %2087 = vmatprep.mubr.bf16.mxu0 0
        %2088 = vmatmul.mubr.bf16.gmra.mrb[0].mxu0 %v1149
        %v2089 = vpop.f32.mrb[0].mxu0
        %v2090 = vadd.f32 0.0, %v2089
        %v2091 = vpop.f32.mrb[0].mxu0
        %v2092 = vpop.f32.mrb[0].mxu0
        %v2093 = vadd.f32 0.0, %v2092
        %v2094 = vpop.f32.mrb[0].mxu0
        %2095 = vmatprep.mubr.bf16.mxu0 0
        %2096 = vmatmul.mubr.bf16.gmra.mrb[0].mxu0 %v1152
        %v2097 = vpop.f32.mrb[0].mxu0
        %v2098 = vadd.f32 0.0, %v2097
        %v2099 = vpop.f32.mrb[0].mxu0
        %v2100 = vpop.f32.mrb[0].mxu0
        %v2101 = vadd.f32 0.0, %v2100
        %v2102 = vpop.f32.mrb[0].mxu0
        %2103 = vmatprep.mubr.bf16.mxu0 0
        %2104 = vmatmul.mubr.bf16.gmra.mrb[0].mxu0 %v1155
        %v2105 = vpop.f32.mrb[0].mxu0
        %v2106 = vadd.f32 0.0, %v2105
        %v2107 = vpop.f32.mrb[0].mxu0
        %v2108 = vpop.f32.mrb[0].mxu0
        %v2109 = vadd.f32 0.0, %v2108
        %v2110 = vpop.f32.mrb[0].mxu0
        %2111 = vmatprep.mubr.bf16.mxu0 0
        %2112 = vmatmul.mubr.bf16.gmra.mrb[0].mxu0 %v1158
        %v2113 = vpop.f32.mrb[0].mxu0
        %v2114 = vadd.f32 0.0, %v2113
        %v2115 = vpop.f32.mrb[0].mxu0
        %v2116 = vpop.f32.mrb[0].mxu0
        %v2117 = vadd.f32 0.0, %v2116
        %v2118 = vpop.f32.mrb[0].mxu0
        %2119 = vmatprep.mubr.bf16.mxu0 0
        %2120 = vmatmul.mubr.bf16.gmra.mrb[0].mxu0 %v1161
        %v2121 = vpop.f32.mrb[0].mxu0
        %v2122 = vadd.f32 0.0, %v2121
        %v2123 = vpop.f32.mrb[0].mxu0
        %v2124 = vpop.f32.mrb[0].mxu0
        %v2125 = vadd.f32 0.0, %v2124
        %v2126 = vpop.f32.mrb[0].mxu0
        %2127 = vmatprep.mubr.bf16.mxu0 0
        %2128 = vmatmul.mubr.bf16.gmra.mrb[0].mxu0 %v1164
        %v2129 = vpop.f32.mrb[0].mxu0
        %v2130 = vadd.f32 0.0, %v2129
        %v2131 = vpop.f32.mrb[0].mxu0
        %v2132 = vpop.f32.mrb[0].mxu0
        %v2133 = vadd.f32 0.0, %v2132
        %v2134 = vpop.f32.mrb[0].mxu0
        %2135 = vmatprep.mubr.bf16.mxu0 0
        %2136 = vmatmul.mubr.bf16.gmra.mrb[0].mxu0 %v1167
        %v2137 = vpop.f32.mrb[0].mxu0
        %v2138 = vadd.f32 0.0, %v2137
        %v2139 = vpop.f32.mrb[0].mxu0
        %v2140 = vpop.f32.mrb[0].mxu0
        %v2141 = vadd.f32 0.0, %v2140
        %v2142 = vpop.f32.mrb[0].mxu0
        %2143 = vmatprep.mubr.bf16.mxu0 0
        %2144 = vmatmul.mubr.bf16.gmra.mrb[0].mxu0 %v1170
        %v2145 = vpop.f32.mrb[0].mxu0
        %v2146 = vadd.f32 0.0, %v2145
        %v2147 = vpop.f32.mrb[0].mxu0
        %v2148 = vpop.f32.mrb[0].mxu0
        %v2149 = vadd.f32 0.0, %v2148
        %v2150 = vpop.f32.mrb[0].mxu0
        %2151 = vmatprep.mubr.bf16.mxu0 0
        %2152 = vmatmul.mubr.bf16.gmra.mrb[0].mxu0 %v1173
        %v2153 = vpop.f32.mrb[0].mxu0
        %v2154 = vadd.f32 0.0, %v2153
        %v2155 = vpop.f32.mrb[0].mxu0
        %v2156 = vpop.f32.mrb[0].mxu0
        %v2157 = vadd.f32 0.0, %v2156
        %v2158 = vpop.f32.mrb[0].mxu0
        %2159 = vmatprep.mubr.bf16.mxu0 0
        %2160 = vmatmul.mubr.bf16.gmra.mrb[0].mxu0 %v1176
        %v2161 = vpop.f32.mrb[0].mxu0
        %v2162 = vadd.f32 0.0, %v2161
        %v2163 = vpop.f32.mrb[0].mxu0
        %v2164 = vpop.f32.mrb[0].mxu0
        %v2165 = vadd.f32 0.0, %v2164
        %v2166 = vpop.f32.mrb[0].mxu0
        %2167 = vmatprep.mubr.bf16.mxu0 0
        %2168 = vmatmul.mubr.bf16.gmra.mrb[0].mxu0 %v1179
        %v2169 = vpop.f32.mrb[0].mxu0
        %v2170 = vadd.f32 0.0, %v2169
        %v2171 = vpop.f32.mrb[0].mxu0
        %v2172 = vpop.f32.mrb[0].mxu0
        %v2173 = vadd.f32 0.0, %v2172
        %v2174 = vpop.f32.mrb[0].mxu0
        %2175 = vmatprep.mubr.bf16.mxu0 0
        %2176 = vmatmul.mubr.bf16.gmra.mrb[0].mxu0 %v1182
        %v2177 = vpop.f32.mrb[0].mxu0
        %v2178 = vadd.f32 0.0, %v2177
        %v2179 = vpop.f32.mrb[0].mxu0
        %v2180 = vpop.f32.mrb[0].mxu0
        %v2181 = vadd.f32 0.0, %v2180
        %v2182 = vpop.f32.mrb[0].mxu0
        %2183 = vmatprep.mubr.bf16.mxu0 0
        %2184 = vmatmul.mubr.bf16.gmra.mrb[0].mxu0 %v1185
        %v2185 = vpop.f32.mrb[0].mxu0
        %v2186 = vadd.f32 0.0, %v2185
        %v2187 = vpop.f32.mrb[0].mxu0
        %v2188 = vpop.f32.mrb[0].mxu0
        %v2189 = vadd.f32 0.0, %v2188
        %v2190 = vpop.f32.mrb[0].mxu0
        %2191 = vmatprep.mubr.bf16.mxu0 0
        %2192 = vmatmul.mubr.bf16.gmra.mrb[0].mxu0 %v1188
        %v2193 = vpop.f32.mrb[0].mxu0
        %v2194 = vadd.f32 0.0, %v2193
        %v2195 = vpop.f32.mrb[0].mxu0
        %v2196 = vpop.f32.mrb[0].mxu0
        %v2197 = vadd.f32 0.0, %v2196
        %v2198 = vpop.f32.mrb[0].mxu0
        %2199 = vmatprep.mubr.bf16.mxu0 0
        %2200 = vmatmul.mubr.bf16.gmra.mrb[0].mxu0 %v1191
        %v2201 = vpop.f32.mrb[0].mxu0
        %v2202 = vadd.f32 0.0, %v2201
        %v2203 = vpop.f32.mrb[0].mxu0
        %v2204 = vpop.f32.mrb[0].mxu0
        %v2205 = vadd.f32 0.0, %v2204
        %v2206 = vpop.f32.mrb[0].mxu0
        %2207 = vmatprep.mubr.bf16.mxu0 0
        %2208 = vmatmul.mubr.bf16.gmra.mrb[0].mxu0 %v2050
        %v2209 = vpop.f32.mrb[0].mxu0
        %v2210 = vadd.f32 0.0, %v2209
        %v2211 = vpop.f32.mrb[0].mxu0
        %v2212 = vpop.f32.mrb[0].mxu0
        %v2213 = vadd.f32 0.0, %v2212
        %v2214 = vpop.f32.mrb[0].mxu0
        %2215 = vdwg.mxu0
        %v2216 = vadd.f32 %v1988, %v2090
        %v2217 = vadd.f32 %v1989, %v2093
        %v2218 = vadd.f32 %v1990, %v2098
        %v2219 = vadd.f32 %v1991, %v2101
        %v2220 = vadd.f32 %v1992, %v2106
        %v2221 = vadd.f32 %v1993, %v2109
        %v2222 = vadd.f32 %v1994, %v2114
        %v2223 = vadd.f32 %v1995, %v2117
        %v2224 = vadd.f32 %v1996, %v2122
        %v2225 = vadd.f32 %v1997, %v2125
        %v2226 = vadd.f32 %v1998, %v2130
        %v2227 = vadd.f32 %v1999, %v2133
        %v2228 = vadd.f32 %v2000, %v2138
        %v2229 = vadd.f32 %v2001, %v2141
        %v2230 = vadd.f32 %v2002, %v2146
        %v2231 = vadd.f32 %v2003, %v2149
        %v2232 = vadd.f32 %v2004, %v2154
        %v2233 = vadd.f32 %v2005, %v2157
        %v2234 = vadd.f32 %v2006, %v2162
        %v2235 = vadd.f32 %v2007, %v2165
        %v2236 = vadd.f32 %v2008, %v2170
        %v2237 = vadd.f32 %v2009, %v2173
        %v2238 = vadd.f32 %v2010, %v2178
        %v2239 = vadd.f32 %v2011, %v2181
        %v2240 = vadd.f32 %v2012, %v2186
        %v2241 = vadd.f32 %v2013, %v2189
        %v2242 = vadd.f32 %v2014, %v2194
        %v2243 = vadd.f32 %v2015, %v2197
        %v2244 = vadd.f32 %v2016, %v2202
        %v2245 = vadd.f32 %v2017, %v2205
        %v2246 = vadd.f32 %v2018, %v2210
        %v2247 = vadd.f32 %v2019, %v2213
        %v2249 = vrot.slane %v343, 5
        %v2250 = vrot.slane %v2249, 4
        %v2251 = vrot.slane %v344, 5
        %v2252 = vsel %vm1407, %v2250, %v2251
        %v2253 = vrot.slane %v2251, 4
        %v2254 = vrot.slane %v345, 5
        %v2255 = vsel %vm1407, %v2253, %v2254
        %s2256 = scalar_lea.vmem [#allocation6], 10
        %v2257 = vld [vmem:[%s2256] sm:$0x3]
        %v2258 = vunpack.c.l.b16 %v2252
        %v2259 = vunpack.c.l.b16 %v2255
        %v2260 = vpack.c.b16 %v2259, %v2258
        %v2262 = vsel %vm462, %v2260, 0
        %v2265 = vsel %vm511, %v2257, 0
        %2267 = vmatprep.subr.bf16.mxu0 0
        %2268 = vmatpush1.bf16.msra.mxu0 %v2265
        %2269 = vmatprep.subr.bf16.mxu0 0
        %2270 = vmatpush1.bf16.msra.mxu0 0
        %2271 = vmatprep.subr.bf16.mxu0 0
        %2272 = vmatpush1.bf16.msra.mxu0 0
        %2273 = vmatprep.subr.bf16.mxu0 0
        %2274 = vmatpush1.bf16.msra.mxu0 0
        %2275 = vmatprep.subr.bf16.mxu0 0
        %2276 = vmatpush1.bf16.msra.mxu0 0
        %2277 = vmatprep.subr.bf16.mxu0 0
        %2278 = vmatpush1.bf16.msra.mxu0 0
        %2279 = vmatprep.subr.bf16.mxu0 0
        %2280 = vmatpush1.bf16.msra.mxu0 0
        %2281 = vmatprep.subr.bf16.mxu0 0
        %2282 = vmatpush1.bf16.msra.mxu0 0
        %2283 = vmatprep.subr.bf16.mxu0 0
        %2284 = vmatpush1.bf16.msra.mxu0 0
        %2285 = vmatprep.subr.bf16.mxu0 0
        %2286 = vmatpush1.bf16.msra.mxu0 0
        %2287 = vmatprep.subr.bf16.mxu0 0
        %2288 = vmatpush1.bf16.msra.mxu0 0
        %2289 = vmatprep.subr.bf16.mxu0 0
        %2290 = vmatpush1.bf16.msra.mxu0 0
        %2291 = vmatprep.subr.bf16.mxu0 0
        %2292 = vmatpush1.bf16.msra.mxu0 0
        %2293 = vmatprep.subr.bf16.mxu0 0
        %2294 = vmatpush1.bf16.msra.mxu0 0
        %2295 = vmatprep.subr.bf16.mxu0 0
        %2296 = vmatpush1.bf16.msra.mxu0 0
        %2297 = vmatprep.subr.bf16.mxu0 0
        %2298 = vmatpush1.bf16.msra.mxu0 0
        %2299 = vmatprep.mubr.bf16.mxu0 0
        %2300 = vmatmul.mubr.bf16.gmra.mrb[0].mxu0 %v1574
        %v2301 = vpop.f32.mrb[0].mxu0
        %v2302 = vadd.f32 0.0, %v2301
        %v2303 = vpop.f32.mrb[0].mxu0
        %v2304 = vpop.f32.mrb[0].mxu0
        %v2305 = vadd.f32 0.0, %v2304
        %v2306 = vpop.f32.mrb[0].mxu0
        %2307 = vmatprep.mubr.bf16.mxu0 0
        %2308 = vmatmul.mubr.bf16.gmra.mrb[0].mxu0 %v1577
        %v2309 = vpop.f32.mrb[0].mxu0
        %v2310 = vadd.f32 0.0, %v2309
        %v2311 = vpop.f32.mrb[0].mxu0
        %v2312 = vpop.f32.mrb[0].mxu0
        %v2313 = vadd.f32 0.0, %v2312
        %v2314 = vpop.f32.mrb[0].mxu0
        %2315 = vmatprep.mubr.bf16.mxu0 0
        %2316 = vmatmul.mubr.bf16.gmra.mrb[0].mxu0 %v1580
        %v2317 = vpop.f32.mrb[0].mxu0
        %v2318 = vadd.f32 0.0, %v2317
        %v2319 = vpop.f32.mrb[0].mxu0
        %v2320 = vpop.f32.mrb[0].mxu0
        %v2321 = vadd.f32 0.0, %v2320
        %v2322 = vpop.f32.mrb[0].mxu0
        %2323 = vmatprep.mubr.bf16.mxu0 0
        %2324 = vmatmul.mubr.bf16.gmra.mrb[0].mxu0 %v1583
        %v2325 = vpop.f32.mrb[0].mxu0
        %v2326 = vadd.f32 0.0, %v2325
        %v2327 = vpop.f32.mrb[0].mxu0
        %v2328 = vpop.f32.mrb[0].mxu0
        %v2329 = vadd.f32 0.0, %v2328
        %v2330 = vpop.f32.mrb[0].mxu0
        %2331 = vmatprep.mubr.bf16.mxu0 0
        %2332 = vmatmul.mubr.bf16.gmra.mrb[0].mxu0 %v1586
        %v2333 = vpop.f32.mrb[0].mxu0
        %v2334 = vadd.f32 0.0, %v2333
        %v2335 = vpop.f32.mrb[0].mxu0
        %v2336 = vpop.f32.mrb[0].mxu0
        %v2337 = vadd.f32 0.0, %v2336
        %v2338 = vpop.f32.mrb[0].mxu0
        %2339 = vmatprep.mubr.bf16.mxu0 0
        %2340 = vmatmul.mubr.bf16.gmra.mrb[0].mxu0 %v1589
        %v2341 = vpop.f32.mrb[0].mxu0
        %v2342 = vadd.f32 0.0, %v2341
        %v2343 = vpop.f32.mrb[0].mxu0
        %v2344 = vpop.f32.mrb[0].mxu0
        %v2345 = vadd.f32 0.0, %v2344
        %v2346 = vpop.f32.mrb[0].mxu0
        %2347 = vmatprep.mubr.bf16.mxu0 0
        %2348 = vmatmul.mubr.bf16.gmra.mrb[0].mxu0 %v1592
        %v2349 = vpop.f32.mrb[0].mxu0
        %v2350 = vadd.f32 0.0, %v2349
        %v2351 = vpop.f32.mrb[0].mxu0
        %v2352 = vpop.f32.mrb[0].mxu0
        %v2353 = vadd.f32 0.0, %v2352
        %v2354 = vpop.f32.mrb[0].mxu0
        %2355 = vmatprep.mubr.bf16.mxu0 0
        %2356 = vmatmul.mubr.bf16.gmra.mrb[0].mxu0 %v1595
        %v2357 = vpop.f32.mrb[0].mxu0
        %v2358 = vadd.f32 0.0, %v2357
        %v2359 = vpop.f32.mrb[0].mxu0
        %v2360 = vpop.f32.mrb[0].mxu0
        %v2361 = vadd.f32 0.0, %v2360
        %v2362 = vpop.f32.mrb[0].mxu0
        %2363 = vmatprep.mubr.bf16.mxu0 0
        %2364 = vmatmul.mubr.bf16.gmra.mrb[0].mxu0 %v1598
        %v2365 = vpop.f32.mrb[0].mxu0
        %v2366 = vadd.f32 0.0, %v2365
        %v2367 = vpop.f32.mrb[0].mxu0
        %v2368 = vpop.f32.mrb[0].mxu0
        %v2369 = vadd.f32 0.0, %v2368
        %v2370 = vpop.f32.mrb[0].mxu0
        %2371 = vmatprep.mubr.bf16.mxu0 0
        %2372 = vmatmul.mubr.bf16.gmra.mrb[0].mxu0 %v1601
        %v2373 = vpop.f32.mrb[0].mxu0
        %v2374 = vadd.f32 0.0, %v2373
        %v2375 = vpop.f32.mrb[0].mxu0
        %v2376 = vpop.f32.mrb[0].mxu0
        %v2377 = vadd.f32 0.0, %v2376
        %v2378 = vpop.f32.mrb[0].mxu0
        %2379 = vmatprep.mubr.bf16.mxu0 0
        %2380 = vmatmul.mubr.bf16.gmra.mrb[0].mxu0 %v1604
        %v2381 = vpop.f32.mrb[0].mxu0
        %v2382 = vadd.f32 0.0, %v2381
        %v2383 = vpop.f32.mrb[0].mxu0
        %v2384 = vpop.f32.mrb[0].mxu0
        %v2385 = vadd.f32 0.0, %v2384
        %v2386 = vpop.f32.mrb[0].mxu0
        %2387 = vmatprep.mubr.bf16.mxu0 0
        %2388 = vmatmul.mubr.bf16.gmra.mrb[0].mxu0 %v1607
        %v2389 = vpop.f32.mrb[0].mxu0
        %v2390 = vadd.f32 0.0, %v2389
        %v2391 = vpop.f32.mrb[0].mxu0
        %v2392 = vpop.f32.mrb[0].mxu0
        %v2393 = vadd.f32 0.0, %v2392
        %v2394 = vpop.f32.mrb[0].mxu0
        %2395 = vmatprep.mubr.bf16.mxu0 0
        %2396 = vmatmul.mubr.bf16.gmra.mrb[0].mxu0 %v1610
        %v2397 = vpop.f32.mrb[0].mxu0
        %v2398 = vadd.f32 0.0, %v2397
        %v2399 = vpop.f32.mrb[0].mxu0
        %v2400 = vpop.f32.mrb[0].mxu0
        %v2401 = vadd.f32 0.0, %v2400
        %v2402 = vpop.f32.mrb[0].mxu0
        %2403 = vmatprep.mubr.bf16.mxu0 0
        %2404 = vmatmul.mubr.bf16.gmra.mrb[0].mxu0 %v1613
        %v2405 = vpop.f32.mrb[0].mxu0
        %v2406 = vadd.f32 0.0, %v2405
        %v2407 = vpop.f32.mrb[0].mxu0
        %v2408 = vpop.f32.mrb[0].mxu0
        %v2409 = vadd.f32 0.0, %v2408
        %v2410 = vpop.f32.mrb[0].mxu0
        %2411 = vmatprep.mubr.bf16.mxu0 0
        %2412 = vmatmul.mubr.bf16.gmra.mrb[0].mxu0 %v1616
        %v2413 = vpop.f32.mrb[0].mxu0
        %v2414 = vadd.f32 0.0, %v2413
        %v2415 = vpop.f32.mrb[0].mxu0
        %v2416 = vpop.f32.mrb[0].mxu0
        %v2417 = vadd.f32 0.0, %v2416
        %v2418 = vpop.f32.mrb[0].mxu0
        %2419 = vmatprep.mubr.bf16.mxu0 0
        %2420 = vmatmul.mubr.bf16.gmra.mrb[0].mxu0 %v2262
        %v2421 = vpop.f32.mrb[0].mxu0
        %v2422 = vadd.f32 0.0, %v2421
        %v2423 = vpop.f32.mrb[0].mxu0
        %v2424 = vpop.f32.mrb[0].mxu0
        %v2425 = vadd.f32 0.0, %v2424
        %v2426 = vpop.f32.mrb[0].mxu0
        %2427 = vdwg.mxu0
        %v2428 = vadd.f32 %v2216, %v2302
        %v2429 = vadd.f32 %v2217, %v2305
        %v2430 = vadd.f32 %v2218, %v2310
        %v2431 = vadd.f32 %v2219, %v2313
        %v2432 = vadd.f32 %v2220, %v2318
        %v2433 = vadd.f32 %v2221, %v2321
        %v2434 = vadd.f32 %v2222, %v2326
        %v2435 = vadd.f32 %v2223, %v2329
        %v2436 = vadd.f32 %v2224, %v2334
        %v2437 = vadd.f32 %v2225, %v2337
        %v2438 = vadd.f32 %v2226, %v2342
        %v2439 = vadd.f32 %v2227, %v2345
        %v2440 = vadd.f32 %v2228, %v2350
        %v2441 = vadd.f32 %v2229, %v2353
        %v2442 = vadd.f32 %v2230, %v2358
        %v2443 = vadd.f32 %v2231, %v2361
        %v2444 = vadd.f32 %v2232, %v2366
        %v2445 = vadd.f32 %v2233, %v2369
        %v2446 = vadd.f32 %v2234, %v2374
        %v2447 = vadd.f32 %v2235, %v2377
        %v2448 = vadd.f32 %v2236, %v2382
        %v2449 = vadd.f32 %v2237, %v2385
        %v2450 = vadd.f32 %v2238, %v2390
        %v2451 = vadd.f32 %v2239, %v2393
        %v2452 = vadd.f32 %v2240, %v2398
        %v2453 = vadd.f32 %v2241, %v2401
        %v2454 = vadd.f32 %v2242, %v2406
        %v2455 = vadd.f32 %v2243, %v2409
        %v2456 = vadd.f32 %v2244, %v2414
        %v2457 = vadd.f32 %v2245, %v2417
        %v2458 = vadd.f32 %v2246, %v2422
        %v2459 = vadd.f32 %v2247, %v2425
        %s2460 = scalar_lea.vmem [#allocation6], 12
        %v2461 = vld [vmem:[%s2460] sm:$0x3]
        %v2464 = vunpack.c.l.b16 %v346
        %v2465 = vunpack.c.l.b16 %v347
        %v2466 = vpack.c.b16 %v2465, %v2464
        %v2468 = vsel %vm462, %v2466, 0
        %v2471 = vsel %vm511, %v2461, 0
        %2473 = vmatprep.subr.bf16.mxu0 0
        %2474 = vmatpush1.bf16.msra.mxu0 %v2471
        %2475 = vmatprep.subr.bf16.mxu0 0
        %2476 = vmatpush1.bf16.msra.mxu0 0
        %2477 = vmatprep.subr.bf16.mxu0 0
        %2478 = vmatpush1.bf16.msra.mxu0 0
        %2479 = vmatprep.subr.bf16.mxu0 0
        %2480 = vmatpush1.bf16.msra.mxu0 0
        %2481 = vmatprep.subr.bf16.mxu0 0
        %2482 = vmatpush1.bf16.msra.mxu0 0
        %2483 = vmatprep.subr.bf16.mxu0 0
        %2484 = vmatpush1.bf16.msra.mxu0 0
        %2485 = vmatprep.subr.bf16.mxu0 0
        %2486 = vmatpush1.bf16.msra.mxu0 0
        %2487 = vmatprep.subr.bf16.mxu0 0
        %2488 = vmatpush1.bf16.msra.mxu0 0
        %2489 = vmatprep.subr.bf16.mxu0 0
        %2490 = vmatpush1.bf16.msra.mxu0 0
        %2491 = vmatprep.subr.bf16.mxu0 0
        %2492 = vmatpush1.bf16.msra.mxu0 0
        %2493 = vmatprep.subr.bf16.mxu0 0
        %2494 = vmatpush1.bf16.msra.mxu0 0
        %2495 = vmatprep.subr.bf16.mxu0 0
        %2496 = vmatpush1.bf16.msra.mxu0 0
        %2497 = vmatprep.subr.bf16.mxu0 0
        %2498 = vmatpush1.bf16.msra.mxu0 0
        %2499 = vmatprep.subr.bf16.mxu0 0
        %2500 = vmatpush1.bf16.msra.mxu0 0
        %2501 = vmatprep.subr.bf16.mxu0 0
        %2502 = vmatpush1.bf16.msra.mxu0 0
        %2503 = vmatprep.subr.bf16.mxu0 0
        %2504 = vmatpush1.bf16.msra.mxu0 0
        %2505 = vmatprep.mubr.bf16.mxu0 0
        %2506 = vmatmul.mubr.bf16.gmra.mrb[0].mxu0 %v470
        %v2507 = vpop.f32.mrb[0].mxu0
        %v2508 = vadd.f32 0.0, %v2507
        %v2509 = vpop.f32.mrb[0].mxu0
        %v2510 = vpop.f32.mrb[0].mxu0
        %v2511 = vadd.f32 0.0, %v2510
        %v2512 = vpop.f32.mrb[0].mxu0
        %2513 = vmatprep.mubr.bf16.mxu0 0
        %2514 = vmatmul.mubr.bf16.gmra.mrb[0].mxu0 %v473
        %v2515 = vpop.f32.mrb[0].mxu0
        %v2516 = vadd.f32 0.0, %v2515
        %v2517 = vpop.f32.mrb[0].mxu0
        %v2518 = vpop.f32.mrb[0].mxu0
        %v2519 = vadd.f32 0.0, %v2518
        %v2520 = vpop.f32.mrb[0].mxu0
        %2521 = vmatprep.mubr.bf16.mxu0 0
        %2522 = vmatmul.mubr.bf16.gmra.mrb[0].mxu0 %v476
        %v2523 = vpop.f32.mrb[0].mxu0
        %v2524 = vadd.f32 0.0, %v2523
        %v2525 = vpop.f32.mrb[0].mxu0
        %v2526 = vpop.f32.mrb[0].mxu0
        %v2527 = vadd.f32 0.0, %v2526
        %v2528 = vpop.f32.mrb[0].mxu0
        %2529 = vmatprep.mubr.bf16.mxu0 0
        %2530 = vmatmul.mubr.bf16.gmra.mrb[0].mxu0 %v479
        %v2531 = vpop.f32.mrb[0].mxu0
        %v2532 = vadd.f32 0.0, %v2531
        %v2533 = vpop.f32.mrb[0].mxu0
        %v2534 = vpop.f32.mrb[0].mxu0
        %v2535 = vadd.f32 0.0, %v2534
        %v2536 = vpop.f32.mrb[0].mxu0
        %2537 = vmatprep.mubr.bf16.mxu0 0
        %2538 = vmatmul.mubr.bf16.gmra.mrb[0].mxu0 %v482
        %v2539 = vpop.f32.mrb[0].mxu0
        %v2540 = vadd.f32 0.0, %v2539
        %v2541 = vpop.f32.mrb[0].mxu0
        %v2542 = vpop.f32.mrb[0].mxu0
        %v2543 = vadd.f32 0.0, %v2542
        %v2544 = vpop.f32.mrb[0].mxu0
        %2545 = vmatprep.mubr.bf16.mxu0 0
        %2546 = vmatmul.mubr.bf16.gmra.mrb[0].mxu0 %v485
        %v2547 = vpop.f32.mrb[0].mxu0
        %v2548 = vadd.f32 0.0, %v2547
        %v2549 = vpop.f32.mrb[0].mxu0
        %v2550 = vpop.f32.mrb[0].mxu0
        %v2551 = vadd.f32 0.0, %v2550
        %v2552 = vpop.f32.mrb[0].mxu0
        %2553 = vmatprep.mubr.bf16.mxu0 0
        %2554 = vmatmul.mubr.bf16.gmra.mrb[0].mxu0 %v488
        %v2555 = vpop.f32.mrb[0].mxu0
        %v2556 = vadd.f32 0.0, %v2555
        %v2557 = vpop.f32.mrb[0].mxu0
        %v2558 = vpop.f32.mrb[0].mxu0
        %v2559 = vadd.f32 0.0, %v2558
        %v2560 = vpop.f32.mrb[0].mxu0
        %2561 = vmatprep.mubr.bf16.mxu0 0
        %2562 = vmatmul.mubr.bf16.gmra.mrb[0].mxu0 %v491
        %v2563 = vpop.f32.mrb[0].mxu0
        %v2564 = vadd.f32 0.0, %v2563
        %v2565 = vpop.f32.mrb[0].mxu0
        %v2566 = vpop.f32.mrb[0].mxu0
        %v2567 = vadd.f32 0.0, %v2566
        %v2568 = vpop.f32.mrb[0].mxu0
        %2569 = vmatprep.mubr.bf16.mxu0 0
        %2570 = vmatmul.mubr.bf16.gmra.mrb[0].mxu0 %v494
        %v2571 = vpop.f32.mrb[0].mxu0
        %v2572 = vadd.f32 0.0, %v2571
        %v2573 = vpop.f32.mrb[0].mxu0
        %v2574 = vpop.f32.mrb[0].mxu0
        %v2575 = vadd.f32 0.0, %v2574
        %v2576 = vpop.f32.mrb[0].mxu0
        %2577 = vmatprep.mubr.bf16.mxu0 0
        %2578 = vmatmul.mubr.bf16.gmra.mrb[0].mxu0 %v497
        %v2579 = vpop.f32.mrb[0].mxu0
        %v2580 = vadd.f32 0.0, %v2579
        %v2581 = vpop.f32.mrb[0].mxu0
        %v2582 = vpop.f32.mrb[0].mxu0
        %v2583 = vadd.f32 0.0, %v2582
        %v2584 = vpop.f32.mrb[0].mxu0
        %2585 = vmatprep.mubr.bf16.mxu0 0
        %2586 = vmatmul.mubr.bf16.gmra.mrb[0].mxu0 %v500
        %v2587 = vpop.f32.mrb[0].mxu0
        %v2588 = vadd.f32 0.0, %v2587
        %v2589 = vpop.f32.mrb[0].mxu0
        %v2590 = vpop.f32.mrb[0].mxu0
        %v2591 = vadd.f32 0.0, %v2590
        %v2592 = vpop.f32.mrb[0].mxu0
        %2593 = vmatprep.mubr.bf16.mxu0 0
        %2594 = vmatmul.mubr.bf16.gmra.mrb[0].mxu0 %v503
        %v2595 = vpop.f32.mrb[0].mxu0
        %v2596 = vadd.f32 0.0, %v2595
        %v2597 = vpop.f32.mrb[0].mxu0
        %v2598 = vpop.f32.mrb[0].mxu0
        %v2599 = vadd.f32 0.0, %v2598
        %v2600 = vpop.f32.mrb[0].mxu0
        %2601 = vmatprep.mubr.bf16.mxu0 0
        %2602 = vmatmul.mubr.bf16.gmra.mrb[0].mxu0 %v506
        %v2603 = vpop.f32.mrb[0].mxu0
        %v2604 = vadd.f32 0.0, %v2603
        %v2605 = vpop.f32.mrb[0].mxu0
        %v2606 = vpop.f32.mrb[0].mxu0
        %v2607 = vadd.f32 0.0, %v2606
        %v2608 = vpop.f32.mrb[0].mxu0
        %2609 = vmatprep.mubr.bf16.mxu0 0
        %2610 = vmatmul.mubr.bf16.gmra.mrb[0].mxu0 %v509
        %v2611 = vpop.f32.mrb[0].mxu0
        %v2612 = vadd.f32 0.0, %v2611
        %v2613 = vpop.f32.mrb[0].mxu0
        %v2614 = vpop.f32.mrb[0].mxu0
        %v2615 = vadd.f32 0.0, %v2614
        %v2616 = vpop.f32.mrb[0].mxu0
        %2617 = vmatprep.mubr.bf16.mxu0 0
        %2618 = vmatmul.mubr.bf16.gmra.mrb[0].mxu0 %v1822
        %v2619 = vpop.f32.mrb[0].mxu0
        %v2620 = vadd.f32 0.0, %v2619
        %v2621 = vpop.f32.mrb[0].mxu0
        %v2622 = vpop.f32.mrb[0].mxu0
        %v2623 = vadd.f32 0.0, %v2622
        %v2624 = vpop.f32.mrb[0].mxu0
        %2625 = vmatprep.mubr.bf16.mxu0 0
        %2626 = vmatmul.mubr.bf16.gmra.mrb[0].mxu0 %v2468
        %v2627 = vpop.f32.mrb[0].mxu0
        %v2628 = vadd.f32 0.0, %v2627
        %v2629 = vpop.f32.mrb[0].mxu0
        %v2630 = vpop.f32.mrb[0].mxu0
        %v2631 = vadd.f32 0.0, %v2630
        %v2632 = vpop.f32.mrb[0].mxu0
        %2633 = vdwg.mxu0
        %v2634 = vadd.f32 %v2428, %v2508
        %v2635 = vadd.f32 %v2429, %v2511
        %v2636 = vadd.f32 %v2430, %v2516
        %v2637 = vadd.f32 %v2431, %v2519
        %v2638 = vadd.f32 %v2432, %v2524
        %v2639 = vadd.f32 %v2433, %v2527
        %v2640 = vadd.f32 %v2434, %v2532
        %v2641 = vadd.f32 %v2435, %v2535
        %v2642 = vadd.f32 %v2436, %v2540
        %v2643 = vadd.f32 %v2437, %v2543
        %v2644 = vadd.f32 %v2438, %v2548
        %v2645 = vadd.f32 %v2439, %v2551
        %v2646 = vadd.f32 %v2440, %v2556
        %v2647 = vadd.f32 %v2441, %v2559
        %v2648 = vadd.f32 %v2442, %v2564
        %v2649 = vadd.f32 %v2443, %v2567
        %v2650 = vadd.f32 %v2444, %v2572
        %v2651 = vadd.f32 %v2445, %v2575
        %v2652 = vadd.f32 %v2446, %v2580
        %v2653 = vadd.f32 %v2447, %v2583
        %v2654 = vadd.f32 %v2448, %v2588
        %v2655 = vadd.f32 %v2449, %v2591
        %v2656 = vadd.f32 %v2450, %v2596
        %v2657 = vadd.f32 %v2451, %v2599
        %v2658 = vadd.f32 %v2452, %v2604
        %v2659 = vadd.f32 %v2453, %v2607
        %v2660 = vadd.f32 %v2454, %v2612
        %v2661 = vadd.f32 %v2455, %v2615
        %v2662 = vadd.f32 %v2456, %v2620
        %v2663 = vadd.f32 %v2457, %v2623
        %v2664 = vadd.f32 %v2458, %v2628
        %v2665 = vadd.f32 %v2459, %v2631
        %v2667 = vshrl.u32 %v346, 16
        %v2669 = vrot.slane %v2667, 4
        %v2670 = vshll.u32 %v346, 16
        %v2672 = vrot.slane %v2670, 5
        %v2673 = vor.u32 %v2669, %v2672
        %v2674 = vrot.slane %v2673, 4
        %v2676 = vshll.u32 %v347, 16
        %v2678 = vrot.slane %v2676, 5
        %v2679 = vsel %vm710, %v2674, %v2678
        %v2680 = vshrl.u32 %v347, 16
        %v2682 = vrot.slane %v2680, 4
        %v2683 = vor.u32 %v2682, %v2678
        %v2684 = vrot.slane %v2683, 4
        %v2686 = vshll.u32 %v348, 16
        %v2688 = vrot.slane %v2686, 5
        %v2689 = vsel %vm710, %v2684, %v2688
        %s2690 = scalar_lea.vmem [#allocation6], 14
        %v2691 = vld [vmem:[%s2690] sm:$0x3]
        %v2692 = vunpack.c.l.b16 %v2679
        %v2693 = vunpack.c.l.b16 %v2689
        %v2694 = vpack.c.b16 %v2693, %v2692
        %v2696 = vsel %vm462, %v2694, 0
        %v2699 = vsel %vm511, %v2691, 0
        %2701 = vmatprep.subr.bf16.mxu0 0
        %2702 = vmatpush1.bf16.msra.mxu0 %v2699
        %2703 = vmatprep.subr.bf16.mxu0 0
        %2704 = vmatpush1.bf16.msra.mxu0 0
        %2705 = vmatprep.subr.bf16.mxu0 0
        %2706 = vmatpush1.bf16.msra.mxu0 0
        %2707 = vmatprep.subr.bf16.mxu0 0
        %2708 = vmatpush1.bf16.msra.mxu0 0
        %2709 = vmatprep.subr.bf16.mxu0 0
        %2710 = vmatpush1.bf16.msra.mxu0 0
        %2711 = vmatprep.subr.bf16.mxu0 0
        %2712 = vmatpush1.bf16.msra.mxu0 0
        %2713 = vmatprep.subr.bf16.mxu0 0
        %2714 = vmatpush1.bf16.msra.mxu0 0
        %2715 = vmatprep.subr.bf16.mxu0 0
        %2716 = vmatpush1.bf16.msra.mxu0 0
        %2717 = vmatprep.subr.bf16.mxu0 0
        %2718 = vmatpush1.bf16.msra.mxu0 0
        %2719 = vmatprep.subr.bf16.mxu0 0
        %2720 = vmatpush1.bf16.msra.mxu0 0
        %2721 = vmatprep.subr.bf16.mxu0 0
        %2722 = vmatpush1.bf16.msra.mxu0 0
        %2723 = vmatprep.subr.bf16.mxu0 0
        %2724 = vmatpush1.bf16.msra.mxu0 0
        %2725 = vmatprep.subr.bf16.mxu0 0
        %2726 = vmatpush1.bf16.msra.mxu0 0
        %2727 = vmatprep.subr.bf16.mxu0 0
        %2728 = vmatpush1.bf16.msra.mxu0 0
        %2729 = vmatprep.subr.bf16.mxu0 0
        %2730 = vmatpush1.bf16.msra.mxu0 0
        %2731 = vmatprep.subr.bf16.mxu0 0
        %2732 = vmatpush1.bf16.msra.mxu0 0
        %2733 = vmatprep.mubr.bf16.mxu0 0
        %2734 = vmatmul.mubr.bf16.gmra.mrb[0].mxu0 %v1152
        %v2735 = vpop.f32.mrb[0].mxu0
        %v2736 = vadd.f32 0.0, %v2735
        %v2737 = vpop.f32.mrb[0].mxu0
        %v2738 = vpop.f32.mrb[0].mxu0
        %v2739 = vadd.f32 0.0, %v2738
        %v2740 = vpop.f32.mrb[0].mxu0
        %2741 = vmatprep.mubr.bf16.mxu0 0
        %2742 = vmatmul.mubr.bf16.gmra.mrb[0].mxu0 %v1155
        %v2743 = vpop.f32.mrb[0].mxu0
        %v2744 = vadd.f32 0.0, %v2743
        %v2745 = vpop.f32.mrb[0].mxu0
        %v2746 = vpop.f32.mrb[0].mxu0
        %v2747 = vadd.f32 0.0, %v2746
        %v2748 = vpop.f32.mrb[0].mxu0
        %2749 = vmatprep.mubr.bf16.mxu0 0
        %2750 = vmatmul.mubr.bf16.gmra.mrb[0].mxu0 %v1158
        %v2751 = vpop.f32.mrb[0].mxu0
        %v2752 = vadd.f32 0.0, %v2751
        %v2753 = vpop.f32.mrb[0].mxu0
        %v2754 = vpop.f32.mrb[0].mxu0
        %v2755 = vadd.f32 0.0, %v2754
        %v2756 = vpop.f32.mrb[0].mxu0
        %2757 = vmatprep.mubr.bf16.mxu0 0
        %2758 = vmatmul.mubr.bf16.gmra.mrb[0].mxu0 %v1161
        %v2759 = vpop.f32.mrb[0].mxu0
        %v2760 = vadd.f32 0.0, %v2759
        %v2761 = vpop.f32.mrb[0].mxu0
        %v2762 = vpop.f32.mrb[0].mxu0
        %v2763 = vadd.f32 0.0, %v2762
        %v2764 = vpop.f32.mrb[0].mxu0
        %2765 = vmatprep.mubr.bf16.mxu0 0
        %2766 = vmatmul.mubr.bf16.gmra.mrb[0].mxu0 %v1164
        %v2767 = vpop.f32.mrb[0].mxu0
        %v2768 = vadd.f32 0.0, %v2767
        %v2769 = vpop.f32.mrb[0].mxu0
        %v2770 = vpop.f32.mrb[0].mxu0
        %v2771 = vadd.f32 0.0, %v2770
        %v2772 = vpop.f32.mrb[0].mxu0
        %2773 = vmatprep.mubr.bf16.mxu0 0
        %2774 = vmatmul.mubr.bf16.gmra.mrb[0].mxu0 %v1167
        %v2775 = vpop.f32.mrb[0].mxu0
        %v2776 = vadd.f32 0.0, %v2775
        %v2777 = vpop.f32.mrb[0].mxu0
        %v2778 = vpop.f32.mrb[0].mxu0
        %v2779 = vadd.f32 0.0, %v2778
        %v2780 = vpop.f32.mrb[0].mxu0
        %2781 = vmatprep.mubr.bf16.mxu0 0
        %2782 = vmatmul.mubr.bf16.gmra.mrb[0].mxu0 %v1170
        %v2783 = vpop.f32.mrb[0].mxu0
        %v2784 = vadd.f32 0.0, %v2783
        %v2785 = vpop.f32.mrb[0].mxu0
        %v2786 = vpop.f32.mrb[0].mxu0
        %v2787 = vadd.f32 0.0, %v2786
        %v2788 = vpop.f32.mrb[0].mxu0
        %2789 = vmatprep.mubr.bf16.mxu0 0
        %2790 = vmatmul.mubr.bf16.gmra.mrb[0].mxu0 %v1173
        %v2791 = vpop.f32.mrb[0].mxu0
        %v2792 = vadd.f32 0.0, %v2791
        %v2793 = vpop.f32.mrb[0].mxu0
        %v2794 = vpop.f32.mrb[0].mxu0
        %v2795 = vadd.f32 0.0, %v2794
        %v2796 = vpop.f32.mrb[0].mxu0
        %2797 = vmatprep.mubr.bf16.mxu0 0
        %2798 = vmatmul.mubr.bf16.gmra.mrb[0].mxu0 %v1176
        %v2799 = vpop.f32.mrb[0].mxu0
        %v2800 = vadd.f32 0.0, %v2799
        %v2801 = vpop.f32.mrb[0].mxu0
        %v2802 = vpop.f32.mrb[0].mxu0
        %v2803 = vadd.f32 0.0, %v2802
        %v2804 = vpop.f32.mrb[0].mxu0
        %2805 = vmatprep.mubr.bf16.mxu0 0
        %2806 = vmatmul.mubr.bf16.gmra.mrb[0].mxu0 %v1179
        %v2807 = vpop.f32.mrb[0].mxu0
        %v2808 = vadd.f32 0.0, %v2807
        %v2809 = vpop.f32.mrb[0].mxu0
        %v2810 = vpop.f32.mrb[0].mxu0
        %v2811 = vadd.f32 0.0, %v2810
        %v2812 = vpop.f32.mrb[0].mxu0
        %2813 = vmatprep.mubr.bf16.mxu0 0
        %2814 = vmatmul.mubr.bf16.gmra.mrb[0].mxu0 %v1182
        %v2815 = vpop.f32.mrb[0].mxu0
        %v2816 = vadd.f32 0.0, %v2815
        %v2817 = vpop.f32.mrb[0].mxu0
        %v2818 = vpop.f32.mrb[0].mxu0
        %v2819 = vadd.f32 0.0, %v2818
        %v2820 = vpop.f32.mrb[0].mxu0
        %2821 = vmatprep.mubr.bf16.mxu0 0
        %2822 = vmatmul.mubr.bf16.gmra.mrb[0].mxu0 %v1185
        %v2823 = vpop.f32.mrb[0].mxu0
        %v2824 = vadd.f32 0.0, %v2823
        %v2825 = vpop.f32.mrb[0].mxu0
        %v2826 = vpop.f32.mrb[0].mxu0
        %v2827 = vadd.f32 0.0, %v2826
        %v2828 = vpop.f32.mrb[0].mxu0
        %2829 = vmatprep.mubr.bf16.mxu0 0
        %2830 = vmatmul.mubr.bf16.gmra.mrb[0].mxu0 %v1188
        %v2831 = vpop.f32.mrb[0].mxu0
        %v2832 = vadd.f32 0.0, %v2831
        %v2833 = vpop.f32.mrb[0].mxu0
        %v2834 = vpop.f32.mrb[0].mxu0
        %v2835 = vadd.f32 0.0, %v2834
        %v2836 = vpop.f32.mrb[0].mxu0
        %2837 = vmatprep.mubr.bf16.mxu0 0
        %2838 = vmatmul.mubr.bf16.gmra.mrb[0].mxu0 %v1191
        %v2839 = vpop.f32.mrb[0].mxu0
        %v2840 = vadd.f32 0.0, %v2839
        %v2841 = vpop.f32.mrb[0].mxu0
        %v2842 = vpop.f32.mrb[0].mxu0
        %v2843 = vadd.f32 0.0, %v2842
        %v2844 = vpop.f32.mrb[0].mxu0
        %2845 = vmatprep.mubr.bf16.mxu0 0
        %2846 = vmatmul.mubr.bf16.gmra.mrb[0].mxu0 %v2050
        %v2847 = vpop.f32.mrb[0].mxu0
        %v2848 = vadd.f32 0.0, %v2847
        %v2849 = vpop.f32.mrb[0].mxu0
        %v2850 = vpop.f32.mrb[0].mxu0
        %v2851 = vadd.f32 0.0, %v2850
        %v2852 = vpop.f32.mrb[0].mxu0
        %2853 = vmatprep.mubr.bf16.mxu0 0
        %2854 = vmatmul.mubr.bf16.gmra.mrb[0].mxu0 %v2696
        %v2855 = vpop.f32.mrb[0].mxu0
        %v2856 = vadd.f32 0.0, %v2855
        %v2857 = vpop.f32.mrb[0].mxu0
        %v2858 = vpop.f32.mrb[0].mxu0
        %v2859 = vadd.f32 0.0, %v2858
        %v2860 = vpop.f32.mrb[0].mxu0
        %2861 = vdwg.mxu0
        %v2862 = vadd.f32 %v2634, %v2736
        %v2863 = vadd.f32 %v2635, %v2739
        %v2864 = vadd.f32 %v2636, %v2744
        %v2865 = vadd.f32 %v2637, %v2747
        %v2866 = vadd.f32 %v2638, %v2752
        %v2867 = vadd.f32 %v2639, %v2755
        %v2868 = vadd.f32 %v2640, %v2760
        %v2869 = vadd.f32 %v2641, %v2763
        %v2870 = vadd.f32 %v2642, %v2768
        %v2871 = vadd.f32 %v2643, %v2771
        %v2872 = vadd.f32 %v2644, %v2776
        %v2873 = vadd.f32 %v2645, %v2779
        %v2874 = vadd.f32 %v2646, %v2784
        %v2875 = vadd.f32 %v2647, %v2787
        %v2876 = vadd.f32 %v2648, %v2792
        %v2877 = vadd.f32 %v2649, %v2795
        %v2878 = vadd.f32 %v2650, %v2800
        %v2879 = vadd.f32 %v2651, %v2803
        %v2880 = vadd.f32 %v2652, %v2808
        %v2881 = vadd.f32 %v2653, %v2811
        %v2882 = vadd.f32 %v2654, %v2816
        %v2883 = vadd.f32 %v2655, %v2819
        %v2884 = vadd.f32 %v2656, %v2824
        %v2885 = vadd.f32 %v2657, %v2827
        %v2886 = vadd.f32 %v2658, %v2832
        %v2887 = vadd.f32 %v2659, %v2835
        %v2888 = vadd.f32 %v2660, %v2840
        %v2889 = vadd.f32 %v2661, %v2843
        %v2890 = vadd.f32 %v2662, %v2848
        %v2891 = vadd.f32 %v2663, %v2851
        %v2892 = vadd.f32 %v2664, %v2856
        %v2893 = vadd.f32 %v2665, %v2859
        %v2895 = vrot.slane %v346, 5
        %v2896 = vrot.slane %v2895, 4
        %v2897 = vrot.slane %v347, 5
        %v2898 = vsel %vm1407, %v2896, %v2897
        %v2899 = vrot.slane %v2897, 4
        %v2900 = vrot.slane %v348, 5
        %v2901 = vsel %vm1407, %v2899, %v2900
        %s2902 = scalar_lea.vmem [#allocation6], 16
        %v2903 = vld [vmem:[%s2902] sm:$0x3]
        %v2904 = vunpack.c.l.b16 %v2898
        %v2905 = vunpack.c.l.b16 %v2901
        %v2906 = vpack.c.b16 %v2905, %v2904
        %v2908 = vsel %vm462, %v2906, 0
        %v2911 = vsel %vm511, %v2903, 0
        %2913 = vmatprep.subr.bf16.mxu0 0
        %2914 = vmatpush1.bf16.msra.mxu0 %v2911
        %2915 = vmatprep.subr.bf16.mxu0 0
        %2916 = vmatpush1.bf16.msra.mxu0 0
        %2917 = vmatprep.subr.bf16.mxu0 0
        %2918 = vmatpush1.bf16.msra.mxu0 0
        %2919 = vmatprep.subr.bf16.mxu0 0
        %2920 = vmatpush1.bf16.msra.mxu0 0
        %2921 = vmatprep.subr.bf16.mxu0 0
        %2922 = vmatpush1.bf16.msra.mxu0 0
        %2923 = vmatprep.subr.bf16.mxu0 0
        %2924 = vmatpush1.bf16.msra.mxu0 0
        %2925 = vmatprep.subr.bf16.mxu0 0
        %2926 = vmatpush1.bf16.msra.mxu0 0
        %2927 = vmatprep.subr.bf16.mxu0 0
        %2928 = vmatpush1.bf16.msra.mxu0 0
        %2929 = vmatprep.subr.bf16.mxu0 0
        %2930 = vmatpush1.bf16.msra.mxu0 0
        %2931 = vmatprep.subr.bf16.mxu0 0
        %2932 = vmatpush1.bf16.msra.mxu0 0
        %2933 = vmatprep.subr.bf16.mxu0 0
        %2934 = vmatpush1.bf16.msra.mxu0 0
        %2935 = vmatprep.subr.bf16.mxu0 0
        %2936 = vmatpush1.bf16.msra.mxu0 0
        %2937 = vmatprep.subr.bf16.mxu0 0
        %2938 = vmatpush1.bf16.msra.mxu0 0
        %2939 = vmatprep.subr.bf16.mxu0 0
        %2940 = vmatpush1.bf16.msra.mxu0 0
        %2941 = vmatprep.subr.bf16.mxu0 0
        %2942 = vmatpush1.bf16.msra.mxu0 0
        %2943 = vmatprep.subr.bf16.mxu0 0
        %2944 = vmatpush1.bf16.msra.mxu0 0
        %2945 = vmatprep.mubr.bf16.mxu0 0
        %2946 = vmatmul.mubr.bf16.gmra.mrb[0].mxu0 %v1577
        %v2947 = vpop.f32.mrb[0].mxu0
        %v2948 = vadd.f32 0.0, %v2947
        %v2949 = vpop.f32.mrb[0].mxu0
        %v2950 = vpop.f32.mrb[0].mxu0
        %v2951 = vadd.f32 0.0, %v2950
        %v2952 = vpop.f32.mrb[0].mxu0
        %2953 = vmatprep.mubr.bf16.mxu0 0
        %2954 = vmatmul.mubr.bf16.gmra.mrb[0].mxu0 %v1580
        %v2955 = vpop.f32.mrb[0].mxu0
        %v2956 = vadd.f32 0.0, %v2955
        %v2957 = vpop.f32.mrb[0].mxu0
        %v2958 = vpop.f32.mrb[0].mxu0
        %v2959 = vadd.f32 0.0, %v2958
        %v2960 = vpop.f32.mrb[0].mxu0
        %2961 = vmatprep.mubr.bf16.mxu0 0
        %2962 = vmatmul.mubr.bf16.gmra.mrb[0].mxu0 %v1583
        %v2963 = vpop.f32.mrb[0].mxu0
        %v2964 = vadd.f32 0.0, %v2963
        %v2965 = vpop.f32.mrb[0].mxu0
        %v2966 = vpop.f32.mrb[0].mxu0
        %v2967 = vadd.f32 0.0, %v2966
        %v2968 = vpop.f32.mrb[0].mxu0
        %2969 = vmatprep.mubr.bf16.mxu0 0
        %2970 = vmatmul.mubr.bf16.gmra.mrb[0].mxu0 %v1586
        %v2971 = vpop.f32.mrb[0].mxu0
        %v2972 = vadd.f32 0.0, %v2971
        %v2973 = vpop.f32.mrb[0].mxu0
        %v2974 = vpop.f32.mrb[0].mxu0
        %v2975 = vadd.f32 0.0, %v2974
        %v2976 = vpop.f32.mrb[0].mxu0
        %2977 = vmatprep.mubr.bf16.mxu0 0
        %2978 = vmatmul.mubr.bf16.gmra.mrb[0].mxu0 %v1589
        %v2979 = vpop.f32.mrb[0].mxu0
        %v2980 = vadd.f32 0.0, %v2979
        %v2981 = vpop.f32.mrb[0].mxu0
        %v2982 = vpop.f32.mrb[0].mxu0
        %v2983 = vadd.f32 0.0, %v2982
        %v2984 = vpop.f32.mrb[0].mxu0
        %2985 = vmatprep.mubr.bf16.mxu0 0
        %2986 = vmatmul.mubr.bf16.gmra.mrb[0].mxu0 %v1592
        %v2987 = vpop.f32.mrb[0].mxu0
        %v2988 = vadd.f32 0.0, %v2987
        %v2989 = vpop.f32.mrb[0].mxu0
        %v2990 = vpop.f32.mrb[0].mxu0
        %v2991 = vadd.f32 0.0, %v2990
        %v2992 = vpop.f32.mrb[0].mxu0
        %2993 = vmatprep.mubr.bf16.mxu0 0
        %2994 = vmatmul.mubr.bf16.gmra.mrb[0].mxu0 %v1595
        %v2995 = vpop.f32.mrb[0].mxu0
        %v2996 = vadd.f32 0.0, %v2995
        %v2997 = vpop.f32.mrb[0].mxu0
        %v2998 = vpop.f32.mrb[0].mxu0
        %v2999 = vadd.f32 0.0, %v2998
        %v3000 = vpop.f32.mrb[0].mxu0
        %3001 = vmatprep.mubr.bf16.mxu0 0
        %3002 = vmatmul.mubr.bf16.gmra.mrb[0].mxu0 %v1598
        %v3003 = vpop.f32.mrb[0].mxu0
        %v3004 = vadd.f32 0.0, %v3003
        %v3005 = vpop.f32.mrb[0].mxu0
        %v3006 = vpop.f32.mrb[0].mxu0
        %v3007 = vadd.f32 0.0, %v3006
        %v3008 = vpop.f32.mrb[0].mxu0
        %3009 = vmatprep.mubr.bf16.mxu0 0
        %3010 = vmatmul.mubr.bf16.gmra.mrb[0].mxu0 %v1601
        %v3011 = vpop.f32.mrb[0].mxu0
        %v3012 = vadd.f32 0.0, %v3011
        %v3013 = vpop.f32.mrb[0].mxu0
        %v3014 = vpop.f32.mrb[0].mxu0
        %v3015 = vadd.f32 0.0, %v3014
        %v3016 = vpop.f32.mrb[0].mxu0
        %3017 = vmatprep.mubr.bf16.mxu0 0
        %3018 = vmatmul.mubr.bf16.gmra.mrb[0].mxu0 %v1604
        %v3019 = vpop.f32.mrb[0].mxu0
        %v3020 = vadd.f32 0.0, %v3019
        %v3021 = vpop.f32.mrb[0].mxu0
        %v3022 = vpop.f32.mrb[0].mxu0
        %v3023 = vadd.f32 0.0, %v3022
        %v3024 = vpop.f32.mrb[0].mxu0
        %3025 = vmatprep.mubr.bf16.mxu0 0
        %3026 = vmatmul.mubr.bf16.gmra.mrb[0].mxu0 %v1607
        %v3027 = vpop.f32.mrb[0].mxu0
        %v3028 = vadd.f32 0.0, %v3027
        %v3029 = vpop.f32.mrb[0].mxu0
        %v3030 = vpop.f32.mrb[0].mxu0
        %v3031 = vadd.f32 0.0, %v3030
        %v3032 = vpop.f32.mrb[0].mxu0
        %3033 = vmatprep.mubr.bf16.mxu0 0
        %3034 = vmatmul.mubr.bf16.gmra.mrb[0].mxu0 %v1610
        %v3035 = vpop.f32.mrb[0].mxu0
        %v3036 = vadd.f32 0.0, %v3035
        %v3037 = vpop.f32.mrb[0].mxu0
        %v3038 = vpop.f32.mrb[0].mxu0
        %v3039 = vadd.f32 0.0, %v3038
        %v3040 = vpop.f32.mrb[0].mxu0
        %3041 = vmatprep.mubr.bf16.mxu0 0
        %3042 = vmatmul.mubr.bf16.gmra.mrb[0].mxu0 %v1613
        %v3043 = vpop.f32.mrb[0].mxu0
        %v3044 = vadd.f32 0.0, %v3043
        %v3045 = vpop.f32.mrb[0].mxu0
        %v3046 = vpop.f32.mrb[0].mxu0
        %v3047 = vadd.f32 0.0, %v3046
        %v3048 = vpop.f32.mrb[0].mxu0
        %3049 = vmatprep.mubr.bf16.mxu0 0
        %3050 = vmatmul.mubr.bf16.gmra.mrb[0].mxu0 %v1616
        %v3051 = vpop.f32.mrb[0].mxu0
        %v3052 = vadd.f32 0.0, %v3051
        %v3053 = vpop.f32.mrb[0].mxu0
        %v3054 = vpop.f32.mrb[0].mxu0
        %v3055 = vadd.f32 0.0, %v3054
        %v3056 = vpop.f32.mrb[0].mxu0
        %3057 = vmatprep.mubr.bf16.mxu0 0
        %3058 = vmatmul.mubr.bf16.gmra.mrb[0].mxu0 %v2262
        %v3059 = vpop.f32.mrb[0].mxu0
        %v3060 = vadd.f32 0.0, %v3059
        %v3061 = vpop.f32.mrb[0].mxu0
        %v3062 = vpop.f32.mrb[0].mxu0
        %v3063 = vadd.f32 0.0, %v3062
        %v3064 = vpop.f32.mrb[0].mxu0
        %3065 = vmatprep.mubr.bf16.mxu0 0
        %3066 = vmatmul.mubr.bf16.gmra.mrb[0].mxu0 %v2908
        %v3067 = vpop.f32.mrb[0].mxu0
        %v3068 = vadd.f32 0.0, %v3067
        %v3069 = vpop.f32.mrb[0].mxu0
        %v3070 = vpop.f32.mrb[0].mxu0
        %v3071 = vadd.f32 0.0, %v3070
        %v3072 = vpop.f32.mrb[0].mxu0
        %3073 = vdwg.mxu0
        %v3074 = vadd.f32 %v2862, %v2948
        %v3075 = vadd.f32 %v2863, %v2951
        %v3076 = vadd.f32 %v2864, %v2956
        %v3077 = vadd.f32 %v2865, %v2959
        %v3078 = vadd.f32 %v2866, %v2964
        %v3079 = vadd.f32 %v2867, %v2967
        %v3080 = vadd.f32 %v2868, %v2972
        %v3081 = vadd.f32 %v2869, %v2975
        %v3082 = vadd.f32 %v2870, %v2980
        %v3083 = vadd.f32 %v2871, %v2983
        %v3084 = vadd.f32 %v2872, %v2988
        %v3085 = vadd.f32 %v2873, %v2991
        %v3086 = vadd.f32 %v2874, %v2996
        %v3087 = vadd.f32 %v2875, %v2999
        %v3088 = vadd.f32 %v2876, %v3004
        %v3089 = vadd.f32 %v2877, %v3007
        %v3090 = vadd.f32 %v2878, %v3012
        %v3091 = vadd.f32 %v2879, %v3015
        %v3092 = vadd.f32 %v2880, %v3020
        %v3093 = vadd.f32 %v2881, %v3023
        %v3094 = vadd.f32 %v2882, %v3028
        %v3095 = vadd.f32 %v2883, %v3031
        %v3096 = vadd.f32 %v2884, %v3036
        %v3097 = vadd.f32 %v2885, %v3039
        %v3098 = vadd.f32 %v2886, %v3044
        %v3099 = vadd.f32 %v2887, %v3047
        %v3100 = vadd.f32 %v2888, %v3052
        %v3101 = vadd.f32 %v2889, %v3055
        %v3102 = vadd.f32 %v2890, %v3060
        %v3103 = vadd.f32 %v2891, %v3063
        %v3104 = vadd.f32 %v2892, %v3068
        %v3105 = vadd.f32 %v2893, %v3071
        %p3106 = scmp.lt.s32.totalorder %s28, 0
        // Predicated region
        $region49: #{tpu_custom_call.1} parent=31 // pred_check
          %p3107 = pneg %p3106
        $region50: #{tpu_custom_call.1} parent=31 // pred_check_branch
          %3109 = sbr.rel (%p3107) target = $region52
        $region51: #{tpu_custom_call.1} parent=31 // pred_region
          %vm3110 = vcmask 261120
          %3111 = vst.msk [vmem:[#allocation2] sm:$0xff] %vm3110, %v3074
          %3112 = vst.msk [vmem:[#allocation2 + $0x8] sm:$0xff] %vm3110, %v3075
          %3113 = vst.msk [vmem:[#allocation2 + $0x10] sm:$0xff] %vm3110, %v3076
          %3114 = vst.msk [vmem:[#allocation2 + $0x18] sm:$0xff] %vm3110, %v3077
          %3115 = vst.msk [vmem:[#allocation2 + $0x20] sm:$0xff] %vm3110, %v3078
          %3116 = vst.msk [vmem:[#allocation2 + $0x28] sm:$0xff] %vm3110, %v3079
          %3117 = vst.msk [vmem:[#allocation2 + $0x30] sm:$0xff] %vm3110, %v3080
          %3118 = vst.msk [vmem:[#allocation2 + $0x38] sm:$0xff] %vm3110, %v3081
          %3119 = vst.msk [vmem:[#allocation2 + $0x40] sm:$0xff] %vm3110, %v3082
          %3120 = vst.msk [vmem:[#allocation2 + $0x48] sm:$0xff] %vm3110, %v3083
          %3121 = vst.msk [vmem:[#allocation2 + $0x50] sm:$0xff] %vm3110, %v3084
          %3122 = vst.msk [vmem:[#allocation2 + $0x58] sm:$0xff] %vm3110, %v3085
          %3123 = vst.msk [vmem:[#allocation2 + $0x60] sm:$0xff] %vm3110, %v3086
          %3124 = vst.msk [vmem:[#allocation2 + $0x68] sm:$0xff] %vm3110, %v3087
          %3125 = vst.msk [vmem:[#allocation2 + $0x70] sm:$0xff] %vm3110, %v3088
          %3126 = vst.msk [vmem:[#allocation2 + $0x78] sm:$0xff] %vm3110, %v3089
          %3127 = vst.msk [vmem:[#allocation2 + $0x80] sm:$0xff] %vm3110, %v3090
          %3128 = vst.msk [vmem:[#allocation2 + $0x88] sm:$0xff] %vm3110, %v3091
          %3129 = vst.msk [vmem:[#allocation2 + $0x90] sm:$0xff] %vm3110, %v3092
          %3130 = vst.msk [vmem:[#allocation2 + $0x98] sm:$0xff] %vm3110, %v3093
          %3131 = vst.msk [vmem:[#allocation2 + $0xa0] sm:$0xff] %vm3110, %v3094
          %3132 = vst.msk [vmem:[#allocation2 + $0xa8] sm:$0xff] %vm3110, %v3095
          %3133 = vst.msk [vmem:[#allocation2 + $0xb0] sm:$0xff] %vm3110, %v3096
          %3134 = vst.msk [vmem:[#allocation2 + $0xb8] sm:$0xff] %vm3110, %v3097
          %3135 = vst.msk [vmem:[#allocation2 + $0xc0] sm:$0xff] %vm3110, %v3098
          %3136 = vst.msk [vmem:[#allocation2 + $0xc8] sm:$0xff] %vm3110, %v3099
          %3137 = vst.msk [vmem:[#allocation2 + $0xd0] sm:$0xff] %vm3110, %v3100
          %3138 = vst.msk [vmem:[#allocation2 + $0xd8] sm:$0xff] %vm3110, %v3101
          %3139 = vst.msk [vmem:[#allocation2 + $0xe0] sm:$0xff] %vm3110, %v3102
          %3140 = vst.msk [vmem:[#allocation2 + $0xe8] sm:$0xff] %vm3110, %v3103
          %3141 = vst.msk [vmem:[#allocation2 + $0xf0] sm:$0xff] %vm3110, %v3104
          %3142 = vst.msk [vmem:[#allocation2 + $0xf8] sm:$0xff] %vm3110, %v3105
        $region52: #{tpu_custom_call.1} parent=31 // pred_fallthru
          _
        // Predicated region
        $region53: #{tpu_custom_call.1} parent=31 // pred_check
          %p3143 = pneg %p258
        $region54: #{tpu_custom_call.1} parent=31 // pred_check_branch
          %3145 = sbr.rel (%p3143) target = $region56
        $region55: #{tpu_custom_call.1} parent=31 // pred_region
          %v3146 = vld [vmem:[#allocation8] sm:$0x1]
          %v3148 = vlaneseq
          %v3149 = vshrl.u32 %v3148, 7
          %v3150 = vsub.s32 0, %v3149
          %v3151 = vrot.slane %v3146, %v3150
          %v3153 = vadd.f32 %v3074, %v3151
          %v3154 = vadd.f32 %v3075, %v3151
          %v3155 = vadd.f32 %v3076, %v3151
          %v3156 = vadd.f32 %v3077, %v3151
          %v3157 = vadd.f32 %v3078, %v3151
          %v3158 = vadd.f32 %v3079, %v3151
          %v3159 = vadd.f32 %v3080, %v3151
          %v3160 = vadd.f32 %v3081, %v3151
          %v3161 = vadd.f32 %v3082, %v3151
          %v3162 = vadd.f32 %v3083, %v3151
          %v3163 = vadd.f32 %v3084, %v3151
          %v3164 = vadd.f32 %v3085, %v3151
          %v3165 = vadd.f32 %v3086, %v3151
          %v3166 = vadd.f32 %v3087, %v3151
          %v3167 = vadd.f32 %v3088, %v3151
          %v3168 = vadd.f32 %v3089, %v3151
          %v3169 = vadd.f32 %v3090, %v3151
          %v3170 = vadd.f32 %v3091, %v3151
          %v3171 = vadd.f32 %v3092, %v3151
          %v3172 = vadd.f32 %v3093, %v3151
          %v3173 = vadd.f32 %v3094, %v3151
          %v3174 = vadd.f32 %v3095, %v3151
          %v3175 = vadd.f32 %v3096, %v3151
          %v3176 = vadd.f32 %v3097, %v3151
          %v3177 = vadd.f32 %v3098, %v3151
          %v3178 = vadd.f32 %v3099, %v3151
          %v3179 = vadd.f32 %v3100, %v3151
          %v3180 = vadd.f32 %v3101, %v3151
          %v3181 = vadd.f32 %v3102, %v3151
          %v3182 = vadd.f32 %v3103, %v3151
          %v3183 = vadd.f32 %v3104, %v3151
          %v3184 = vadd.f32 %v3105, %v3151
          %vm3185 = vcmask 261120
          %3186 = vst.msk [vmem:[%s256] sm:$0xff] %vm3185, %v3153
          %3187 = vst.msk [vmem:[%s256 + $0x8] sm:$0xff] %vm3185, %v3154
          %3188 = vst.msk [vmem:[%s256 + $0x10] sm:$0xff] %vm3185, %v3155
          %3189 = vst.msk [vmem:[%s256 + $0x18] sm:$0xff] %vm3185, %v3156
          %3190 = vst.msk [vmem:[%s256 + $0x20] sm:$0xff] %vm3185, %v3157
          %3191 = vst.msk [vmem:[%s256 + $0x28] sm:$0xff] %vm3185, %v3158
          %3192 = vst.msk [vmem:[%s256 + $0x30] sm:$0xff] %vm3185, %v3159
          %3193 = vst.msk [vmem:[%s256 + $0x38] sm:$0xff] %vm3185, %v3160
          %3194 = vst.msk [vmem:[%s256 + $0x40] sm:$0xff] %vm3185, %v3161
          %3195 = vst.msk [vmem:[%s256 + $0x48] sm:$0xff] %vm3185, %v3162
          %3196 = vst.msk [vmem:[%s256 + $0x50] sm:$0xff] %vm3185, %v3163
          %3197 = vst.msk [vmem:[%s256 + $0x58] sm:$0xff] %vm3185, %v3164
          %3198 = vst.msk [vmem:[%s256 + $0x60] sm:$0xff] %vm3185, %v3165
          %3199 = vst.msk [vmem:[%s256 + $0x68] sm:$0xff] %vm3185, %v3166
          %3200 = vst.msk [vmem:[%s256 + $0x70] sm:$0xff] %vm3185, %v3167
          %3201 = vst.msk [vmem:[%s256 + $0x78] sm:$0xff] %vm3185, %v3168
          %3202 = vst.msk [vmem:[%s256 + $0x80] sm:$0xff] %vm3185, %v3169
          %3203 = vst.msk [vmem:[%s256 + $0x88] sm:$0xff] %vm3185, %v3170
          %3204 = vst.msk [vmem:[%s256 + $0x90] sm:$0xff] %vm3185, %v3171
          %3205 = vst.msk [vmem:[%s256 + $0x98] sm:$0xff] %vm3185, %v3172
          %3206 = vst.msk [vmem:[%s256 + $0xa0] sm:$0xff] %vm3185, %v3173
          %3207 = vst.msk [vmem:[%s256 + $0xa8] sm:$0xff] %vm3185, %v3174
          %3208 = vst.msk [vmem:[%s256 + $0xb0] sm:$0xff] %vm3185, %v3175
          %3209 = vst.msk [vmem:[%s256 + $0xb8] sm:$0xff] %vm3185, %v3176
          %3210 = vst.msk [vmem:[%s256 + $0xc0] sm:$0xff] %vm3185, %v3177
          %3211 = vst.msk [vmem:[%s256 + $0xc8] sm:$0xff] %vm3185, %v3178
          %3212 = vst.msk [vmem:[%s256 + $0xd0] sm:$0xff] %vm3185, %v3179
          %3213 = vst.msk [vmem:[%s256 + $0xd8] sm:$0xff] %vm3185, %v3180
          %3214 = vst.msk [vmem:[%s256 + $0xe0] sm:$0xff] %vm3185, %v3181
          %3215 = vst.msk [vmem:[%s256 + $0xe8] sm:$0xff] %vm3185, %v3182
          %3216 = vst.msk [vmem:[%s256 + $0xf0] sm:$0xff] %vm3185, %v3183
          %3217 = vst.msk [vmem:[%s256 + $0xf8] sm:$0xff] %vm3185, %v3184
        $region56: #{tpu_custom_call.1} parent=31 // pred_fallthru
          _
        %s3218 = sand.u32 %s132, 1
        %s3219 = scalar_lea.sflag [#allocation5], %s3218
        %s3220 = sand.u32 %s132, 1
        %s3221 = smul.addr %s3220, 256
        %s3222 = scalar_lea.vmem [#allocation9], %s3221
        // Predicated region
        $region57: #{tpu_custom_call.1} parent=31 // pred_check
          %p3223 = pneg %p142
        $region58: #{tpu_custom_call.1} parent=31 // pred_check_branch
          %3225 = sbr.rel (%p3223) target = $region60
        $region59: #{tpu_custom_call.1} parent=31 // pred_region
          %s3227 = ssub.s32 4096, 4096
          %3228 = vsyncadd %s3219, %s3227
          %s3229 = smul.addr %s26, 32
          %s3230 = sadd.s32 %s27, %s3229
          %s3231 = smul.addr %s3230, 128
          %s3232 = scalar_lea.hbm %s3, %s3231
          %s3233 = sshll.u32 %s3222, 4
          %s3234 = int_to_ptr.vmem [resolvable:$true] %s3233
          %3239 = dma.vmem_to_hbm [thread:$0]  %s3234, 4096, %s3232, %s3219, 128, 128, 8
        $region60: #{tpu_custom_call.1} parent=31 // pred_fallthru
          _
      $region32: #{tpu_custom_call.1} parent=5 // pred_fallthru
        _
      %p3240 = scmp.le.s32.totalorder 2, %s16
      // Predicated region
      $region61: #{tpu_custom_call.1} parent=5 // pred_check
        %p3241 = pneg %p3240
      $region62: #{tpu_custom_call.1} parent=5 // pred_check_branch
        %3243 = sbr.rel (%p3241) target = $region64
      $region63: #{tpu_custom_call.1} parent=5 // pred_region
        %s3244 = ssub.s32 %s16, 2
        // Predicated region
        $region65: #{tpu_custom_call.1} parent=63 // pred_check
          %p3245 = pneg %p148
        $region66: #{tpu_custom_call.1} parent=63 // pred_check_branch
          %3247 = sbr.rel (%p3245) target = $region68
        $region67: #{tpu_custom_call.1} parent=63 // pred_region
          %s3248 = sand.u32 %s133, 1
          %s3249 = scalar_lea.sflag [#allocation5], %s3248
          %s3250 = sand.u32 %s133, 1
          %s3251 = smul.addr %s3250, 256
          %s3252 = scalar_lea.vmem [#allocation9], %s3251
          %3253 = dma.done %s3249, 4096
        $region68: #{tpu_custom_call.1} parent=63 // pred_fallthru
          _
      $region64: #{tpu_custom_call.1} parent=5 // pred_fallthru
        _
    $region6: #{tpu_custom_call.1} parent=1 // loop_footer
      %s20 = sadd.s32 1, %s16
    $region7: #{tpu_custom_call.1} parent=1 // loop_footer_branch
      %15 = sbr.rel target = $region3
    $region8: #{tpu_custom_call.1} parent=1 // loop_exit
      _
    %3254 = vsyncpa [#allocation4], 1
    %s3255 = scalar_lea.sflag [#allocation4], 1
    %3256 = vsyncpa %s3255, 1
    %3257 = vsyncpa [#allocation7], 1
    %3258 = vsyncpa [#allocation5], 1
    %s3259 = scalar_lea.sflag [#allocation5], 1
    %3260 = vsyncpa %s3259, 1

</llo_original>
